<compile_context>
chip_gen: v7x
topology: tpu7x:2x2x1
jax: 0.10.0
libtpu: 0.0.40
codegen_flags: <defaults>
</compile_context>

<pallas_src>
import functools

import numpy as np
import jax
import jax.numpy as jnp
from jax.experimental import pallas as pl
from jax.experimental.pallas import tpu as pltpu

_LN_EPS = 1e-5
_MASK = -1e30
_VMEM_LIMIT = 48 * 1024 * 1024


# ----------------------------- in-kernel helpers -----------------------------

def _layernorm(x, g, b):
    mu = jnp.mean(x, axis=-1, keepdims=True)
    var = jnp.mean(jnp.square(x - mu), axis=-1, keepdims=True)
    return (x - mu) * jax.lax.rsqrt(var + _LN_EPS) * g + b


def _erf(x):
    # Abramowitz & Stegun 7.1.26 polynomial, |err| < 1.5e-7 (fp32-accurate exact-GELU).
    a1, a2, a3, a4, a5 = (0.254829592, -0.284496736, 1.421413741,
                          -1.453152027, 1.061405429)
    p = 0.3275911
    ax = jnp.abs(x)
    t = 1.0 / (1.0 + p * ax)            # exact reciprocal: keeps the polynomial accuracy
    poly = ((((a5 * t + a4) * t + a3) * t + a2) * t + a1) * t
    y = 1.0 - poly * jnp.exp(-ax * ax)
    return jnp.where(x >= 0, y, -y)


def _gelu_exact(x):
    # matches torch.nn.GELU() (erf form)
    return 0.5 * x * (1.0 + _erf(x * 0.7071067811865476))


# ----------------------------- row-tiling helpers -----------------------------

def _row_plan(nt, pref=512):
    """Pick a row tile (multiple of 8 or full) and the padded row count."""
    if nt <= pref:
        return nt, nt
    tm = pref
    return tm, ((nt + tm - 1) // tm) * tm


def _pad_rows(a, rows):
    if a.shape[0] == rows:
        return a
    return jnp.pad(a, ((0, rows - a.shape[0]), (0, 0)))


# ----------------------------- kernel 1: LN1 + qkv projection -----------------------------

def _ln_qkv_kernel(x_ref, g_ref, b_ref, w_ref, wb_ref, q_ref, k_ref, v_ref):
    c = q_ref.shape[-1]
    xn = _layernorm(x_ref[...], g_ref[...], b_ref[...])
    y = (jnp.dot(xn.astype(jnp.bfloat16), w_ref[...],
                 preferred_element_type=jnp.float32) + wb_ref[...])
    q_ref[...] = y[:, :c].astype(jnp.bfloat16)
    k_ref[...] = y[:, c:2 * c].astype(jnp.bfloat16)
    v_ref[...] = y[:, 2 * c:].astype(jnp.bfloat16)


def ln_qkv(x, g, b, w, wb, tm):
    ntp, c = x.shape
    c3 = w.shape[1]
    return pl.pallas_call(
        _ln_qkv_kernel,
        out_shape=[jax.ShapeDtypeStruct((ntp, c), jnp.bfloat16)] * 3,
        grid=(ntp // tm,),
        in_specs=[
            pl.BlockSpec((tm, c), lambda i: (i, 0)),
            pl.BlockSpec((1, c), lambda i: (0, 0)),
            pl.BlockSpec((1, c), lambda i: (0, 0)),
            pl.BlockSpec((c, c3), lambda i: (0, 0)),
            pl.BlockSpec((1, c3), lambda i: (0, 0)),
        ],
        out_specs=[pl.BlockSpec((tm, c), lambda i: (i, 0))] * 3,
        compiler_params=pltpu.CompilerParams(
            dimension_semantics=("parallel",),
            vmem_limit_bytes=_VMEM_LIMIT),
    )(x, g.reshape(1, c), b.reshape(1, c), w, wb.reshape(1, c3))


# ----------------------------- kernel 2: MXU neighborhood attention -----------------------------

def _nat_attn_kernel(band_ref, gid_ref, q_ref, k_ref, v_ref, bias_ref, o_ref, *,
                     num_heads, head_dim, band_n, starts_aligned):
    qi = pl.program_id(1)
    bs = band_ref[qi]                         # band start (element offset into n), from SMEM
    if starts_aligned:
        bs = pl.multiple_of(bs, 8)            # all band starts are 8-aligned -> plain vector loads

    for h in range(num_heads):                # small static loop over heads
        lo = h * head_dim
        q_h = q_ref[:, lo:lo + head_dim]                      # (tq, hd)     bf16, pre-scaled
        k_h = k_ref[pl.ds(bs, band_n), lo:lo + head_dim]      # (band_n, hd) bf16
        v_h = v_ref[pl.ds(bs, band_n), lo:lo + head_dim]      # (band_n, hd) bf16

        # scores on the MXU: Q_tile @ K_band^T, f32 accumulation
        s = jax.lax.dot_general(
            q_h, k_h, dimension_numbers=(((1,), (1,)), ((), ())),
            preferred_element_type=jnp.float32)               # (tq, band_n)
        s = s + bias_ref[h].astype(jnp.float32)               # bf16 rel-pos bias / -1e30 mask

        m = jnp.max(s, axis=-1, keepdims=True)
        e = jnp.exp(s - m)
        p = e * pl.reciprocal(jnp.sum(e, axis=-1, keepdims=True), approx=True)

        # write this head's PV result straight into the output block (no concat, short live ranges)
        o_ref[:, lo:lo + head_dim] = jnp.dot(
            p.astype(jnp.bfloat16), v_h,
            preferred_element_type=jnp.float32).astype(o_ref.dtype)


def nat_attention(band_start, group_id, q, k, v, bias, *,
                  num_heads, head_dim, tq, band_n, starts_aligned):
    B, n, C = q.shape
    n_qt = n // tq
    kern = functools.partial(_nat_attn_kernel, num_heads=num_heads, head_dim=head_dim,
                             band_n=band_n, starts_aligned=starts_aligned)
    return pl.pallas_call(
        kern,
        out_shape=jax.ShapeDtypeStruct((B, n, C), jnp.bfloat16),
        grid_spec=pltpu.PrefetchScalarGridSpec(
            num_scalar_prefetch=2,
            grid=(B, n_qt),
            in_specs=[
                pl.BlockSpec((None, tq, C), lambda b, qi, bs, gid: (b, qi, 0)),    # Q tile
                pl.BlockSpec((None, n, C), lambda b, qi, bs, gid: (b, 0, 0)),      # K slab (1x/batch)
                pl.BlockSpec((None, n, C), lambda b, qi, bs, gid: (b, 0, 0)),      # V slab (1x/batch)
                pl.BlockSpec((num_heads, None, tq, band_n),                        # dedup'd bf16 bias
                             lambda b, qi, bs, gid: (0, gid[qi], 0, 0)),
            ],
            out_specs=pl.BlockSpec((None, tq, C), lambda b, qi, bs, gid: (b, qi, 0)),
        ),
        compiler_params=pltpu.CompilerParams(
            dimension_semantics=("parallel", "parallel"),
            vmem_limit_bytes=_VMEM_LIMIT),
    )(band_start, group_id, q, k, v, bias)


# ------------- kernel 3: proj + residual + LN2 + MLP(GELU) + residual -------------

def _proj_mlp_kernel(a_ref, sc_ref, wp_ref, bp_ref, g2_ref, b2_ref,
                     w1_ref, bm1_ref, w2_ref, bm2_ref, o_ref, *, h_chunk):
    x1 = (jnp.dot(a_ref[...], wp_ref[...], preferred_element_type=jnp.float32)
          + bp_ref[...] + sc_ref[...])
    xn = _layernorm(x1, g2_ref[...], b2_ref[...]).astype(jnp.bfloat16)

    ch = w1_ref.shape[1]
    y = x1 + bm2_ref[...]
    # chunk the MLP hidden dim: bounds the (tm, chunk) GELU intermediate instead of (tm, 4C)
    for s in range(0, ch, h_chunk):
        e = min(s + h_chunk, ch)
        h = _gelu_exact(jnp.dot(xn, w1_ref[:, s:e],
                                preferred_element_type=jnp.float32) + bm1_ref[:, s:e])
        y = y + jnp.dot(h.astype(jnp.bfloat16), w2_ref[s:e, :],
                        preferred_element_type=jnp.float32)
    o_ref[...] = y


def proj_mlp(attn, shortcut, wp, bp, g2, b2, w1, bm1, w2, bm2, tm, h_chunk):
    ntp, c = attn.shape
    ch = w1.shape[1]
    kern = functools.partial(_proj_mlp_kernel, h_chunk=h_chunk)
    return pl.pallas_call(
        kern,
        out_shape=jax.ShapeDtypeStruct((ntp, c), jnp.float32),
        grid=(ntp // tm,),
        in_specs=[
            pl.BlockSpec((tm, c), lambda i: (i, 0)),
            pl.BlockSpec((tm, c), lambda i: (i, 0)),
            pl.BlockSpec((c, c), lambda i: (0, 0)),
            pl.BlockSpec((1, c), lambda i: (0, 0)),
            pl.BlockSpec((1, c), lambda i: (0, 0)),
            pl.BlockSpec((1, c), lambda i: (0, 0)),
            pl.BlockSpec((c, ch), lambda i: (0, 0)),
            pl.BlockSpec((1, ch), lambda i: (0, 0)),
            pl.BlockSpec((ch, c), lambda i: (0, 0)),
            pl.BlockSpec((1, c), lambda i: (0, 0)),
        ],
        out_specs=pl.BlockSpec((tm, c), lambda i: (i, 0)),
        compiler_params=pltpu.CompilerParams(
            dimension_semantics=("parallel",),
            vmem_limit_bytes=_VMEM_LIMIT),
    )(attn, shortcut, wp, bp.reshape(1, c), g2.reshape(1, c), b2.reshape(1, c),
      w1, bm1.reshape(1, ch), w2, bm2.reshape(1, c))


# ----------------------------- NATTEN static plans (numpy) -----------------------------

def _nat_start(i, L, K):
    ns = K // 2
    return min(max(i - ns, 0), L - K)


def _nat_pb(i, L, K):
    ns = K // 2
    if i < ns:
        return K - 1 - i
    if i + ns >= L:
        return L - i - 1
    return ns


def _choose_row_tile(H, W, target_q):
    """Rows of the image per query tile; tr*W must be a multiple of 8 (or the whole image)."""
    cands = [tr for tr in range(1, H + 1)
             if H % tr == 0 and ((tr * W) % 8 == 0 or tr == H)]
    geq = [tr for tr in cands if tr * W >= target_q]
    return min(geq) if geq else max(cands)


def _nat_band_plan(H, W, K, tr):
    """Per query-row-tile: contiguous key band start + de-duplicated (bias index, mask) groups.

    Interior tiles share the same relative bias pattern, so the dense (tq, band_n) bias/mask is
    stored once per distinct pattern ("group") and each tile carries only a small group id.
    """
    n_qt = H // tr
    band_rows = min(tr + K - 1, H)
    band_n = band_rows * W
    tq = tr * W
    nb = 2 * K - 1

    band_start = np.zeros((n_qt,), np.int32)
    group_id = np.zeros((n_qt,), np.int32)
    groups = {}
    g_bias, g_mask = [], []
    for t in range(n_qt):
        r0 = t * tr
        bs_row = min(_nat_start(r0, H, K), H - band_rows)
        band_start[t] = bs_row * W
        bias_idx = np.zeros((tq, band_n), np.int32)
        mask = np.zeros((tq, band_n), bool)
        for lr in range(tr):
            r = r0 + lr
            sr, pr = _nat_start(r, H, K), _nat_pb(r, H, K)
            for c in range(W):
                sc, pc = _nat_start(c, W, K), _nat_pb(c, W, K)
                lq = lr * W + c
                for kr in range(K):
                    for kc in range(K):
                        lb = (sr + kr - bs_row) * W + (sc + kc)
                        bias_idx[lq, lb] = (pr + kr) * nb + (pc + kc)
                        mask[lq, lb] = True
        key = (bias_idx.tobytes(), mask.tobytes())
        if key not in groups:
            groups[key] = len(g_bias)
            g_bias.append(bias_idx)
            g_mask.append(mask)
        group_id[t] = groups[key]
    return band_start, group_id, np.stack(g_bias), np.stack(g_mask)


def nat_indices(H, W, K):
    """Original NATTEN gather indices (used only by the pure-JAX reference)."""
    nbr = np.zeros((H * W, K * K), dtype=np.int32)
    bidx = np.zeros((H * W, K * K), dtype=np.int32)
    for i in range(H):
        for j in range(W):
            si, sj = _nat_start(i, H, K), _nat_start(j, W, K)
            pi, pj = _nat_pb(i, H, K), _nat_pb(j, W, K)
            nq = i * W + j
            for ki in range(K):
                for kj in range(K):
                    nbr[nq, ki * K + kj] = (si + ki) * W + (sj + kj)
                    bidx[nq, ki * K + kj] = (pi + ki) * (2 * K - 1) + (pj + kj)
    return jnp.asarray(nbr), jnp.asarray(bidx)


# ----------------------------- full NATLayer forward -----------------------------

def nat_layer_forward(x, params, num_heads, kernel_size,
                      q_rows_target=256, row_tile=512, mlp_chunk=512):
    B, H, W, C = x.shape
    # TODO(synk): NATTEN padding path for H < kernel_size or W < kernel_size is not implemented.
    assert H >= kernel_size and W >= kernel_size
    assert C % num_heads == 0
    hd = C // num_heads
    scale = hd ** -0.5
    n = H * W
    nt = B * n
    K = kernel_size

    xf = x.reshape(nt, C).astype(jnp.float32)

    # fold the attention scale into the q-columns of the qkv projection (no extra scale pass)
    qcol_scale = jnp.concatenate(
        [jnp.full((C,), scale, jnp.float32), jnp.ones((2 * C,), jnp.float32)])
    w_qkv = (params["w_qkv"] * qcol_scale[None, :]).astype(jnp.bfloat16)
    b_qkv = (params["b_qkv"] * qcol_scale).astype(jnp.float32)

    # ---- kernel 1: LN1 + qkv (head-concatenated channel layout, bf16 outputs) ----
    tm, nt_p = _row_plan(nt, row_tile)
    xf_p = _pad_rows(xf, nt_p)
    q, k, v = ln_qkv(xf_p, params["ln1_g"], params["ln1_b"], w_qkv, b_qkv, tm)
    q = q[:nt].reshape(B, n, C)
    k = k[:nt].reshape(B, n, C)
    v = v[:nt].reshape(B, n, C)

    # ---- static band / bias plan (numpy): dedup'd bias groups, bf16 storage ----
    tr = _choose_row_tile(H, W, q_rows_target)
    band_start_np, group_id_np, bias_idx_np, mask_np = _nat_band_plan(H, W, K, tr)
    tq, band_n = bias_idx_np.shape[1], bias_idx_np.shape[2]
    assert int(band_start_np.max()) + band_n <= n       # in-kernel pl.ds never reads past n
    starts_aligned = bool(np.all(band_start_np % 8 == 0))

    rpb_flat = params["rpb"].reshape(num_heads, (2 * K - 1) * (2 * K - 1))
    bias = jnp.take(rpb_flat, jnp.asarray(bias_idx_np), axis=1)   # (heads, n_grp, tq, band_n)
    bias = jnp.where(jnp.asarray(mask_np)[None], bias,
                     jnp.float32(_MASK)).astype(jnp.bfloat16)     # bf16 halves bias HBM traffic

    # ---- kernel 2: neighborhood attention on the MXU ----
    o = nat_attention(jnp.asarray(band_start_np), jnp.asarray(group_id_np),
                      q, k, v, bias, num_heads=num_heads, head_dim=hd,
                      tq=tq, band_n=band_n, starts_aligned=starts_aligned)
    o = _pad_rows(o.reshape(nt, C), nt_p)

    # ---- kernel 3: proj + residual + LN2 + MLP + residual ----
    out = proj_mlp(o, xf_p,
                   params["w_proj"].astype(jnp.bfloat16), params["b_proj"],
                   params["ln2_g"], params["ln2_b"],
                   params["w_fc1"].astype(jnp.bfloat16), params["b_fc1"],
                   params["w_fc2"].astype(jnp.bfloat16), params["b_fc2"],
                   tm, mlp_chunk)
    return out[:nt].reshape(B, H, W, C)


# ----------------------------- pure-JAX reference (for verification) -----------------------------

def reference_forward(x, params, num_heads, kernel_size):
    B, H, W, C = x.shape
    hd = C // num_heads
    scale = hd ** -0.5
    n, kk = H * W, kernel_size * kernel_size

    def ln(z, g, b):
        mu = z.mean(-1, keepdims=True)
        var = ((z - mu) ** 2).mean(-1, keepdims=True)
        return (z - mu) / jnp.sqrt(var + _LN_EPS) * g + b

    shortcut = x
    xn = ln(x, params["ln1_g"], params["ln1_b"])
    qkv = xn @ params["w_qkv"] + params["b_qkv"]
    qkv = qkv.reshape(B, H, W, 3, num_heads, hd).transpose(3, 0, 4, 1, 2, 5)
    q, k, v = qkv[0] * scale, qkv[1], qkv[2]
    q = q.reshape(B * num_heads, n, hd)
    k = k.reshape(B * num_heads, n, hd)
    v = v.reshape(B * num_heads, n, hd)
    nbr_idx, bias_idx = nat_indices(H, W, kernel_size)
    kg, vg = k[:, nbr_idx, :], v[:, nbr_idx, :]
    rpb_flat = params["rpb"].reshape(num_heads, -1)
    bias = rpb_flat[:, bias_idx]
    bias = jnp.broadcast_to(bias[None], (B, num_heads, n, kk)).reshape(B * num_heads, n, kk)
    s = jnp.einsum("bnd,bnkd->bnk", q, kg) + bias
    p = jax.nn.softmax(s, axis=-1)
    o = jnp.einsum("bnk,bnkd->bnd", p, vg)
    o = o.reshape(B, num_heads, H, W, hd).transpose(0, 2, 3, 1, 4).reshape(B, H, W, C)
    x1 = shortcut + (o @ params["w_proj"] + params["b_proj"])
    xn2 = ln(x1, params["ln2_g"], params["ln2_b"])
    h = jax.nn.gelu(xn2 @ params["w_fc1"] + params["b_fc1"], approximate=False)
    y = h @ params["w_fc2"] + params["b_fc2"]
    return x1 + y


# ----------------------------- deterministic parameter init -----------------------------

def init_params(key, dim, num_heads, kernel_size, mlp_ratio):
    hidden = int(dim * mlp_ratio)
    ks = jax.random.split(key, 13)
    f = lambda kk, shape, s=0.02: (s * jax.random.normal(kk, shape)).astype(jnp.float32)
    return {
        "ln1_g": (1.0 + f(ks[0], (dim,), 0.1)),
        "ln1_b": f(ks[1], (dim,), 0.1),
        "w_qkv": f(ks[2], (dim, 3 * dim)),       # == torch qkv.weight.T
        "b_qkv": f(ks[3], (3 * dim,)),
        "rpb": f(ks[4], (num_heads, 2 * kernel_size - 1, 2 * kernel_size - 1)),
        "w_proj": f(ks[5], (dim, dim)),
        "b_proj": f(ks[6], (dim,)),
        "ln2_g": (1.0 + f(ks[7], (dim,), 0.1)),
        "ln2_b": f(ks[8], (dim,), 0.1),
        "w_fc1": f(ks[9], (dim, hidden)),
        "b_fc1": f(ks[10], (hidden,)),
        "w_fc2": f(ks[11], (hidden, dim)),
        "b_fc2": f(ks[12], (dim,)),
    }


if __name__ == "__main__":
    configs = [
        # (B, H, W, C, heads, K, mlp_ratio, q_rows_target)
        dict(B=2, H=8, W=8, C=32, heads=4, K=7, mlp=4.0, q_rows=256),    # whole-image band, 1 tile
        dict(B=1, H=16, W=16, C=64, heads=4, K=7, mlp=4.0, q_rows=128),  # 2 query tiles / 2 groups
        dict(B=2, H=12, W=12, C=32, heads=4, K=7, mlp=4.0, q_rows=48),   # unaligned starts, 3 tiles
    ]

    key = jax.random.PRNGKey(0)
    for cfg in configs:
        key, kx, kp = jax.random.split(key, 3)
        x = jax.random.normal(kx, (cfg["B"], cfg["H"], cfg["W"], cfg["C"]), dtype=jnp.float32)
        params = init_params(kp, cfg["C"], cfg["heads"], cfg["K"], cfg["mlp"])

        fwd = jax.jit(functools.partial(nat_layer_forward,
                                        num_heads=cfg["heads"],
                                        kernel_size=cfg["K"],
                                        q_rows_target=cfg["q_rows"]))
        ref_fn = jax.jit(functools.partial(reference_forward,
                                           num_heads=cfg["heads"],
                                           kernel_size=cfg["K"]))

        out = jax.block_until_ready(fwd(x, params))
        ref = jax.block_until_ready(ref_fn(x, params))
        np.testing.assert_allclose(np.asarray(out), np.asarray(ref), rtol=1e-2, atol=1e-2)

    print("KERNEL_OK")
</pallas_src>

<mosaic_0001>
module attributes {stable_mosaic.version = 11 : i64} {
  func.func @_ln_qkv_kernel(%arg0: i32, %arg1: memref<128x32xf32, #tpu.memory_space<vmem>>, %arg2: memref<1x32xf32, #tpu.memory_space<vmem>>, %arg3: memref<1x32xf32, #tpu.memory_space<vmem>>, %arg4: memref<32x96xbf16, #tpu.memory_space<vmem>>, %arg5: memref<1x96xf32, #tpu.memory_space<vmem>>, %arg6: memref<128x32xbf16, #tpu.memory_space<vmem>>, %arg7: memref<128x32xbf16, #tpu.memory_space<vmem>>, %arg8: memref<128x32xbf16, #tpu.memory_space<vmem>>) attributes {dimension_semantics = [#tpu.dimension_semantics<parallel>], iteration_bounds = array<i64: 1>, scalar_prefetch = 0 : i64, scratch_operands = 0 : i64, tpu.core_type = #tpu.core_type<tc>, window_params = [{transform_indices = @transform_0, window_bounds = array<i64: 128, 32>}, {pipeline_mode = #tpu.pipeline_mode<synchronous>, transform_indices = @transform_1, window_bounds = array<i64: 1, 32>}, {pipeline_mode = #tpu.pipeline_mode<synchronous>, transform_indices = @transform_2, window_bounds = array<i64: 1, 32>}, {pipeline_mode = #tpu.pipeline_mode<synchronous>, transform_indices = @transform_3, window_bounds = array<i64: 32, 96>}, {pipeline_mode = #tpu.pipeline_mode<synchronous>, transform_indices = @transform_4, window_bounds = array<i64: 1, 96>}, {transform_indices = @transform_5, window_bounds = array<i64: 128, 32>}, {transform_indices = @transform_6, window_bounds = array<i64: 128, 32>}, {transform_indices = @transform_7, window_bounds = array<i64: 128, 32>}]} {
    %c0 = arith.constant 0 : index
    %c0_0 = arith.constant 0 : index
    %0 = vector.load %arg1[%c0, %c0_0] : memref<128x32xf32, #tpu.memory_space<vmem>>, vector<128x32xf32>
    %c0_1 = arith.constant 0 : index
    %c0_2 = arith.constant 0 : index
    %1 = vector.load %arg2[%c0_1, %c0_2] : memref<1x32xf32, #tpu.memory_space<vmem>>, vector<1x32xf32>
    %c0_3 = arith.constant 0 : index
    %c0_4 = arith.constant 0 : index
    %2 = vector.load %arg3[%c0_3, %c0_4] : memref<1x32xf32, #tpu.memory_space<vmem>>, vector<1x32xf32>
    %cst = arith.constant dense<0.000000e+00> : vector<128xf32>
    %3 = vector.multi_reduction <add>, %0, %cst [1] : vector<128x32xf32> to vector<128xf32>
    %4 = vector.shape_cast %3 : vector<128xf32> to vector<128x1xf32>
    %cst_5 = arith.constant 3.200000e+01 : f32
    %5 = vector.broadcast %cst_5 : f32 to vector<128x1xf32>
    %6 = arith.divf %4, %5 : vector<128x1xf32>
    %7 = vector.broadcast %6 : vector<128x1xf32> to vector<128x32xf32>
    %8 = arith.subf %0, %7 : vector<128x32xf32>
    %9 = arith.mulf %8, %8 : vector<128x32xf32>
    %cst_6 = arith.constant dense<0.000000e+00> : vector<128xf32>
    %10 = vector.multi_reduction <add>, %9, %cst_6 [1] : vector<128x32xf32> to vector<128xf32>
    %11 = vector.shape_cast %10 : vector<128xf32> to vector<128x1xf32>
    %cst_7 = arith.constant 3.200000e+01 : f32
    %12 = vector.broadcast %cst_7 : f32 to vector<128x1xf32>
    %13 = arith.divf %11, %12 : vector<128x1xf32>
    %14 = vector.broadcast %6 : vector<128x1xf32> to vector<128x32xf32>
    %15 = arith.subf %0, %14 : vector<128x32xf32>
    %cst_8 = arith.constant 9.99999974E-6 : f32
    %16 = vector.broadcast %cst_8 : f32 to vector<128x1xf32>
    %17 = arith.addf %13, %16 : vector<128x1xf32>
    %18 = math.rsqrt %17 : vector<128x1xf32>
    %19 = vector.broadcast %18 : vector<128x1xf32> to vector<128x32xf32>
    %20 = arith.mulf %15, %19 : vector<128x32xf32>
    %21 = vector.broadcast %1 : vector<1x32xf32> to vector<128x32xf32>
    %22 = arith.mulf %20, %21 : vector<128x32xf32>
    %23 = vector.broadcast %2 : vector<1x32xf32> to vector<128x32xf32>
    %24 = arith.addf %22, %23 : vector<128x32xf32>
    %25 = arith.truncf %24 : vector<128x32xf32> to vector<128x32xbf16>
    %c0_9 = arith.constant 0 : index
    %c0_10 = arith.constant 0 : index
    %26 = vector.load %arg4[%c0_9, %c0_10] : memref<32x96xbf16, #tpu.memory_space<vmem>>, vector<32x96xbf16>
    %cst_11 = arith.constant dense<0.000000e+00> : vector<128x96xf32>
    %27 = tpu.matmul %25, %26, %cst_11 {dimension_numbers = #tpu.dot_dimension_numbers<[1], [0], [0], [1], [0, 0, 1, 1], [], []>} : vector<128x32xbf16>, vector<32x96xbf16>, vector<128x96xf32> -> vector<128x96xf32>
    %c0_12 = arith.constant 0 : index
    %c0_13 = arith.constant 0 : index
    %28 = vector.load %arg5[%c0_12, %c0_13] : memref<1x96xf32, #tpu.memory_space<vmem>>, vector<1x96xf32>
    %29 = vector.broadcast %28 : vector<1x96xf32> to vector<128x96xf32>
    %30 = arith.addf %27, %29 : vector<128x96xf32>
    %31 = vector.extract_strided_slice %30 {offsets = [0, 0], sizes = [128, 32], strides = [1, 1]} : vector<128x96xf32> to vector<128x32xf32>
    %32 = arith.truncf %31 : vector<128x32xf32> to vector<128x32xbf16>
    %c0_14 = arith.constant 0 : index
    %c0_15 = arith.constant 0 : index
    %33 = vector.load %arg6[%c0_14, %c0_15] : memref<128x32xbf16, #tpu.memory_space<vmem>>, vector<128x32xbf16>
    tpu.vector_store %arg6[%c0_14, %c0_15], %32 {strides = array<i32>} : memref<128x32xbf16, #tpu.memory_space<vmem>>, vector<128x32xbf16>,
    %34 = vector.extract_strided_slice %30 {offsets = [0, 32], sizes = [128, 32], strides = [1, 1]} : vector<128x96xf32> to vector<128x32xf32>
    %35 = arith.truncf %34 : vector<128x32xf32> to vector<128x32xbf16>
    %c0_16 = arith.constant 0 : index
    %c0_17 = arith.constant 0 : index
    %36 = vector.load %arg7[%c0_16, %c0_17] : memref<128x32xbf16, #tpu.memory_space<vmem>>, vector<128x32xbf16>
    tpu.vector_store %arg7[%c0_16, %c0_17], %35 {strides = array<i32>} : memref<128x32xbf16, #tpu.memory_space<vmem>>, vector<128x32xbf16>,
    %37 = vector.extract_strided_slice %30 {offsets = [0, 64], sizes = [128, 32], strides = [1, 1]} : vector<128x96xf32> to vector<128x32xf32>
    %38 = arith.truncf %37 : vector<128x32xf32> to vector<128x32xbf16>
    %c0_18 = arith.constant 0 : index
    %c0_19 = arith.constant 0 : index
    %39 = vector.load %arg8[%c0_18, %c0_19] : memref<128x32xbf16, #tpu.memory_space<vmem>>, vector<128x32xbf16>
    tpu.vector_store %arg8[%c0_18, %c0_19], %38 {strides = array<i32>} : memref<128x32xbf16, #tpu.memory_space<vmem>>, vector<128x32xbf16>,
    return
  }
  func.func @transform_0(%arg0: i32) -> (i32, i32) {
    %c0_i32 = arith.constant 0 : i32
    %c0_i32_0 = arith.constant 0 : i32
    return %arg0, %c0_i32 : i32, i32
  }
  func.func @transform_1(%arg0: i32) -> (i32, i32) {
    %c0_i32 = arith.constant 0 : i32
    %c0_i32_0 = arith.constant 0 : i32
    %c0_i32_1 = arith.constant 0 : i32
    return %c0_i32, %c0_i32_0 : i32, i32
  }
  func.func @transform_2(%arg0: i32) -> (i32, i32) {
    %c0_i32 = arith.constant 0 : i32
    %c0_i32_0 = arith.constant 0 : i32
    %c0_i32_1 = arith.constant 0 : i32
    return %c0_i32, %c0_i32_0 : i32, i32
  }
  func.func @transform_3(%arg0: i32) -> (i32, i32) {
    %c0_i32 = arith.constant 0 : i32
    %c0_i32_0 = arith.constant 0 : i32
    %c0_i32_1 = arith.constant 0 : i32
    return %c0_i32, %c0_i32_0 : i32, i32
  }
  func.func @transform_4(%arg0: i32) -> (i32, i32) {
    %c0_i32 = arith.constant 0 : i32
    %c0_i32_0 = arith.constant 0 : i32
    %c0_i32_1 = arith.constant 0 : i32
    return %c0_i32, %c0_i32_0 : i32, i32
  }
  func.func @transform_5(%arg0: i32) -> (i32, i32) {
    %c0_i32 = arith.constant 0 : i32
    %c0_i32_0 = arith.constant 0 : i32
    return %arg0, %c0_i32 : i32, i32
  }
  func.func @transform_6(%arg0: i32) -> (i32, i32) {
    %c0_i32 = arith.constant 0 : i32
    %c0_i32_0 = arith.constant 0 : i32
    return %arg0, %c0_i32 : i32, i32
  }
  func.func @transform_7(%arg0: i32) -> (i32, i32) {
    %c0_i32 = arith.constant 0 : i32
    %c0_i32_0 = arith.constant 0 : i32
    return %arg0, %c0_i32 : i32, i32
  }
}

module attributes {stable_mosaic.version = 11 : i64} {
  func.func @_nat_attn_kernel(%arg0: i32, %arg1: i32, %arg2: memref<1xi32, #tpu.memory_space<smem>>, %arg3: memref<1xi32, #tpu.memory_space<smem>>, %arg4: memref<1x64x32xbf16, #tpu.memory_space<vmem>>, %arg5: memref<1x64x32xbf16, #tpu.memory_space<vmem>>, %arg6: memref<1x64x32xbf16, #tpu.memory_space<vmem>>, %arg7: memref<4x1x64x64xbf16, #tpu.memory_space<vmem>>, %arg8: memref<1x64x32xbf16, #tpu.memory_space<vmem>>) attributes {dimension_semantics = [#tpu.dimension_semantics<parallel>, #tpu.dimension_semantics<parallel>], iteration_bounds = array<i64: 2, 1>, scalar_prefetch = 2 : i64, scratch_operands = 0 : i64, tpu.core_type = #tpu.core_type<tc>, window_params = [{transform_indices = @transform_0, window_bounds = array<i64: 1, 64, 32>}, {transform_indices = @transform_1, window_bounds = array<i64: 1, 64, 32>}, {transform_indices = @transform_2, window_bounds = array<i64: 1, 64, 32>}, {transform_indices = @transform_3, window_bounds = array<i64: 4, 1, 64, 64>}, {transform_indices = @transform_4, window_bounds = array<i64: 1, 64, 32>}]} {
    %0 = arith.index_cast %arg1 : i32 to index
    %1 = memref.load %arg2[%0] : memref<1xi32, #tpu.memory_space<smem>>
    %2 = tpu.assume_multiple %1, 8 : i32
    %c0 = arith.constant 0 : index
    %c0_0 = arith.constant 0 : index
    %c0_1 = arith.constant 0 : index
    %3 = vector.load %arg4[%c0, %c0_0, %c0_1] : memref<1x64x32xbf16, #tpu.memory_space<vmem>>, vector<1x64x8xbf16>
    %4 = vector.shape_cast %3 : vector<1x64x8xbf16> to vector<64x8xbf16>
    %c0_2 = arith.constant 0 : index
    %5 = arith.index_cast %2 : i32 to index
    %c0_3 = arith.constant 0 : index
    %6 = vector.load %arg5[%c0_2, %5, %c0_3] : memref<1x64x32xbf16, #tpu.memory_space<vmem>>, vector<1x64x8xbf16>
    %7 = vector.shape_cast %6 : vector<1x64x8xbf16> to vector<64x8xbf16>
    %c0_4 = arith.constant 0 : index
    %8 = arith.index_cast %2 : i32 to index
    %c0_5 = arith.constant 0 : index
    %9 = vector.load %arg6[%c0_4, %8, %c0_5] : memref<1x64x32xbf16, #tpu.memory_space<vmem>>, vector<1x64x8xbf16>
    %10 = vector.shape_cast %9 : vector<1x64x8xbf16> to vector<64x8xbf16>
    %cst = arith.constant dense<0.000000e+00> : vector<64x64xf32>
    %11 = tpu.matmul %4, %7, %cst {dimension_numbers = #tpu.dot_dimension_numbers<[1], [1], [0], [0], [0, 0, 1, 0], [], []>} : vector<64x8xbf16>, vector<64x8xbf16>, vector<64x64xf32> -> vector<64x64xf32>
    %c0_6 = arith.constant 0 : index
    %c0_7 = arith.constant 0 : index
    %c0_8 = arith.constant 0 : index
    %c0_9 = arith.constant 0 : index
    %12 = vector.load %arg7[%c0_6, %c0_7, %c0_8, %c0_9] : memref<4x1x64x64xbf16, #tpu.memory_space<vmem>>, vector<1x1x64x64xbf16>
    %13 = vector.shape_cast %12 : vector<1x1x64x64xbf16> to vector<64x64xbf16>
    %14 = arith.extf %13 : vector<64x64xbf16> to vector<64x64xf32>
    %15 = arith.addf %11, %14 : vector<64x64xf32>
    %cst_10 = arith.constant dense<0xFF800000> : vector<64xf32>
    %16 = vector.multi_reduction <maximumf>, %15, %cst_10 [1] : vector<64x64xf32> to vector<64xf32>
    %17 = vector.shape_cast %16 : vector<64xf32> to vector<64x1xf32>
    %18 = vector.broadcast %17 : vector<64x1xf32> to vector<64x64xf32>
    %19 = arith.subf %15, %18 : vector<64x64xf32>
    %20 = math.exp %19 : vector<64x64xf32>
    %cst_11 = arith.constant dense<0.000000e+00> : vector<64xf32>
    %21 = vector.multi_reduction <add>, %20, %cst_11 [1] : vector<64x64xf32> to vector<64xf32>
    %22 = vector.shape_cast %21 : vector<64xf32> to vector<64x1xf32>
    %23 = tpu.reciprocal %22 {approx = true} : vector<64x1xf32> -> vector<64x1xf32>
    %24 = vector.broadcast %23 : vector<64x1xf32> to vector<64x64xf32>
    %25 = arith.mulf %20, %24 : vector<64x64xf32>
    %26 = arith.truncf %25 : vector<64x64xf32> to vector<64x64xbf16>
    %cst_12 = arith.constant dense<0.000000e+00> : vector<64x8xf32>
    %27 = tpu.matmul %26, %10, %cst_12 {dimension_numbers = #tpu.dot_dimension_numbers<[1], [0], [0], [1], [0, 0, 1, 1], [], []>} : vector<64x64xbf16>, vector<64x8xbf16>, vector<64x8xf32> -> vector<64x8xf32>
    %28 = arith.truncf %27 : vector<64x8xf32> to vector<64x8xbf16>
    %c0_13 = arith.constant 0 : index
    %c0_14 = arith.constant 0 : index
    %c0_15 = arith.constant 0 : index
    %29 = vector.load %arg8[%c0_13, %c0_14, %c0_15] : memref<1x64x32xbf16, #tpu.memory_space<vmem>>, vector<1x64x8xbf16>
    %30 = vector.shape_cast %29 : vector<1x64x8xbf16> to vector<64x8xbf16>
    %31 = vector.shape_cast %28 : vector<64x8xbf16> to vector<1x64x8xbf16>
    tpu.vector_store %arg8[%c0_13, %c0_14, %c0_15], %31 {strides = array<i32>} : memref<1x64x32xbf16, #tpu.memory_space<vmem>>, vector<1x64x8xbf16>,
    %c0_16 = arith.constant 0 : index
    %c0_17 = arith.constant 0 : index
    %c8 = arith.constant 8 : index
    %32 = vector.load %arg4[%c0_16, %c0_17, %c8] : memref<1x64x32xbf16, #tpu.memory_space<vmem>>, vector<1x64x8xbf16>
    %33 = vector.shape_cast %32 : vector<1x64x8xbf16> to vector<64x8xbf16>
    %c0_18 = arith.constant 0 : index
    %34 = arith.index_cast %2 : i32 to index
    %c8_19 = arith.constant 8 : index
    %35 = vector.load %arg5[%c0_18, %34, %c8_19] : memref<1x64x32xbf16, #tpu.memory_space<vmem>>, vector<1x64x8xbf16>
    %36 = vector.shape_cast %35 : vector<1x64x8xbf16> to vector<64x8xbf16>
    %c0_20 = arith.constant 0 : index
    %37 = arith.index_cast %2 : i32 to index
    %c8_21 = arith.constant 8 : index
    %38 = vector.load %arg6[%c0_20, %37, %c8_21] : memref<1x64x32xbf16, #tpu.memory_space<vmem>>, vector<1x64x8xbf16>
    %39 = vector.shape_cast %38 : vector<1x64x8xbf16> to vector<64x8xbf16>
    %cst_22 = arith.constant dense<0.000000e+00> : vector<64x64xf32>
    %40 = tpu.matmul %33, %36, %cst_22 {dimension_numbers = #tpu.dot_dimension_numbers<[1], [1], [0], [0], [0, 0, 1, 0], [], []>} : vector<64x8xbf16>, vector<64x8xbf16>, vector<64x64xf32> -> vector<64x64xf32>
    %c1 = arith.constant 1 : index
    %c0_23 = arith.constant 0 : index
    %c0_24 = arith.constant 0 : index
    %c0_25 = arith.constant 0 : index
    %41 = vector.load %arg7[%c1, %c0_23, %c0_24, %c0_25] : memref<4x1x64x64xbf16, #tpu.memory_space<vmem>>, vector<1x1x64x64xbf16>
    %42 = vector.shape_cast %41 : vector<1x1x64x64xbf16> to vector<64x64xbf16>
    %43 = arith.extf %42 : vector<64x64xbf16> to vector<64x64xf32>
    %44 = arith.addf %40, %43 : vector<64x64xf32>
    %cst_26 = arith.constant dense<0xFF800000> : vector<64xf32>
    %45 = vector.multi_reduction <maximumf>, %44, %cst_26 [1] : vector<64x64xf32> to vector<64xf32>
    %46 = vector.shape_cast %45 : vector<64xf32> to vector<64x1xf32>
    %47 = vector.broadcast %46 : vector<64x1xf32> to vector<64x64xf32>
    %48 = arith.subf %44, %47 : vector<64x64xf32>
    %49 = math.exp %48 : vector<64x64xf32>
    %cst_27 = arith.constant dense<0.000000e+00> : vector<64xf32>
    %50 = vector.multi_reduction <add>, %49, %cst_27 [1] : vector<64x64xf32> to vector<64xf32>
    %51 = vector.shape_cast %50 : vector<64xf32> to vector<64x1xf32>
    %52 = tpu.reciprocal %51 {approx = true} : vector<64x1xf32> -> vector<64x1xf32>
    %53 = vector.broadcast %52 : vector<64x1xf32> to vector<64x64xf32>
    %54 = arith.mulf %49, %53 : vector<64x64xf32>
    %55 = arith.truncf %54 : vector<64x64xf32> to vector<64x64xbf16>
    %cst_28 = arith.constant dense<0.000000e+00> : vector<64x8xf32>
    %56 = tpu.matmul %55, %39, %cst_28 {dimension_numbers = #tpu.dot_dimension_numbers<[1], [0], [0], [1], [0, 0, 1, 1], [], []>} : vector<64x64xbf16>, vector<64x8xbf16>, vector<64x8xf32> -> vector<64x8xf32>
    %57 = arith.truncf %56 : vector<64x8xf32> to vector<64x8xbf16>
    %c0_29 = arith.constant 0 : index
    %c0_30 = arith.constant 0 : index
    %c8_31 = arith.constant 8 : index
    %58 = vector.load %arg8[%c0_29, %c0_30, %c8_31] : memref<1x64x32xbf16, #tpu.memory_space<vmem>>, vector<1x64x8xbf16>
    %59 = vector.shape_cast %58 : vector<1x64x8xbf16> to vector<64x8xbf16>
    %60 = vector.shape_cast %57 : vector<64x8xbf16> to vector<1x64x8xbf16>
    tpu.vector_store %arg8[%c0_29, %c0_30, %c8_31], %60 {strides = array<i32>} : memref<1x64x32xbf16, #tpu.memory_space<vmem>>, vector<1x64x8xbf16>,
    %c0_32 = arith.constant 0 : index
    %c0_33 = arith.constant 0 : index
    %c16 = arith.constant 16 : index
    %61 = vector.load %arg4[%c0_32, %c0_33, %c16] : memref<1x64x32xbf16, #tpu.memory_space<vmem>>, vector<1x64x8xbf16>
    %62 = vector.shape_cast %61 : vector<1x64x8xbf16> to vector<64x8xbf16>
    %c0_34 = arith.constant 0 : index
    %63 = arith.index_cast %2 : i32 to index
    %c16_35 = arith.constant 16 : index
    %64 = vector.load %arg5[%c0_34, %63, %c16_35] : memref<1x64x32xbf16, #tpu.memory_space<vmem>>, vector<1x64x8xbf16>
    %65 = vector.shape_cast %64 : vector<1x64x8xbf16> to vector<64x8xbf16>
    %c0_36 = arith.constant 0 : index
    %66 = arith.index_cast %2 : i32 to index
    %c16_37 = arith.constant 16 : index
    %67 = vector.load %arg6[%c0_36, %66, %c16_37] : memref<1x64x32xbf16, #tpu.memory_space<vmem>>, vector<1x64x8xbf16>
    %68 = vector.shape_cast %67 : vector<1x64x8xbf16> to vector<64x8xbf16>
    %cst_38 = arith.constant dense<0.000000e+00> : vector<64x64xf32>
    %69 = tpu.matmul %62, %65, %cst_38 {dimension_numbers = #tpu.dot_dimension_numbers<[1], [1], [0], [0], [0, 0, 1, 0], [], []>} : vector<64x8xbf16>, vector<64x8xbf16>, vector<64x64xf32> -> vector<64x64xf32>
    %c2 = arith.constant 2 : index
    %c0_39 = arith.constant 0 : index
    %c0_40 = arith.constant 0 : index
    %c0_41 = arith.constant 0 : index
    %70 = vector.load %arg7[%c2, %c0_39, %c0_40, %c0_41] : memref<4x1x64x64xbf16, #tpu.memory_space<vmem>>, vector<1x1x64x64xbf16>
    %71 = vector.shape_cast %70 : vector<1x1x64x64xbf16> to vector<64x64xbf16>
    %72 = arith.extf %71 : vector<64x64xbf16> to vector<64x64xf32>
    %73 = arith.addf %69, %72 : vector<64x64xf32>
    %cst_42 = arith.constant dense<0xFF800000> : vector<64xf32>
    %74 = vector.multi_reduction <maximumf>, %73, %cst_42 [1] : vector<64x64xf32> to vector<64xf32>
    %75 = vector.shape_cast %74 : vector<64xf32> to vector<64x1xf32>
    %76 = vector.broadcast %75 : vector<64x1xf32> to vector<64x64xf32>
    %77 = arith.subf %73, %76 : vector<64x64xf32>
    %78 = math.exp %77 : vector<64x64xf32>
    %cst_43 = arith.constant dense<0.000000e+00> : vector<64xf32>
    %79 = vector.multi_reduction <add>, %78, %cst_43 [1] : vector<64x64xf32> to vector<64xf32>
    %80 = vector.shape_cast %79 : vector<64xf32> to vector<64x1xf32>
    %81 = tpu.reciprocal %80 {approx = true} : vector<64x1xf32> -> vector<64x1xf32>
    %82 = vector.broadcast %81 : vector<64x1xf32> to vector<64x64xf32>
    %83 = arith.mulf %78, %82 : vector<64x64xf32>
    %84 = arith.truncf %83 : vector<64x64xf32> to vector<64x64xbf16>
    %cst_44 = arith.constant dense<0.000000e+00> : vector<64x8xf32>
    %85 = tpu.matmul %84, %68, %cst_44 {dimension_numbers = #tpu.dot_dimension_numbers<[1], [0], [0], [1], [0, 0, 1, 1], [], []>} : vector<64x64xbf16>, vector<64x8xbf16>, vector<64x8xf32> -> vector<64x8xf32>
    %86 = arith.truncf %85 : vector<64x8xf32> to vector<64x8xbf16>
    %c0_45 = arith.constant 0 : index
    %c0_46 = arith.constant 0 : index
    %c16_47 = arith.constant 16 : index
    %87 = vector.load %arg8[%c0_45, %c0_46, %c16_47] : memref<1x64x32xbf16, #tpu.memory_space<vmem>>, vector<1x64x8xbf16>
    %88 = vector.shape_cast %87 : vector<1x64x8xbf16> to vector<64x8xbf16>
    %89 = vector.shape_cast %86 : vector<64x8xbf16> to vector<1x64x8xbf16>
    tpu.vector_store %arg8[%c0_45, %c0_46, %c16_47], %89 {strides = array<i32>} : memref<1x64x32xbf16, #tpu.memory_space<vmem>>, vector<1x64x8xbf16>,
    %c0_48 = arith.constant 0 : index
    %c0_49 = arith.constant 0 : index
    %c24 = arith.constant 24 : index
    %90 = vector.load %arg4[%c0_48, %c0_49, %c24] : memref<1x64x32xbf16, #tpu.memory_space<vmem>>, vector<1x64x8xbf16>
    %91 = vector.shape_cast %90 : vector<1x64x8xbf16> to vector<64x8xbf16>
    %c0_50 = arith.constant 0 : index
    %92 = arith.index_cast %2 : i32 to index
    %c24_51 = arith.constant 24 : index
    %93 = vector.load %arg5[%c0_50, %92, %c24_51] : memref<1x64x32xbf16, #tpu.memory_space<vmem>>, vector<1x64x8xbf16>
    %94 = vector.shape_cast %93 : vector<1x64x8xbf16> to vector<64x8xbf16>
    %c0_52 = arith.constant 0 : index
    %95 = arith.index_cast %2 : i32 to index
    %c24_53 = arith.constant 24 : index
    %96 = vector.load %arg6[%c0_52, %95, %c24_53] : memref<1x64x32xbf16, #tpu.memory_space<vmem>>, vector<1x64x8xbf16>
    %97 = vector.shape_cast %96 : vector<1x64x8xbf16> to vector<64x8xbf16>
    %cst_54 = arith.constant dense<0.000000e+00> : vector<64x64xf32>
    %98 = tpu.matmul %91, %94, %cst_54 {dimension_numbers = #tpu.dot_dimension_numbers<[1], [1], [0], [0], [0, 0, 1, 0], [], []>} : vector<64x8xbf16>, vector<64x8xbf16>, vector<64x64xf32> -> vector<64x64xf32>
    %c3 = arith.constant 3 : index
    %c0_55 = arith.constant 0 : index
    %c0_56 = arith.constant 0 : index
    %c0_57 = arith.constant 0 : index
    %99 = vector.load %arg7[%c3, %c0_55, %c0_56, %c0_57] : memref<4x1x64x64xbf16, #tpu.memory_space<vmem>>, vector<1x1x64x64xbf16>
    %100 = vector.shape_cast %99 : vector<1x1x64x64xbf16> to vector<64x64xbf16>
    %101 = arith.extf %100 : vector<64x64xbf16> to vector<64x64xf32>
    %102 = arith.addf %98, %101 : vector<64x64xf32>
    %cst_58 = arith.constant dense<0xFF800000> : vector<64xf32>
    %103 = vector.multi_reduction <maximumf>, %102, %cst_58 [1] : vector<64x64xf32> to vector<64xf32>
    %104 = vector.shape_cast %103 : vector<64xf32> to vector<64x1xf32>
    %105 = vector.broadcast %104 : vector<64x1xf32> to vector<64x64xf32>
    %106 = arith.subf %102, %105 : vector<64x64xf32>
    %107 = math.exp %106 : vector<64x64xf32>
    %cst_59 = arith.constant dense<0.000000e+00> : vector<64xf32>
    %108 = vector.multi_reduction <add>, %107, %cst_59 [1] : vector<64x64xf32> to vector<64xf32>
    %109 = vector.shape_cast %108 : vector<64xf32> to vector<64x1xf32>
    %110 = tpu.reciprocal %109 {approx = true} : vector<64x1xf32> -> vector<64x1xf32>
    %111 = vector.broadcast %110 : vector<64x1xf32> to vector<64x64xf32>
    %112 = arith.mulf %107, %111 : vector<64x64xf32>
    %113 = arith.truncf %112 : vector<64x64xf32> to vector<64x64xbf16>
    %cst_60 = arith.constant dense<0.000000e+00> : vector<64x8xf32>
    %114 = tpu.matmul %113, %97, %cst_60 {dimension_numbers = #tpu.dot_dimension_numbers<[1], [0], [0], [1], [0, 0, 1, 1], [], []>} : vector<64x64xbf16>, vector<64x8xbf16>, vector<64x8xf32> -> vector<64x8xf32>
    %115 = arith.truncf %114 : vector<64x8xf32> to vector<64x8xbf16>
    %c0_61 = arith.constant 0 : index
    %c0_62 = arith.constant 0 : index
    %c24_63 = arith.constant 24 : index
    %116 = vector.load %arg8[%c0_61, %c0_62, %c24_63] : memref<1x64x32xbf16, #tpu.memory_space<vmem>>, vector<1x64x8xbf16>
    %117 = vector.shape_cast %116 : vector<1x64x8xbf16> to vector<64x8xbf16>
    %118 = vector.shape_cast %115 : vector<64x8xbf16> to vector<1x64x8xbf16>
    tpu.vector_store %arg8[%c0_61, %c0_62, %c24_63], %118 {strides = array<i32>} : memref<1x64x32xbf16, #tpu.memory_space<vmem>>, vector<1x64x8xbf16>,
    return
  }
  func.func @transform_0(%arg0: i32, %arg1: i32, %arg2: memref<1xi32, #tpu.memory_space<smem>>, %arg3: memref<1xi32, #tpu.memory_space<smem>>) -> (i32, i32, i32) {
    %c0_i32 = arith.constant 0 : i32
    %c0_i32_0 = arith.constant 0 : i32
    return %arg0, %arg1, %c0_i32 : i32, i32, i32
  }
  func.func @transform_1(%arg0: i32, %arg1: i32, %arg2: memref<1xi32, #tpu.memory_space<smem>>, %arg3: memref<1xi32, #tpu.memory_space<smem>>) -> (i32, i32, i32) {
    %c0_i32 = arith.constant 0 : i32
    %c0_i32_0 = arith.constant 0 : i32
    %c0_i32_1 = arith.constant 0 : i32
    return %arg0, %c0_i32, %c0_i32_0 : i32, i32, i32
  }
  func.func @transform_2(%arg0: i32, %arg1: i32, %arg2: memref<1xi32, #tpu.memory_space<smem>>, %arg3: memref<1xi32, #tpu.memory_space<smem>>) -> (i32, i32, i32) {
    %c0_i32 = arith.constant 0 : i32
    %c0_i32_0 = arith.constant 0 : i32
    %c0_i32_1 = arith.constant 0 : i32
    return %arg0, %c0_i32, %c0_i32_0 : i32, i32, i32
  }
  func.func @transform_3(%arg0: i32, %arg1: i32, %arg2: memref<1xi32, #tpu.memory_space<smem>>, %arg3: memref<1xi32, #tpu.memory_space<smem>>) -> (i32, i32, i32, i32) {
    %0 = arith.index_cast %arg1 : i32 to index
    %1 = memref.load %arg3[%0] : memref<1xi32, #tpu.memory_space<smem>>
    %c0_i32 = arith.constant 0 : i32
    %c0_i32_0 = arith.constant 0 : i32
    %c0_i32_1 = arith.constant 0 : i32
    %c0_i32_2 = arith.constant 0 : i32
    return %c0_i32, %1, %c0_i32_0, %c0_i32_1 : i32, i32, i32, i32
  }
  func.func @transform_4(%arg0: i32, %arg1: i32, %arg2: memref<1xi32, #tpu.memory_space<smem>>, %arg3: memref<1xi32, #tpu.memory_space<smem>>) -> (i32, i32, i32) {
    %c0_i32 = arith.constant 0 : i32
    %c0_i32_0 = arith.constant 0 : i32
    return %arg0, %arg1, %c0_i32 : i32, i32, i32
  }
}

module attributes {stable_mosaic.version = 11 : i64} {
  func.func @_proj_mlp_kernel(%arg0: i32, %arg1: memref<128x32xbf16, #tpu.memory_space<vmem>>, %arg2: memref<128x32xf32, #tpu.memory_space<vmem>>, %arg3: memref<32x32xbf16, #tpu.memory_space<vmem>>, %arg4: memref<1x32xf32, #tpu.memory_space<vmem>>, %arg5: memref<1x32xf32, #tpu.memory_space<vmem>>, %arg6: memref<1x32xf32, #tpu.memory_space<vmem>>, %arg7: memref<32x128xbf16, #tpu.memory_space<vmem>>, %arg8: memref<1x128xf32, #tpu.memory_space<vmem>>, %arg9: memref<128x32xbf16, #tpu.memory_space<vmem>>, %arg10: memref<1x32xf32, #tpu.memory_space<vmem>>, %arg11: memref<128x32xf32, #tpu.memory_space<vmem>>) attributes {dimension_semantics = [#tpu.dimension_semantics<parallel>], iteration_bounds = array<i64: 1>, scalar_prefetch = 0 : i64, scratch_operands = 0 : i64, tpu.core_type = #tpu.core_type<tc>, window_params = [{transform_indices = @transform_0, window_bounds = array<i64: 128, 32>}, {transform_indices = @transform_1, window_bounds = array<i64: 128, 32>}, {pipeline_mode = #tpu.pipeline_mode<synchronous>, transform_indices = @transform_2, window_bounds = array<i64: 32, 32>}, {pipeline_mode = #tpu.pipeline_mode<synchronous>, transform_indices = @transform_3, window_bounds = array<i64: 1, 32>}, {pipeline_mode = #tpu.pipeline_mode<synchronous>, transform_indices = @transform_4, window_bounds = array<i64: 1, 32>}, {pipeline_mode = #tpu.pipeline_mode<synchronous>, transform_indices = @transform_5, window_bounds = array<i64: 1, 32>}, {pipeline_mode = #tpu.pipeline_mode<synchronous>, transform_indices = @transform_6, window_bounds = array<i64: 32, 128>}, {pipeline_mode = #tpu.pipeline_mode<synchronous>, transform_indices = @transform_7, window_bounds = array<i64: 1, 128>}, {pipeline_mode = #tpu.pipeline_mode<synchronous>, transform_indices = @transform_8, window_bounds = array<i64: 128, 32>}, {pipeline_mode = #tpu.pipeline_mode<synchronous>, transform_indices = @transform_9, window_bounds = array<i64: 1, 32>}, {transform_indices = @transform_10, window_bounds = array<i64: 128, 32>}]} {
    %c0 = arith.constant 0 : index
    %c0_0 = arith.constant 0 : index
    %0 = vector.load %arg1[%c0, %c0_0] : memref<128x32xbf16, #tpu.memory_space<vmem>>, vector<128x32xbf16>
    %c0_1 = arith.constant 0 : index
    %c0_2 = arith.constant 0 : index
    %1 = vector.load %arg3[%c0_1, %c0_2] : memref<32x32xbf16, #tpu.memory_space<vmem>>, vector<32x32xbf16>
    %cst = arith.constant dense<0.000000e+00> : vector<128x32xf32>
    %2 = tpu.matmul %0, %1, %cst {dimension_numbers = #tpu.dot_dimension_numbers<[1], [0], [0], [1], [0, 0, 1, 1], [], []>} : vector<128x32xbf16>, vector<32x32xbf16>, vector<128x32xf32> -> vector<128x32xf32>
    %c0_3 = arith.constant 0 : index
    %c0_4 = arith.constant 0 : index
    %3 = vector.load %arg4[%c0_3, %c0_4] : memref<1x32xf32, #tpu.memory_space<vmem>>, vector<1x32xf32>
    %4 = vector.broadcast %3 : vector<1x32xf32> to vector<128x32xf32>
    %5 = arith.addf %2, %4 : vector<128x32xf32>
    %c0_5 = arith.constant 0 : index
    %c0_6 = arith.constant 0 : index
    %6 = vector.load %arg2[%c0_5, %c0_6] : memref<128x32xf32, #tpu.memory_space<vmem>>, vector<128x32xf32>
    %7 = arith.addf %5, %6 : vector<128x32xf32>
    %c0_7 = arith.constant 0 : index
    %c0_8 = arith.constant 0 : index
    %8 = vector.load %arg5[%c0_7, %c0_8] : memref<1x32xf32, #tpu.memory_space<vmem>>, vector<1x32xf32>
    %c0_9 = arith.constant 0 : index
    %c0_10 = arith.constant 0 : index
    %9 = vector.load %arg6[%c0_9, %c0_10] : memref<1x32xf32, #tpu.memory_space<vmem>>, vector<1x32xf32>
    %cst_11 = arith.constant dense<0.000000e+00> : vector<128xf32>
    %10 = vector.multi_reduction <add>, %7, %cst_11 [1] : vector<128x32xf32> to vector<128xf32>
    %11 = vector.shape_cast %10 : vector<128xf32> to vector<128x1xf32>
    %cst_12 = arith.constant 3.200000e+01 : f32
    %12 = vector.broadcast %cst_12 : f32 to vector<128x1xf32>
    %13 = arith.divf %11, %12 : vector<128x1xf32>
    %14 = vector.broadcast %13 : vector<128x1xf32> to vector<128x32xf32>
    %15 = arith.subf %7, %14 : vector<128x32xf32>
    %16 = arith.mulf %15, %15 : vector<128x32xf32>
    %cst_13 = arith.constant dense<0.000000e+00> : vector<128xf32>
    %17 = vector.multi_reduction <add>, %16, %cst_13 [1] : vector<128x32xf32> to vector<128xf32>
    %18 = vector.shape_cast %17 : vector<128xf32> to vector<128x1xf32>
    %cst_14 = arith.constant 3.200000e+01 : f32
    %19 = vector.broadcast %cst_14 : f32 to vector<128x1xf32>
    %20 = arith.divf %18, %19 : vector<128x1xf32>
    %21 = vector.broadcast %13 : vector<128x1xf32> to vector<128x32xf32>
    %22 = arith.subf %7, %21 : vector<128x32xf32>
    %cst_15 = arith.constant 9.99999974E-6 : f32
    %23 = vector.broadcast %cst_15 : f32 to vector<128x1xf32>
    %24 = arith.addf %20, %23 : vector<128x1xf32>
    %25 = math.rsqrt %24 : vector<128x1xf32>
    %26 = vector.broadcast %25 : vector<128x1xf32> to vector<128x32xf32>
    %27 = arith.mulf %22, %26 : vector<128x32xf32>
    %28 = vector.broadcast %8 : vector<1x32xf32> to vector<128x32xf32>
    %29 = arith.mulf %27, %28 : vector<128x32xf32>
    %30 = vector.broadcast %9 : vector<1x32xf32> to vector<128x32xf32>
    %31 = arith.addf %29, %30 : vector<128x32xf32>
    %32 = arith.truncf %31 : vector<128x32xf32> to vector<128x32xbf16>
    %c0_16 = arith.constant 0 : index
    %c0_17 = arith.constant 0 : index
    %33 = vector.load %arg10[%c0_16, %c0_17] : memref<1x32xf32, #tpu.memory_space<vmem>>, vector<1x32xf32>
    %34 = vector.broadcast %33 : vector<1x32xf32> to vector<128x32xf32>
    %35 = arith.addf %7, %34 : vector<128x32xf32>
    %c0_18 = arith.constant 0 : index
    %c0_19 = arith.constant 0 : index
    %36 = vector.load %arg7[%c0_18, %c0_19] : memref<32x128xbf16, #tpu.memory_space<vmem>>, vector<32x128xbf16>
    %cst_20 = arith.constant dense<0.000000e+00> : vector<128x128xf32>
    %37 = tpu.matmul %32, %36, %cst_20 {dimension_numbers = #tpu.dot_dimension_numbers<[1], [0], [0], [1], [0, 0, 1, 1], [], []>} : vector<128x32xbf16>, vector<32x128xbf16>, vector<128x128xf32> -> vector<128x128xf32>
    %c0_21 = arith.constant 0 : index
    %c0_22 = arith.constant 0 : index
    %38 = vector.load %arg8[%c0_21, %c0_22] : memref<1x128xf32, #tpu.memory_space<vmem>>, vector<1x128xf32>
    %39 = vector.broadcast %38 : vector<1x128xf32> to vector<128x128xf32>
    %40 = arith.addf %37, %39 : vector<128x128xf32>
    %cst_23 = arith.constant 5.000000e-01 : f32
    %41 = vector.broadcast %cst_23 : f32 to vector<128x128xf32>
    %42 = arith.mulf %41, %40 : vector<128x128xf32>
    %cst_24 = arith.constant 0.707106769 : f32
    %43 = vector.broadcast %cst_24 : f32 to vector<128x128xf32>
    %44 = arith.mulf %40, %43 : vector<128x128xf32>
    %45 = math.absf %44 : vector<128x128xf32>
    %cst_25 = arith.constant 0.327591091 : f32
    %46 = vector.broadcast %cst_25 : f32 to vector<128x128xf32>
    %47 = arith.mulf %46, %45 : vector<128x128xf32>
    %cst_26 = arith.constant 1.000000e+00 : f32
    %48 = vector.broadcast %cst_26 : f32 to vector<128x128xf32>
    %49 = arith.addf %48, %47 : vector<128x128xf32>
    %cst_27 = arith.constant 1.000000e+00 : f32
    %50 = vector.broadcast %cst_27 : f32 to vector<128x128xf32>
    %51 = arith.divf %50, %49 : vector<128x128xf32>
    %cst_28 = arith.constant 1.06140542 : f32
    %52 = vector.broadcast %cst_28 : f32 to vector<128x128xf32>
    %53 = arith.mulf %52, %51 : vector<128x128xf32>
    %cst_29 = arith.constant -1.45315206 : f32
    %54 = vector.broadcast %cst_29 : f32 to vector<128x128xf32>
    %55 = arith.addf %53, %54 : vector<128x128xf32>
    %56 = arith.mulf %55, %51 : vector<128x128xf32>
    %cst_30 = arith.constant 1.42141378 : f32
    %57 = vector.broadcast %cst_30 : f32 to vector<128x128xf32>
    %58 = arith.addf %56, %57 : vector<128x128xf32>
    %59 = arith.mulf %58, %51 : vector<128x128xf32>
    %cst_31 = arith.constant -0.284496725 : f32
    %60 = vector.broadcast %cst_31 : f32 to vector<128x128xf32>
    %61 = arith.addf %59, %60 : vector<128x128xf32>
    %62 = arith.mulf %61, %51 : vector<128x128xf32>
    %cst_32 = arith.constant 0.254829586 : f32
    %63 = vector.broadcast %cst_32 : f32 to vector<128x128xf32>
    %64 = arith.addf %62, %63 : vector<128x128xf32>
    %65 = arith.mulf %64, %51 : vector<128x128xf32>
    %cst_33 = arith.constant 0.000000e+00 : f32
    %66 = vector.broadcast %cst_33 : f32 to vector<128x128xf32>
    %67 = arith.subf %66, %45 : vector<128x128xf32>
    %68 = arith.mulf %67, %45 : vector<128x128xf32>
    %69 = math.exp %68 : vector<128x128xf32>
    %70 = arith.mulf %65, %69 : vector<128x128xf32>
    %cst_34 = arith.constant 1.000000e+00 : f32
    %71 = vector.broadcast %cst_34 : f32 to vector<128x128xf32>
    %72 = arith.subf %71, %70 : vector<128x128xf32>
    %cst_35 = arith.constant 0.000000e+00 : f32
    %73 = vector.broadcast %cst_35 : f32 to vector<128x128xf32>
    %74 = arith.cmpf oge, %44, %73 : vector<128x128xf32>
    %cst_36 = arith.constant 0.000000e+00 : f32
    %75 = vector.broadcast %cst_36 : f32 to vector<128x128xf32>
    %76 = arith.subf %75, %72 : vector<128x128xf32>
    %77 = arith.select %74, %72, %76 : vector<128x128xi1>, vector<128x128xf32>
    %cst_37 = arith.constant 1.000000e+00 : f32
    %78 = vector.broadcast %cst_37 : f32 to vector<128x128xf32>
    %79 = arith.addf %78, %77 : vector<128x128xf32>
    %80 = arith.mulf %42, %79 : vector<128x128xf32>
    %81 = arith.truncf %80 : vector<128x128xf32> to vector<128x128xbf16>
    %c0_38 = arith.constant 0 : index
    %c0_39 = arith.constant 0 : index
    %82 = vector.load %arg9[%c0_38, %c0_39] : memref<128x32xbf16, #tpu.memory_space<vmem>>, vector<128x32xbf16>
    %cst_40 = arith.constant dense<0.000000e+00> : vector<128x32xf32>
    %83 = tpu.matmul %81, %82, %cst_40 {dimension_numbers = #tpu.dot_dimension_numbers<[1], [0], [0], [1], [0, 0, 1, 1], [], []>} : vector<128x128xbf16>, vector<128x32xbf16>, vector<128x32xf32> -> vector<128x32xf32>
    %84 = arith.addf %35, %83 : vector<128x32xf32>
    %c0_41 = arith.constant 0 : index
    %c0_42 = arith.constant 0 : index
    %85 = vector.load %arg11[%c0_41, %c0_42] : memref<128x32xf32, #tpu.memory_space<vmem>>, vector<128x32xf32>
    tpu.vector_store %arg11[%c0_41, %c0_42], %84 {strides = array<i32>} : memref<128x32xf32, #tpu.memory_space<vmem>>, vector<128x32xf32>,
    return
  }
  func.func @transform_0(%arg0: i32) -> (i32, i32) {
    %c0_i32 = arith.constant 0 : i32
    %c0_i32_0 = arith.constant 0 : i32
    return %arg0, %c0_i32 : i32, i32
  }
  func.func @transform_1(%arg0: i32) -> (i32, i32) {
    %c0_i32 = arith.constant 0 : i32
    %c0_i32_0 = arith.constant 0 : i32
    return %arg0, %c0_i32 : i32, i32
  }
  func.func @transform_2(%arg0: i32) -> (i32, i32) {
    %c0_i32 = arith.constant 0 : i32
    %c0_i32_0 = arith.constant 0 : i32
    %c0_i32_1 = arith.constant 0 : i32
    return %c0_i32, %c0_i32_0 : i32, i32
  }
  func.func @transform_3(%arg0: i32) -> (i32, i32) {
    %c0_i32 = arith.constant 0 : i32
    %c0_i32_0 = arith.constant 0 : i32
    %c0_i32_1 = arith.constant 0 : i32
    return %c0_i32, %c0_i32_0 : i32, i32
  }
  func.func @transform_4(%arg0: i32) -> (i32, i32) {
    %c0_i32 = arith.constant 0 : i32
    %c0_i32_0 = arith.constant 0 : i32
    %c0_i32_1 = arith.constant 0 : i32
    return %c0_i32, %c0_i32_0 : i32, i32
  }
  func.func @transform_5(%arg0: i32) -> (i32, i32) {
    %c0_i32 = arith.constant 0 : i32
    %c0_i32_0 = arith.constant 0 : i32
    %c0_i32_1 = arith.constant 0 : i32
    return %c0_i32, %c0_i32_0 : i32, i32
  }
  func.func @transform_6(%arg0: i32) -> (i32, i32) {
    %c0_i32 = arith.constant 0 : i32
    %c0_i32_0 = arith.constant 0 : i32
    %c0_i32_1 = arith.constant 0 : i32
    return %c0_i32, %c0_i32_0 : i32, i32
  }
  func.func @transform_7(%arg0: i32) -> (i32, i32) {
    %c0_i32 = arith.constant 0 : i32
    %c0_i32_0 = arith.constant 0 : i32
    %c0_i32_1 = arith.constant 0 : i32
    return %c0_i32, %c0_i32_0 : i32, i32
  }
  func.func @transform_8(%arg0: i32) -> (i32, i32) {
    %c0_i32 = arith.constant 0 : i32
    %c0_i32_0 = arith.constant 0 : i32
    %c0_i32_1 = arith.constant 0 : i32
    return %c0_i32, %c0_i32_0 : i32, i32
  }
  func.func @transform_9(%arg0: i32) -> (i32, i32) {
    %c0_i32 = arith.constant 0 : i32
    %c0_i32_0 = arith.constant 0 : i32
    %c0_i32_1 = arith.constant 0 : i32
    return %c0_i32, %c0_i32_0 : i32, i32
  }
  func.func @transform_10(%arg0: i32) -> (i32, i32) {
    %c0_i32 = arith.constant 0 : i32
    %c0_i32_0 = arith.constant 0 : i32
    return %arg0, %c0_i32 : i32, i32
  }
}

</mosaic_0001>

<llo_original>
// kernel: nat_layer_forward.3
$region0: #{nat_layer_forward.3}
  #allocation0 [shape = 'u32[]', space=smem, size = 0x4, offset = 0x4, fixed_abs, tag = 'smem constant byte address 0x4 - core index']
  #allocation1 [shape = 'u32[144,128]{1,0:T(1,128)}', space=vmem, size = 0x12000, scoped, tag = 'internal scratch']
  %s0 = inlined_call_operand.hbm [shape: f32[128,32], index: 0, kind: input, shape index: {}]
  %s1 = inlined_call_operand.vmem [shape: f32[1,32], index: 1, kind: input, shape index: {}]
  %s2 = inlined_call_operand.vmem [shape: f32[1,32], index: 2, kind: input, shape index: {}]
  %s3 = inlined_call_operand.vmem [shape: bf16[32,96], index: 3, kind: input, shape index: {}]
  %s4 = inlined_call_operand.vmem [shape: f32[1,96], index: 4, kind: input, shape index: {}]
  %s5 = inlined_call_operand.vmem [shape: bf16[128,32], index: 5, kind: output, shape index: {0}]
  %s6 = inlined_call_operand.vmem [shape: bf16[128,32], index: 6, kind: output, shape index: {1}]
  %s7 = inlined_call_operand.vmem [shape: bf16[128,32], index: 7, kind: output, shape index: {2}]
  %8 = xla_tuple %s5, %s6, %s7
  %s9 = sld [smem:[#allocation0]]
  $region50: #{nat_layer_forward.3} parent=0
    _
  %s11 = ssub.s32 1, %s9
  %s12 = scalar_select 0, %s11, %s9
  $region1: #{nat_layer_forward.3} parent=0
    #allocation2 [shape = 'u8[65536]{0}', space=vmem, size = 0x10000, scoped, tag = 'input window, operand 0, single buffered']
    #allocation3 [shape = 's32[1]{0}', space=sflag, size = 0x4, scoped, tag = 'scoped memory for nat_layer_forward.3']
    %13 = vsyncpa [#allocation3], 0
    // Predicated region
    $region2: #{nat_layer_forward.3} parent=1 // pred_check
      _
    $region3: #{nat_layer_forward.3} parent=1 // pred_check_branch
      %15 = sbr.rel (0) target = $region5
    $region4: #{nat_layer_forward.3} parent=1 // pred_region
      %s17 = ssub.s32 2048, 2048
      %18 = vsyncadd [#allocation3], %s17
      %s19 = sshll.u32 [#allocation2], 4
      %s20 = int_to_ptr.vmem [resolvable:$true] %s19
      %25 = dma.hbm_to_vmem [thread:$0]  %s0, 2048, %s20, [#allocation3], 128, 128, 8
    $region5: #{nat_layer_forward.3} parent=1 // pred_fallthru
      _
    // Predicated region
    $region6: #{nat_layer_forward.3} parent=1 // pred_check
      _
    $region7: #{nat_layer_forward.3} parent=1 // pred_check_branch
      %27 = sbr.rel (0) target = $region9
    $region8: #{nat_layer_forward.3} parent=1 // pred_region
      _
    $region9: #{nat_layer_forward.3} parent=1 // pred_fallthru
      _
    // Predicated region
    $region10: #{nat_layer_forward.3} parent=1 // pred_check
      _
    $region11: #{nat_layer_forward.3} parent=1 // pred_check_branch
      %29 = sbr.rel (0) target = $region13
    $region12: #{nat_layer_forward.3} parent=1 // pred_region
      _
    $region13: #{nat_layer_forward.3} parent=1 // pred_fallthru
      _
    // Predicated region
    $region14: #{nat_layer_forward.3} parent=1 // pred_check
      _
    $region15: #{nat_layer_forward.3} parent=1 // pred_check_branch
      %31 = sbr.rel (0) target = $region17
    $region16: #{nat_layer_forward.3} parent=1 // pred_region
      _
    $region17: #{nat_layer_forward.3} parent=1 // pred_fallthru
      _
    // Predicated region
    $region18: #{nat_layer_forward.3} parent=1 // pred_check
      _
    $region19: #{nat_layer_forward.3} parent=1 // pred_check_branch
      %33 = sbr.rel (0) target = $region21
    $region20: #{nat_layer_forward.3} parent=1 // pred_region
      _
    $region21: #{nat_layer_forward.3} parent=1 // pred_fallthru
      _
    // Predicated region
    $region22: #{nat_layer_forward.3} parent=1 // pred_check
      _
    $region23: #{nat_layer_forward.3} parent=1 // pred_check_branch
      %35 = sbr.rel (0) target = $region25
    $region24: #{nat_layer_forward.3} parent=1 // pred_region
      %36 = dma.done [#allocation3], 2048
    $region25: #{nat_layer_forward.3} parent=1 // pred_fallthru
      _
    %v38 = vld [vmem:[#allocation2] sm:$0xff]
    %v39 = vld [vmem:[#allocation2 + $0x8] sm:$0xff]
    %v40 = vld [vmem:[#allocation2 + $0x10] sm:$0xff]
    %v41 = vld [vmem:[#allocation2 + $0x18] sm:$0xff]
    %v42 = vld [vmem:[#allocation2 + $0x20] sm:$0xff]
    %v43 = vld [vmem:[#allocation2 + $0x28] sm:$0xff]
    %v44 = vld [vmem:[#allocation2 + $0x30] sm:$0xff]
    %v45 = vld [vmem:[#allocation2 + $0x38] sm:$0xff]
    %v46 = vld [vmem:[#allocation2 + $0x40] sm:$0xff]
    %v47 = vld [vmem:[#allocation2 + $0x48] sm:$0xff]
    %v48 = vld [vmem:[#allocation2 + $0x50] sm:$0xff]
    %v49 = vld [vmem:[#allocation2 + $0x58] sm:$0xff]
    %v50 = vld [vmem:[#allocation2 + $0x60] sm:$0xff]
    %v51 = vld [vmem:[#allocation2 + $0x68] sm:$0xff]
    %v52 = vld [vmem:[#allocation2 + $0x70] sm:$0xff]
    %v53 = vld [vmem:[#allocation2 + $0x78] sm:$0xff]
    %v54 = vld [vmem:[%s1] sm:$0x1]
    %v55 = vld [vmem:[%s2] sm:$0x1]
    %vm56 = vcmask 261120
    %v57 = vsel %vm56, %v38, 0.0
    %58 = vadd.xlane.f32.xlu0 %v57
    %v59 = vpop.xlane.xlu0 %58
    %v60 = vsel %vm56, %v39, 0.0
    %61 = vadd.xlane.f32.xlu0 %v60
    %v62 = vpop.xlane.xlu0 %61
    %v63 = vsel %vm56, %v40, 0.0
    %64 = vadd.xlane.f32.xlu0 %v63
    %v65 = vpop.xlane.xlu0 %64
    %v66 = vsel %vm56, %v41, 0.0
    %67 = vadd.xlane.f32.xlu0 %v66
    %v68 = vpop.xlane.xlu0 %67
    %v69 = vsel %vm56, %v42, 0.0
    %70 = vadd.xlane.f32.xlu0 %v69
    %v71 = vpop.xlane.xlu0 %70
    %v72 = vsel %vm56, %v43, 0.0
    %73 = vadd.xlane.f32.xlu0 %v72
    %v74 = vpop.xlane.xlu0 %73
    %v75 = vsel %vm56, %v44, 0.0
    %76 = vadd.xlane.f32.xlu0 %v75
    %v77 = vpop.xlane.xlu0 %76
    %v78 = vsel %vm56, %v45, 0.0
    %79 = vadd.xlane.f32.xlu0 %v78
    %v80 = vpop.xlane.xlu0 %79
    %v81 = vsel %vm56, %v46, 0.0
    %82 = vadd.xlane.f32.xlu0 %v81
    %v83 = vpop.xlane.xlu0 %82
    %v84 = vsel %vm56, %v47, 0.0
    %85 = vadd.xlane.f32.xlu0 %v84
    %v86 = vpop.xlane.xlu0 %85
    %v87 = vsel %vm56, %v48, 0.0
    %88 = vadd.xlane.f32.xlu0 %v87
    %v89 = vpop.xlane.xlu0 %88
    %v90 = vsel %vm56, %v49, 0.0
    %91 = vadd.xlane.f32.xlu0 %v90
    %v92 = vpop.xlane.xlu0 %91
    %v93 = vsel %vm56, %v50, 0.0
    %94 = vadd.xlane.f32.xlu0 %v93
    %v95 = vpop.xlane.xlu0 %94
    %v96 = vsel %vm56, %v51, 0.0
    %97 = vadd.xlane.f32.xlu0 %v96
    %v98 = vpop.xlane.xlu0 %97
    %v99 = vsel %vm56, %v52, 0.0
    %100 = vadd.xlane.f32.xlu0 %v99
    %v101 = vpop.xlane.xlu0 %100
    %v102 = vsel %vm56, %v53, 0.0
    %103 = vadd.xlane.f32.xlu0 %v102
    %v104 = vpop.xlane.xlu0 %103
    %v105 = vrcp.pop 32.0
    %v106 = vmul.f32 %v59, %v105
    %v107 = vmul.f32 %v62, %v105
    %v108 = vmul.f32 %v65, %v105
    %v109 = vmul.f32 %v68, %v105
    %v110 = vmul.f32 %v71, %v105
    %v111 = vmul.f32 %v74, %v105
    %v112 = vmul.f32 %v77, %v105
    %v113 = vmul.f32 %v80, %v105
    %v114 = vmul.f32 %v83, %v105
    %v115 = vmul.f32 %v86, %v105
    %v116 = vmul.f32 %v89, %v105
    %v117 = vmul.f32 %v92, %v105
    %v118 = vmul.f32 %v95, %v105
    %v119 = vmul.f32 %v98, %v105
    %v120 = vmul.f32 %v101, %v105
    %v121 = vmul.f32 %v104, %v105
    %v122 = vsub.f32 %v38, %v106
    %v123 = vsub.f32 %v39, %v107
    %v124 = vsub.f32 %v40, %v108
    %v125 = vsub.f32 %v41, %v109
    %v126 = vsub.f32 %v42, %v110
    %v127 = vsub.f32 %v43, %v111
    %v128 = vsub.f32 %v44, %v112
    %v129 = vsub.f32 %v45, %v113
    %v130 = vsub.f32 %v46, %v114
    %v131 = vsub.f32 %v47, %v115
    %v132 = vsub.f32 %v48, %v116
    %v133 = vsub.f32 %v49, %v117
    %v134 = vsub.f32 %v50, %v118
    %v135 = vsub.f32 %v51, %v119
    %v136 = vsub.f32 %v52, %v120
    %v137 = vsub.f32 %v53, %v121
    %v138 = vmul.f32 %v122, %v122
    %v139 = vmul.f32 %v123, %v123
    %v140 = vmul.f32 %v124, %v124
    %v141 = vmul.f32 %v125, %v125
    %v142 = vmul.f32 %v126, %v126
    %v143 = vmul.f32 %v127, %v127
    %v144 = vmul.f32 %v128, %v128
    %v145 = vmul.f32 %v129, %v129
    %v146 = vmul.f32 %v130, %v130
    %v147 = vmul.f32 %v131, %v131
    %v148 = vmul.f32 %v132, %v132
    %v149 = vmul.f32 %v133, %v133
    %v150 = vmul.f32 %v134, %v134
    %v151 = vmul.f32 %v135, %v135
    %v152 = vmul.f32 %v136, %v136
    %v153 = vmul.f32 %v137, %v137
    %v154 = vsel %vm56, %v138, 0.0
    %155 = vadd.xlane.f32.xlu0 %v154
    %v156 = vpop.xlane.xlu0 %155
    %v157 = vsel %vm56, %v139, 0.0
    %158 = vadd.xlane.f32.xlu0 %v157
    %v159 = vpop.xlane.xlu0 %158
    %v160 = vsel %vm56, %v140, 0.0
    %161 = vadd.xlane.f32.xlu0 %v160
    %v162 = vpop.xlane.xlu0 %161
    %v163 = vsel %vm56, %v141, 0.0
    %164 = vadd.xlane.f32.xlu0 %v163
    %v165 = vpop.xlane.xlu0 %164
    %v166 = vsel %vm56, %v142, 0.0
    %167 = vadd.xlane.f32.xlu0 %v166
    %v168 = vpop.xlane.xlu0 %167
    %v169 = vsel %vm56, %v143, 0.0
    %170 = vadd.xlane.f32.xlu0 %v169
    %v171 = vpop.xlane.xlu0 %170
    %v172 = vsel %vm56, %v144, 0.0
    %173 = vadd.xlane.f32.xlu0 %v172
    %v174 = vpop.xlane.xlu0 %173
    %v175 = vsel %vm56, %v145, 0.0
    %176 = vadd.xlane.f32.xlu0 %v175
    %v177 = vpop.xlane.xlu0 %176
    %v178 = vsel %vm56, %v146, 0.0
    %179 = vadd.xlane.f32.xlu0 %v178
    %v180 = vpop.xlane.xlu0 %179
    %v181 = vsel %vm56, %v147, 0.0
    %182 = vadd.xlane.f32.xlu0 %v181
    %v183 = vpop.xlane.xlu0 %182
    %v184 = vsel %vm56, %v148, 0.0
    %185 = vadd.xlane.f32.xlu0 %v184
    %v186 = vpop.xlane.xlu0 %185
    %v187 = vsel %vm56, %v149, 0.0
    %188 = vadd.xlane.f32.xlu0 %v187
    %v189 = vpop.xlane.xlu0 %188
    %v190 = vsel %vm56, %v150, 0.0
    %191 = vadd.xlane.f32.xlu0 %v190
    %v192 = vpop.xlane.xlu0 %191
    %v193 = vsel %vm56, %v151, 0.0
    %194 = vadd.xlane.f32.xlu0 %v193
    %v195 = vpop.xlane.xlu0 %194
    %v196 = vsel %vm56, %v152, 0.0
    %197 = vadd.xlane.f32.xlu0 %v196
    %v198 = vpop.xlane.xlu0 %197
    %v199 = vsel %vm56, %v153, 0.0
    %200 = vadd.xlane.f32.xlu0 %v199
    %v201 = vpop.xlane.xlu0 %200
    %v202 = vmul.f32 %v156, %v105
    %v203 = vmul.f32 %v159, %v105
    %v204 = vmul.f32 %v162, %v105
    %v205 = vmul.f32 %v165, %v105
    %v206 = vmul.f32 %v168, %v105
    %v207 = vmul.f32 %v171, %v105
    %v208 = vmul.f32 %v174, %v105
    %v209 = vmul.f32 %v177, %v105
    %v210 = vmul.f32 %v180, %v105
    %v211 = vmul.f32 %v183, %v105
    %v212 = vmul.f32 %v186, %v105
    %v213 = vmul.f32 %v189, %v105
    %v214 = vmul.f32 %v192, %v105
    %v215 = vmul.f32 %v195, %v105
    %v216 = vmul.f32 %v198, %v105
    %v217 = vmul.f32 %v201, %v105
    %v218 = vadd.f32 %v202, 1e-05
    %v219 = vadd.f32 %v203, 1e-05
    %v220 = vadd.f32 %v204, 1e-05
    %v221 = vadd.f32 %v205, 1e-05
    %v222 = vadd.f32 %v206, 1e-05
    %v223 = vadd.f32 %v207, 1e-05
    %v224 = vadd.f32 %v208, 1e-05
    %v225 = vadd.f32 %v209, 1e-05
    %v226 = vadd.f32 %v210, 1e-05
    %v227 = vadd.f32 %v211, 1e-05
    %v228 = vadd.f32 %v212, 1e-05
    %v229 = vadd.f32 %v213, 1e-05
    %v230 = vadd.f32 %v214, 1e-05
    %v231 = vadd.f32 %v215, 1e-05
    %v232 = vadd.f32 %v216, 1e-05
    %v233 = vadd.f32 %v217, 1e-05
    %v234 = vrsqrt.pop %v218
    %v235 = vrsqrt.pop %v219
    %v236 = vrsqrt.pop %v220
    %v237 = vrsqrt.pop %v221
    %v238 = vrsqrt.pop %v222
    %v239 = vrsqrt.pop %v223
    %v240 = vrsqrt.pop %v224
    %v241 = vrsqrt.pop %v225
    %v242 = vrsqrt.pop %v226
    %v243 = vrsqrt.pop %v227
    %v244 = vrsqrt.pop %v228
    %v245 = vrsqrt.pop %v229
    %v246 = vrsqrt.pop %v230
    %v247 = vrsqrt.pop %v231
    %v248 = vrsqrt.pop %v232
    %v249 = vrsqrt.pop %v233
    %v250 = vmul.f32 %v122, %v234
    %v251 = vmul.f32 %v123, %v235
    %v252 = vmul.f32 %v124, %v236
    %v253 = vmul.f32 %v125, %v237
    %v254 = vmul.f32 %v126, %v238
    %v255 = vmul.f32 %v127, %v239
    %v256 = vmul.f32 %v128, %v240
    %v257 = vmul.f32 %v129, %v241
    %v258 = vmul.f32 %v130, %v242
    %v259 = vmul.f32 %v131, %v243
    %v260 = vmul.f32 %v132, %v244
    %v261 = vmul.f32 %v133, %v245
    %v262 = vmul.f32 %v134, %v246
    %v263 = vmul.f32 %v135, %v247
    %v264 = vmul.f32 %v136, %v248
    %v265 = vmul.f32 %v137, %v249
    %v267 = vlaneseq
    %v268 = vshrl.u32 %v267, 7
    %v269 = vsub.s32 0, %v268
    %v270 = vrot.slane %v54, %v269
    %v272 = vmul.f32 %v250, %v270
    %v273 = vmul.f32 %v251, %v270
    %v274 = vmul.f32 %v252, %v270
    %v275 = vmul.f32 %v253, %v270
    %v276 = vmul.f32 %v254, %v270
    %v277 = vmul.f32 %v255, %v270
    %v278 = vmul.f32 %v256, %v270
    %v279 = vmul.f32 %v257, %v270
    %v280 = vmul.f32 %v258, %v270
    %v281 = vmul.f32 %v259, %v270
    %v282 = vmul.f32 %v260, %v270
    %v283 = vmul.f32 %v261, %v270
    %v284 = vmul.f32 %v262, %v270
    %v285 = vmul.f32 %v263, %v270
    %v286 = vmul.f32 %v264, %v270
    %v287 = vmul.f32 %v265, %v270
    %v289 = vlaneseq
    %v290 = vshrl.u32 %v289, 7
    %v291 = vsub.s32 0, %v290
    %v292 = vrot.slane %v55, %v291
    %v294 = vadd.f32 %v272, %v292
    %v295 = vadd.f32 %v273, %v292
    %v296 = vadd.f32 %v274, %v292
    %v297 = vadd.f32 %v275, %v292
    %v298 = vadd.f32 %v276, %v292
    %v299 = vadd.f32 %v277, %v292
    %v300 = vadd.f32 %v278, %v292
    %v301 = vadd.f32 %v279, %v292
    %v302 = vadd.f32 %v280, %v292
    %v303 = vadd.f32 %v281, %v292
    %v304 = vadd.f32 %v282, %v292
    %v305 = vadd.f32 %v283, %v292
    %v306 = vadd.f32 %v284, %v292
    %v307 = vadd.f32 %v285, %v292
    %v308 = vadd.f32 %v286, %v292
    %v309 = vadd.f32 %v287, %v292
    %v310 = vpack.c.bf16 %v295, %v294
    %v311 = vpack.c.bf16 %v297, %v296
    %v312 = vpack.c.bf16 %v299, %v298
    %v313 = vpack.c.bf16 %v301, %v300
    %v314 = vpack.c.bf16 %v303, %v302
    %v315 = vpack.c.bf16 %v305, %v304
    %v316 = vpack.c.bf16 %v307, %v306
    %v317 = vpack.c.bf16 %v309, %v308
    %v318 = vld [vmem:[%s3] sm:$0xf]
    %v319 = vld [vmem:[%s3 + $0x4] sm:$0xf]
    %v320 = vld [vmem:[%s3 + $0x8] sm:$0xf]
    %v321 = vld [vmem:[%s3 + $0xc] sm:$0xf]
    %v322 = vld [vmem:[%s4] sm:$0x1]
    %v324 = vlaneseq
    %v325 = vshrl.u32 %v324, 7
    %v326 = vsub.s32 0, %v325
    %v327 = vrot.slane %v322, %v326
    %v333 = vunpack.c.l.b16 %v318
    %v334 = vunpack.c.l.b16 %v319
    %v335 = vunpack.c.l.b16 %v320
    %v336 = vunpack.c.l.b16 %v321
    %v337 = vpack.c.b16 %v334, %v333
    %v338 = vpack.c.b16 %v336, %v335
    %v342 = vsel %vm56, %v310, 0
    %v345 = vsel %vm56, %v311, 0
    %v348 = vsel %vm56, %v312, 0
    %v351 = vsel %vm56, %v313, 0
    %v354 = vsel %vm56, %v314, 0
    %v357 = vsel %vm56, %v315, 0
    %v360 = vsel %vm56, %v316, 0
    %v363 = vsel %vm56, %v317, 0
    %365 = vmatprep.subr.bf16.mxu0 0
    %366 = vmatpush1.bf16.msra.mxu0 %v337
    %367 = vmatprep.subr.bf16.mxu0 0
    %368 = vmatpush1.bf16.msra.mxu0 %v338
    %369 = vmatprep.subr.bf16.mxu0 0
    %370 = vmatpush1.bf16.msra.mxu0 0
    %371 = vmatprep.subr.bf16.mxu0 0
    %372 = vmatpush1.bf16.msra.mxu0 0
    %373 = vmatprep.subr.bf16.mxu0 0
    %374 = vmatpush1.bf16.msra.mxu0 0
    %375 = vmatprep.subr.bf16.mxu0 0
    %376 = vmatpush1.bf16.msra.mxu0 0
    %377 = vmatprep.subr.bf16.mxu0 0
    %378 = vmatpush1.bf16.msra.mxu0 0
    %379 = vmatprep.subr.bf16.mxu0 0
    %380 = vmatpush1.bf16.msra.mxu0 0
    %381 = vmatprep.subr.bf16.mxu0 0
    %382 = vmatpush1.bf16.msra.mxu0 0
    %383 = vmatprep.subr.bf16.mxu0 0
    %384 = vmatpush1.bf16.msra.mxu0 0
    %385 = vmatprep.subr.bf16.mxu0 0
    %386 = vmatpush1.bf16.msra.mxu0 0
    %387 = vmatprep.subr.bf16.mxu0 0
    %388 = vmatpush1.bf16.msra.mxu0 0
    %389 = vmatprep.subr.bf16.mxu0 0
    %390 = vmatpush1.bf16.msra.mxu0 0
    %391 = vmatprep.subr.bf16.mxu0 0
    %392 = vmatpush1.bf16.msra.mxu0 0
    %393 = vmatprep.subr.bf16.mxu0 0
    %394 = vmatpush1.bf16.msra.mxu0 0
    %395 = vmatprep.subr.bf16.mxu0 0
    %396 = vmatpush1.bf16.msra.mxu0 0
    %397 = vmatprep.mubr.bf16.mxu0 0
    %398 = vmatmul.mubr.bf16.gmra.mrb[0].mxu0 %v342
    %v399 = vpop.f32.mrb[0].mxu0
    %v400 = vadd.f32 %v327, %v399
    %v401 = vpop.f32.mrb[0].mxu0
    %v402 = vpop.f32.mrb[0].mxu0
    %v403 = vadd.f32 %v327, %v402
    %v404 = vpop.f32.mrb[0].mxu0
    %405 = vmatprep.mubr.bf16.mxu0 0
    %406 = vmatmul.mubr.bf16.gmra.mrb[0].mxu0 %v345
    %v407 = vpop.f32.mrb[0].mxu0
    %v408 = vadd.f32 %v327, %v407
    %v409 = vpop.f32.mrb[0].mxu0
    %v410 = vpop.f32.mrb[0].mxu0
    %v411 = vadd.f32 %v327, %v410
    %v412 = vpop.f32.mrb[0].mxu0
    %413 = vmatprep.mubr.bf16.mxu0 0
    %414 = vmatmul.mubr.bf16.gmra.mrb[0].mxu0 %v348
    %v415 = vpop.f32.mrb[0].mxu0
    %v416 = vadd.f32 %v327, %v415
    %v417 = vpop.f32.mrb[0].mxu0
    %v418 = vpop.f32.mrb[0].mxu0
    %v419 = vadd.f32 %v327, %v418
    %v420 = vpop.f32.mrb[0].mxu0
    %421 = vmatprep.mubr.bf16.mxu0 0
    %422 = vmatmul.mubr.bf16.gmra.mrb[0].mxu0 %v351
    %v423 = vpop.f32.mrb[0].mxu0
    %v424 = vadd.f32 %v327, %v423
    %v425 = vpop.f32.mrb[0].mxu0
    %v426 = vpop.f32.mrb[0].mxu0
    %v427 = vadd.f32 %v327, %v426
    %v428 = vpop.f32.mrb[0].mxu0
    %429 = vmatprep.mubr.bf16.mxu0 0
    %430 = vmatmul.mubr.bf16.gmra.mrb[0].mxu0 %v354
    %v431 = vpop.f32.mrb[0].mxu0
    %v432 = vadd.f32 %v327, %v431
    %v433 = vpop.f32.mrb[0].mxu0
    %v434 = vpop.f32.mrb[0].mxu0
    %v435 = vadd.f32 %v327, %v434
    %v436 = vpop.f32.mrb[0].mxu0
    %437 = vmatprep.mubr.bf16.mxu0 0
    %438 = vmatmul.mubr.bf16.gmra.mrb[0].mxu0 %v357
    %v439 = vpop.f32.mrb[0].mxu0
    %v440 = vadd.f32 %v327, %v439
    %v441 = vpop.f32.mrb[0].mxu0
    %v442 = vpop.f32.mrb[0].mxu0
    %v443 = vadd.f32 %v327, %v442
    %v444 = vpop.f32.mrb[0].mxu0
    %445 = vmatprep.mubr.bf16.mxu0 0
    %446 = vmatmul.mubr.bf16.gmra.mrb[0].mxu0 %v360
    %v447 = vpop.f32.mrb[0].mxu0
    %v448 = vadd.f32 %v327, %v447
    %v449 = vpop.f32.mrb[0].mxu0
    %v450 = vpop.f32.mrb[0].mxu0
    %v451 = vadd.f32 %v327, %v450
    %v452 = vpop.f32.mrb[0].mxu0
    %453 = vmatprep.mubr.bf16.mxu0 0
    %454 = vmatmul.mubr.bf16.gmra.mrb[0].mxu0 %v363
    %v455 = vpop.f32.mrb[0].mxu0
    %v456 = vadd.f32 %v327, %v455
    %v457 = vpop.f32.mrb[0].mxu0
    %v458 = vpop.f32.mrb[0].mxu0
    %v459 = vadd.f32 %v327, %v458
    %v460 = vpop.f32.mrb[0].mxu0
    %461 = vdwg.mxu0
    %v462 = vpack.c.bf16 %v403, %v400
    %v463 = vpack.c.bf16 %v411, %v408
    %v464 = vpack.c.bf16 %v419, %v416
    %v465 = vpack.c.bf16 %v427, %v424
    %v466 = vpack.c.bf16 %v435, %v432
    %v467 = vpack.c.bf16 %v443, %v440
    %v468 = vpack.c.bf16 %v451, %v448
    %v469 = vpack.c.bf16 %v459, %v456
    %v478 = vunpack.c.l.b16 %v462
    %v479 = vunpack.c.h.b16 %v462
    %v480 = vunpack.c.l.b16 %v463
    %v481 = vunpack.c.h.b16 %v463
    %v482 = vunpack.c.l.b16 %v464
    %v483 = vunpack.c.h.b16 %v464
    %v484 = vunpack.c.l.b16 %v465
    %v485 = vunpack.c.h.b16 %v465
    %v486 = vunpack.c.l.b16 %v466
    %v487 = vunpack.c.h.b16 %v466
    %v488 = vunpack.c.l.b16 %v467
    %v489 = vunpack.c.h.b16 %v467
    %v490 = vunpack.c.l.b16 %v468
    %v491 = vunpack.c.h.b16 %v468
    %v492 = vunpack.c.l.b16 %v469
    %v493 = vunpack.c.h.b16 %v469
    %v494 = vpack.c.b16 %v478, %v478
    %v495 = vpack.c.b16 %v479, %v479
    %v496 = vpack.c.b16 %v480, %v480
    %v497 = vpack.c.b16 %v481, %v481
    %v498 = vpack.c.b16 %v482, %v482
    %v499 = vpack.c.b16 %v483, %v483
    %v500 = vpack.c.b16 %v484, %v484
    %v501 = vpack.c.b16 %v485, %v485
    %v502 = vpack.c.b16 %v486, %v486
    %v503 = vpack.c.b16 %v487, %v487
    %v504 = vpack.c.b16 %v488, %v488
    %v505 = vpack.c.b16 %v489, %v489
    %v506 = vpack.c.b16 %v490, %v490
    %v507 = vpack.c.b16 %v491, %v491
    %v508 = vpack.c.b16 %v492, %v492
    %v509 = vpack.c.b16 %v493, %v493
    %vm526 = vcmask 257024
    %527 = vst.msk [vmem:[%s5] sm:$0xf] %vm526, %v494
    %528 = vst.msk [vmem:[%s5 + $0x4] sm:$0xf] %vm526, %v495
    %529 = vst.msk [vmem:[%s5 + $0x8] sm:$0xf] %vm526, %v496
    %530 = vst.msk [vmem:[%s5 + $0xc] sm:$0xf] %vm526, %v497
    %531 = vst.msk [vmem:[%s5 + $0x10] sm:$0xf] %vm526, %v498
    %532 = vst.msk [vmem:[%s5 + $0x14] sm:$0xf] %vm526, %v499
    %533 = vst.msk [vmem:[%s5 + $0x18] sm:$0xf] %vm526, %v500
    %534 = vst.msk [vmem:[%s5 + $0x1c] sm:$0xf] %vm526, %v501
    %535 = vst.msk [vmem:[%s5 + $0x20] sm:$0xf] %vm526, %v502
    %536 = vst.msk [vmem:[%s5 + $0x24] sm:$0xf] %vm526, %v503
    %537 = vst.msk [vmem:[%s5 + $0x28] sm:$0xf] %vm526, %v504
    %538 = vst.msk [vmem:[%s5 + $0x2c] sm:$0xf] %vm526, %v505
    %539 = vst.msk [vmem:[%s5 + $0x30] sm:$0xf] %vm526, %v506
    %540 = vst.msk [vmem:[%s5 + $0x34] sm:$0xf] %vm526, %v507
    %541 = vst.msk [vmem:[%s5 + $0x38] sm:$0xf] %vm526, %v508
    %542 = vst.msk [vmem:[%s5 + $0x3c] sm:$0xf] %vm526, %v509
    %543 = vrot.lane.b32.xlu0 %v494, 96
    %v544 = vpop.permute.xlu0 %543
    %545 = vrot.lane.b32.xlu0 %v495, 96
    %v546 = vpop.permute.xlu0 %545
    %547 = vrot.lane.b32.xlu0 %v496, 96
    %v548 = vpop.permute.xlu0 %547
    %549 = vrot.lane.b32.xlu0 %v497, 96
    %v550 = vpop.permute.xlu0 %549
    %551 = vrot.lane.b32.xlu0 %v498, 96
    %v552 = vpop.permute.xlu0 %551
    %553 = vrot.lane.b32.xlu0 %v499, 96
    %v554 = vpop.permute.xlu0 %553
    %555 = vrot.lane.b32.xlu0 %v500, 96
    %v556 = vpop.permute.xlu0 %555
    %557 = vrot.lane.b32.xlu0 %v501, 96
    %v558 = vpop.permute.xlu0 %557
    %559 = vrot.lane.b32.xlu0 %v502, 96
    %v560 = vpop.permute.xlu0 %559
    %561 = vrot.lane.b32.xlu0 %v503, 96
    %v562 = vpop.permute.xlu0 %561
    %563 = vrot.lane.b32.xlu0 %v504, 96
    %v564 = vpop.permute.xlu0 %563
    %565 = vrot.lane.b32.xlu0 %v505, 96
    %v566 = vpop.permute.xlu0 %565
    %567 = vrot.lane.b32.xlu0 %v506, 96
    %v568 = vpop.permute.xlu0 %567
    %569 = vrot.lane.b32.xlu0 %v507, 96
    %v570 = vpop.permute.xlu0 %569
    %571 = vrot.lane.b32.xlu0 %v508, 96
    %v572 = vpop.permute.xlu0 %571
    %573 = vrot.lane.b32.xlu0 %v509, 96
    %v574 = vpop.permute.xlu0 %573
    %591 = vst.msk [vmem:[%s6] sm:$0xf] %vm526, %v544
    %592 = vst.msk [vmem:[%s6 + $0x4] sm:$0xf] %vm526, %v546
    %593 = vst.msk [vmem:[%s6 + $0x8] sm:$0xf] %vm526, %v548
    %594 = vst.msk [vmem:[%s6 + $0xc] sm:$0xf] %vm526, %v550
    %595 = vst.msk [vmem:[%s6 + $0x10] sm:$0xf] %vm526, %v552
    %596 = vst.msk [vmem:[%s6 + $0x14] sm:$0xf] %vm526, %v554
    %597 = vst.msk [vmem:[%s6 + $0x18] sm:$0xf] %vm526, %v556
    %598 = vst.msk [vmem:[%s6 + $0x1c] sm:$0xf] %vm526, %v558
    %599 = vst.msk [vmem:[%s6 + $0x20] sm:$0xf] %vm526, %v560
    %600 = vst.msk [vmem:[%s6 + $0x24] sm:$0xf] %vm526, %v562
    %601 = vst.msk [vmem:[%s6 + $0x28] sm:$0xf] %vm526, %v564
    %602 = vst.msk [vmem:[%s6 + $0x2c] sm:$0xf] %vm526, %v566
    %603 = vst.msk [vmem:[%s6 + $0x30] sm:$0xf] %vm526, %v568
    %604 = vst.msk [vmem:[%s6 + $0x34] sm:$0xf] %vm526, %v570
    %605 = vst.msk [vmem:[%s6 + $0x38] sm:$0xf] %vm526, %v572
    %606 = vst.msk [vmem:[%s6 + $0x3c] sm:$0xf] %vm526, %v574
    %607 = vrot.lane.b32.xlu0 %v494, 64
    %v608 = vpop.permute.xlu0 %607
    %609 = vrot.lane.b32.xlu0 %v495, 64
    %v610 = vpop.permute.xlu0 %609
    %611 = vrot.lane.b32.xlu0 %v496, 64
    %v612 = vpop.permute.xlu0 %611
    %613 = vrot.lane.b32.xlu0 %v497, 64
    %v614 = vpop.permute.xlu0 %613
    %615 = vrot.lane.b32.xlu0 %v498, 64
    %v616 = vpop.permute.xlu0 %615
    %617 = vrot.lane.b32.xlu0 %v499, 64
    %v618 = vpop.permute.xlu0 %617
    %619 = vrot.lane.b32.xlu0 %v500, 64
    %v620 = vpop.permute.xlu0 %619
    %621 = vrot.lane.b32.xlu0 %v501, 64
    %v622 = vpop.permute.xlu0 %621
    %623 = vrot.lane.b32.xlu0 %v502, 64
    %v624 = vpop.permute.xlu0 %623
    %625 = vrot.lane.b32.xlu0 %v503, 64
    %v626 = vpop.permute.xlu0 %625
    %627 = vrot.lane.b32.xlu0 %v504, 64
    %v628 = vpop.permute.xlu0 %627
    %629 = vrot.lane.b32.xlu0 %v505, 64
    %v630 = vpop.permute.xlu0 %629
    %631 = vrot.lane.b32.xlu0 %v506, 64
    %v632 = vpop.permute.xlu0 %631
    %633 = vrot.lane.b32.xlu0 %v507, 64
    %v634 = vpop.permute.xlu0 %633
    %635 = vrot.lane.b32.xlu0 %v508, 64
    %v636 = vpop.permute.xlu0 %635
    %637 = vrot.lane.b32.xlu0 %v509, 64
    %v638 = vpop.permute.xlu0 %637
    %655 = vst.msk [vmem:[%s7] sm:$0xf] %vm526, %v608
    %656 = vst.msk [vmem:[%s7 + $0x4] sm:$0xf] %vm526, %v610
    %657 = vst.msk [vmem:[%s7 + $0x8] sm:$0xf] %vm526, %v612
    %658 = vst.msk [vmem:[%s7 + $0xc] sm:$0xf] %vm526, %v614
    %659 = vst.msk [vmem:[%s7 + $0x10] sm:$0xf] %vm526, %v616
    %660 = vst.msk [vmem:[%s7 + $0x14] sm:$0xf] %vm526, %v618
    %661 = vst.msk [vmem:[%s7 + $0x18] sm:$0xf] %vm526, %v620
    %662 = vst.msk [vmem:[%s7 + $0x1c] sm:$0xf] %vm526, %v622
    %663 = vst.msk [vmem:[%s7 + $0x20] sm:$0xf] %vm526, %v624
    %664 = vst.msk [vmem:[%s7 + $0x24] sm:$0xf] %vm526, %v626
    %665 = vst.msk [vmem:[%s7 + $0x28] sm:$0xf] %vm526, %v628
    %666 = vst.msk [vmem:[%s7 + $0x2c] sm:$0xf] %vm526, %v630
    %667 = vst.msk [vmem:[%s7 + $0x30] sm:$0xf] %vm526, %v632
    %668 = vst.msk [vmem:[%s7 + $0x34] sm:$0xf] %vm526, %v634
    %669 = vst.msk [vmem:[%s7 + $0x38] sm:$0xf] %vm526, %v636
    %670 = vst.msk [vmem:[%s7 + $0x3c] sm:$0xf] %vm526, %v638
    // Predicated region
    $region26: #{nat_layer_forward.3} parent=1 // pred_check
      _
    $region27: #{nat_layer_forward.3} parent=1 // pred_check_branch
      %672 = sbr.rel (0) target = $region29
    $region28: #{nat_layer_forward.3} parent=1 // pred_region
      _
    $region29: #{nat_layer_forward.3} parent=1 // pred_fallthru
      _
    // Predicated region
    $region30: #{nat_layer_forward.3} parent=1 // pred_check
      _
    $region31: #{nat_layer_forward.3} parent=1 // pred_check_branch
      %674 = sbr.rel (0) target = $region33
    $region32: #{nat_layer_forward.3} parent=1 // pred_region
      _
    $region33: #{nat_layer_forward.3} parent=1 // pred_fallthru
      _
    // Predicated region
    $region34: #{nat_layer_forward.3} parent=1 // pred_check
      _
    $region35: #{nat_layer_forward.3} parent=1 // pred_check_branch
      %676 = sbr.rel (0) target = $region37
    $region36: #{nat_layer_forward.3} parent=1 // pred_region
      _
    $region37: #{nat_layer_forward.3} parent=1 // pred_fallthru
      _
    // Predicated region
    $region38: #{nat_layer_forward.3} parent=1 // pred_check
      _
    $region39: #{nat_layer_forward.3} parent=1 // pred_check_branch
      %678 = sbr.rel (0) target = $region41
    $region40: #{nat_layer_forward.3} parent=1 // pred_region
      _
    $region41: #{nat_layer_forward.3} parent=1 // pred_fallthru
      _
    // Predicated region
    $region42: #{nat_layer_forward.3} parent=1 // pred_check
      _
    $region43: #{nat_layer_forward.3} parent=1 // pred_check_branch
      %680 = sbr.rel (0) target = $region45
    $region44: #{nat_layer_forward.3} parent=1 // pred_region
      _
    $region45: #{nat_layer_forward.3} parent=1 // pred_fallthru
      _
    // Predicated region
    $region46: #{nat_layer_forward.3} parent=1 // pred_check
      _
    $region47: #{nat_layer_forward.3} parent=1 // pred_check_branch
      %682 = sbr.rel (0) target = $region49
    $region48: #{nat_layer_forward.3} parent=1 // pred_region
      _
    $region49: #{nat_layer_forward.3} parent=1 // pred_fallthru
      _
    %683 = vsyncpa [#allocation3], 1

// kernel: nat_layer_forward.4
$region0: #{nat_layer_forward.4}
  #allocation0 [shape = 'u32[]', space=smem, size = 0x4, offset = 0x4, fixed_abs, tag = 'smem constant byte address 0x4 - core index']
  #allocation1 [shape = 'u32[144,128]{1,0:T(1,128)}', space=vmem, size = 0x12000, scoped, tag = 'internal scratch']
  #allocation2 [shape = 's32[1]{0}', space=sflag, size = 0x4, scoped, tag = 'scoped memory for nat_layer_forward.4']
  #allocation3 [shape = 's32[1]{0:T(128)S(6)}', space=smem, size = 0x200, scoped, tag = 'prefetched SMEM operand 0']
  #allocation4 [shape = 's32[1]{0:T(128)S(6)}', space=smem, size = 0x200, scoped, tag = 'prefetched SMEM operand 1']
  %s0 = inlined_call_operand.<no memory space> [shape: s32[1], index: 0, kind: input, shape index: {}, may-alias: {0,1}]
  %s1 = inlined_call_operand.<no memory space> [shape: s32[1], index: 1, kind: input, shape index: {}, may-alias: {0,1}]
  %s2 = inlined_call_operand.vmem [shape: bf16[2,64,32], index: 2, kind: input, shape index: {}]
  %s3 = inlined_call_operand.vmem [shape: bf16[2,64,32], index: 3, kind: input, shape index: {}]
  %s4 = inlined_call_operand.vmem [shape: bf16[2,64,32], index: 4, kind: input, shape index: {}]
  %s5 = inlined_call_operand.vmem [shape: bf16[4,1,64,64], index: 5, kind: input, shape index: {}]
  %s6 = inlined_call_operand.vmem [shape: bf16[2,64,32], index: 6, kind: output, shape index: {}]
  %s7 = sld [smem:[#allocation0]]
  $region49: #{nat_layer_forward.4} parent=0
    _
  %s9 = ssub.s32 1, %s7
  %s10 = scalar_select 0, %s9, %s7
  %11 = sst [smem:[#allocation3]] %s0
  %12 = sst [smem:[#allocation4]] %s1
  loop: start=0, step=1, limit=4
  $region2: #{nat_layer_forward.4} parent=0 // loop_pre_header
    _
  $region3: #{nat_layer_forward.4} parent=0 // loop_header
    %s14 = sphi 0, %s18
    %p15 = scmp.ge.s32.totalorder %s14, 4
    %s21 = sphi 0, %s33
    %s22 = sphi 0, %s29
    %s23 = sphi 0, %s21
    %s24 = sphi 0, %s22
    %s25 = sphi 0, %s23
    %s26 = sphi 0, %s24
    %s38 = sphi 0, %s40
    %s41 = sphi 0, %s38
    %s42 = sphi 0, %s41
    %s58 = sphi 0, %s42
    %s64 = sphi 0, %s66
    %s67 = sphi 0, %s64
    %s68 = sphi 0, %s67
    %s84 = sphi 0, %s68
    %s90 = sphi 0, %s92
    %s93 = sphi 0, %s90
    %s94 = sphi 0, %s93
    %s110 = sphi 0, %s94
    %s118 = sphi 0, %s120
    %s121 = sphi 0, %s118
    %s122 = sphi 0, %s121
    %s138 = sphi 0, %s122
    %s146 = sphi 0, %s148
    %s149 = sphi 0, %s146
    %s150 = sphi 0, %s149
    %s166 = sphi 0, %s150
  $region4: #{nat_layer_forward.4} parent=0 // loop_header_branch
    %17 = sbr.rel (%p15) target = $region8
  $region5: #{nat_layer_forward.4} parent=0 // loop_body
    %s19 = ssub.s32 %s14, 1
    %s20 = ssub.s32 %s14, 2
    %s27 = sadd.s32 1, %s22
    %p28 = scmp.ge.s32.totalorder %s27, 1
    %s29 = scalar_select %p28, 0, %s27
    %s30 = sadd.s32 1, %s21
    %s31 = scalar_select %p28, %s30, %s21
    %p32 = scmp.ge.s32.totalorder %s31, 2
    %s33 = scalar_select %p32, 0, %s31
    %s34 = ssub.s32 %s21, %s33
    %s35 = ssub.s32 %s22, %s29
    %s36 = sor.u32 %s34, %s35
    %p37 = scmp.eq.s32.totalorder %s36, 0
    %s39 = sadd.s32 %s38, 1
    %s40 = scalar_select %p37, %s38, %s39
    %p43 = pneg %p37
    %p44 = scmp.eq.s32.totalorder %s14, 1
    %p45 = por %p43, %p44
    %p46 = scmp.ne.s32.totalorder %s38, %s41
    %p47 = scmp.eq.s32.totalorder %s14, 0
    %p48 = por %p46, %p47
    %p49 = scmp.ne.s32.totalorder %s38, %s41
    %p50 = scmp.eq.s32.totalorder %s19, 1
    %p51 = por %p49, %p50
    %p52 = scmp.ne.s32.totalorder %s41, %s42
    %p53 = scmp.eq.s32.totalorder %s19, 0
    %p54 = por %p52, %p53
    %p55 = scmp.ne.s32.totalorder %s41, %s42
    %p56 = scmp.eq.s32.totalorder %s20, 1
    %p57 = por %p55, %p56
    %p59 = scmp.ne.s32.totalorder %s42, %s58
    %p60 = scmp.eq.s32.totalorder %s20, 0
    %p61 = por %p59, %p60
    %s62 = ssub.s32 %s21, %s33
    %p63 = scmp.eq.s32.totalorder %s62, 0
    %s65 = sadd.s32 %s64, 1
    %s66 = scalar_select %p63, %s64, %s65
    %p69 = pneg %p63
    %p70 = scmp.eq.s32.totalorder %s14, 1
    %p71 = por %p69, %p70
    %p72 = scmp.ne.s32.totalorder %s64, %s67
    %p73 = scmp.eq.s32.totalorder %s14, 0
    %p74 = por %p72, %p73
    %p75 = scmp.ne.s32.totalorder %s64, %s67
    %p76 = scmp.eq.s32.totalorder %s19, 1
    %p77 = por %p75, %p76
    %p78 = scmp.ne.s32.totalorder %s67, %s68
    %p79 = scmp.eq.s32.totalorder %s19, 0
    %p80 = por %p78, %p79
    %p81 = scmp.ne.s32.totalorder %s67, %s68
    %p82 = scmp.eq.s32.totalorder %s20, 1
    %p83 = por %p81, %p82
    %p85 = scmp.ne.s32.totalorder %s68, %s84
    %p86 = scmp.eq.s32.totalorder %s20, 0
    %p87 = por %p85, %p86
    %s88 = ssub.s32 %s21, %s33
    %p89 = scmp.eq.s32.totalorder %s88, 0
    %s91 = sadd.s32 %s90, 1
    %s92 = scalar_select %p89, %s90, %s91
    %p95 = pneg %p89
    %p96 = scmp.eq.s32.totalorder %s14, 1
    %p97 = por %p95, %p96
    %p98 = scmp.ne.s32.totalorder %s90, %s93
    %p99 = scmp.eq.s32.totalorder %s14, 0
    %p100 = por %p98, %p99
    %p101 = scmp.ne.s32.totalorder %s90, %s93
    %p102 = scmp.eq.s32.totalorder %s19, 1
    %p103 = por %p101, %p102
    %p104 = scmp.ne.s32.totalorder %s93, %s94
    %p105 = scmp.eq.s32.totalorder %s19, 0
    %p106 = por %p104, %p105
    %p107 = scmp.ne.s32.totalorder %s93, %s94
    %p108 = scmp.eq.s32.totalorder %s20, 1
    %p109 = por %p107, %p108
    %p111 = scmp.ne.s32.totalorder %s94, %s110
    %p112 = scmp.eq.s32.totalorder %s20, 0
    %p113 = por %p111, %p112
    %s114 = sld [smem:[#allocation4 + %s22]]
    %s115 = sld [smem:[#allocation4 + %s29]]
    %s116 = ssub.s32 %s114, %s115
    %p117 = scmp.eq.s32.totalorder %s116, 0
    %s119 = sadd.s32 %s118, 1
    %s120 = scalar_select %p117, %s118, %s119
    %p123 = pneg %p117
    %p124 = scmp.eq.s32.totalorder %s14, 1
    %p125 = por %p123, %p124
    %p126 = scmp.ne.s32.totalorder %s118, %s121
    %p127 = scmp.eq.s32.totalorder %s14, 0
    %p128 = por %p126, %p127
    %p129 = scmp.ne.s32.totalorder %s118, %s121
    %p130 = scmp.eq.s32.totalorder %s19, 1
    %p131 = por %p129, %p130
    %p132 = scmp.ne.s32.totalorder %s121, %s122
    %p133 = scmp.eq.s32.totalorder %s19, 0
    %p134 = por %p132, %p133
    %p135 = scmp.ne.s32.totalorder %s121, %s122
    %p136 = scmp.eq.s32.totalorder %s20, 1
    %p137 = por %p135, %p136
    %p139 = scmp.ne.s32.totalorder %s122, %s138
    %p140 = scmp.eq.s32.totalorder %s20, 0
    %p141 = por %p139, %p140
    %s142 = ssub.s32 %s21, %s33
    %s143 = ssub.s32 %s22, %s29
    %s144 = sor.u32 %s142, %s143
    %p145 = scmp.eq.s32.totalorder %s144, 0
    %s147 = sadd.s32 %s146, 1
    %s148 = scalar_select %p145, %s146, %s147
    %p151 = pneg %p145
    %p152 = scmp.eq.s32.totalorder %s14, 1
    %p153 = por %p151, %p152
    %p154 = scmp.ne.s32.totalorder %s146, %s149
    %p155 = scmp.eq.s32.totalorder %s14, 0
    %p156 = por %p154, %p155
    %p157 = scmp.ne.s32.totalorder %s146, %s149
    %p158 = scmp.eq.s32.totalorder %s19, 1
    %p159 = por %p157, %p158
    %p160 = scmp.ne.s32.totalorder %s149, %s150
    %p161 = scmp.eq.s32.totalorder %s19, 0
    %p162 = por %p160, %p161
    %p163 = scmp.ne.s32.totalorder %s149, %s150
    %p164 = scmp.eq.s32.totalorder %s20, 1
    %p165 = por %p163, %p164
    %p167 = scmp.ne.s32.totalorder %s150, %s166
    %p168 = scmp.eq.s32.totalorder %s20, 0
    %p169 = por %p167, %p168
    %p170 = scmp.le.s32.totalorder 1, %s14
    %p171 = scmp.lt.s32.totalorder %s14, 3
    %p172 = pnand %p170, %p171
    %p173 = pneg %p172
    // Predicated region
    $region9: #{nat_layer_forward.4} parent=5 // pred_check
      _
    $region10: #{nat_layer_forward.4} parent=5 // pred_check_branch
      %175 = sbr.rel (%p172) target = $region12
    $region11: #{nat_layer_forward.4} parent=5 // pred_region
      %s176 = ssub.s32 %s14, 1
      // Predicated region
      $region13: #{nat_layer_forward.4} parent=11 // pred_check
        %p177 = pneg %p134
      $region14: #{nat_layer_forward.4} parent=11 // pred_check_branch
        %179 = sbr.rel (%p177) target = $region16
      $region15: #{nat_layer_forward.4} parent=11 // pred_region
        %s180 = sld [smem:[#allocation4 + %s24]]
        %p181 = scmp.lt.s32.totalorder %s180, 0
        %s182 = scalar_select %p181, %s180, 0
        %s183 = smul.addr %s182, 8
        %s184 = smul.addr %s183, 4
        %s185 = scalar_lea.vmem %s5, %s184
        %s186 = sld [smem:[#allocation4 + %s24]]
      $region16: #{nat_layer_forward.4} parent=11 // pred_fallthru
        _
    $region12: #{nat_layer_forward.4} parent=5 // pred_fallthru
      _
    %p187 = scmp.lt.s32.totalorder %s14, 2
    // Predicated region
    $region17: #{nat_layer_forward.4} parent=5 // pred_check
      %p188 = pneg %p187
    $region18: #{nat_layer_forward.4} parent=5 // pred_check_branch
      %190 = sbr.rel (%p188) target = $region20
    $region19: #{nat_layer_forward.4} parent=5 // pred_region
      // Predicated region
      $region21: #{nat_layer_forward.4} parent=19 // pred_check
        %p191 = pneg %p48
      $region22: #{nat_layer_forward.4} parent=19 // pred_check_branch
        %193 = sbr.rel (%p191) target = $region24
      $region23: #{nat_layer_forward.4} parent=19 // pred_region
        %s194 = smul.u32 8, %s22
        %p195 = scmp.lt.s32.totalorder %s21, 1
        %s196 = scalar_select %p195, %s21, 1
        %p197 = scmp.lt.s32.totalorder %s194, 7
        %s198 = scalar_select %p197, %s194, 7
        %s199 = smul.addr %s196, 8
        %s200 = sadd.s32 %s198, %s199
        %s201 = smul.addr %s200, 4
        %s202 = scalar_lea.vmem %s2, %s201
        %s203 = smul.u32 8, %s22
      $region24: #{nat_layer_forward.4} parent=19 // pred_fallthru
        _
      // Predicated region
      $region25: #{nat_layer_forward.4} parent=19 // pred_check
        %p204 = pneg %p74
      $region26: #{nat_layer_forward.4} parent=19 // pred_check_branch
        %206 = sbr.rel (%p204) target = $region28
      $region27: #{nat_layer_forward.4} parent=19 // pred_region
        %p207 = scmp.lt.s32.totalorder %s21, 1
        %s208 = scalar_select %p207, %s21, 1
        %s209 = smul.addr %s208, 8
        %s210 = smul.addr %s209, 4
        %s211 = scalar_lea.vmem %s3, %s210
      $region28: #{nat_layer_forward.4} parent=19 // pred_fallthru
        _
      // Predicated region
      $region29: #{nat_layer_forward.4} parent=19 // pred_check
        %p212 = pneg %p100
      $region30: #{nat_layer_forward.4} parent=19 // pred_check_branch
        %214 = sbr.rel (%p212) target = $region32
      $region31: #{nat_layer_forward.4} parent=19 // pred_region
        %p215 = scmp.lt.s32.totalorder %s21, 1
        %s216 = scalar_select %p215, %s21, 1
        %s217 = smul.addr %s216, 8
        %s218 = smul.addr %s217, 4
        %s219 = scalar_lea.vmem %s4, %s218
      $region32: #{nat_layer_forward.4} parent=19 // pred_fallthru
        _
    $region20: #{nat_layer_forward.4} parent=5 // pred_fallthru
      _
    %p220 = scmp.le.s32.totalorder 1, %s14
    %p221 = scmp.lt.s32.totalorder %s14, 3
    %p222 = pnand %p220, %p221
    %p223 = pneg %p222
    // Predicated region
    $region33: #{nat_layer_forward.4} parent=5 // pred_check
      _
    $region34: #{nat_layer_forward.4} parent=5 // pred_check_branch
      %225 = sbr.rel (%p222) target = $region36
    $region35: #{nat_layer_forward.4} parent=5 // pred_region
      %s226 = ssub.s32 %s14, 1
      %s227 = smul.u32 8, %s24
      %p228 = scmp.lt.s32.totalorder %s23, 1
      %s229 = scalar_select %p228, %s23, 1
      %p230 = scmp.lt.s32.totalorder %s227, 7
      %s231 = scalar_select %p230, %s227, 7
      %s232 = smul.addr %s229, 8
      %s233 = sadd.s32 %s231, %s232
      %s234 = smul.addr %s233, 4
      %s235 = scalar_lea.vmem %s2, %s234
      %p236 = pneg %p54
      %p237 = pneg %p51
      %p238 = scmp.lt.s32.totalorder %s23, 1
      %s239 = scalar_select %p238, %s23, 1
      %s240 = smul.addr %s239, 8
      %s241 = smul.addr %s240, 4
      %s242 = scalar_lea.vmem %s3, %s241
      %p243 = pneg %p80
      %p244 = pneg %p77
      %p245 = scmp.lt.s32.totalorder %s23, 1
      %s246 = scalar_select %p245, %s23, 1
      %s247 = smul.addr %s246, 8
      %s248 = smul.addr %s247, 4
      %s249 = scalar_lea.vmem %s4, %s248
      %p250 = pneg %p106
      %p251 = pneg %p103
      %s252 = sld [smem:[#allocation4 + %s24]]
      %p253 = scmp.lt.s32.totalorder %s252, 0
      %s254 = scalar_select %p253, %s252, 0
      %s255 = smul.addr %s254, 8
      %s256 = smul.addr %s255, 4
      %s257 = scalar_lea.vmem %s5, %s256
      %p258 = pneg %p134
      %p259 = pneg %p131
      %p260 = pneg %p162
      %p261 = pneg %p159
      %s262 = smul.u32 8, %s24
      %p263 = scmp.lt.s32.totalorder %s23, 1
      %s264 = scalar_select %p263, %s23, 1
      %p265 = scmp.lt.s32.totalorder %s262, 7
      %s266 = scalar_select %p265, %s262, 7
      %s267 = smul.addr %s264, 8
      %s268 = sadd.s32 %s266, %s267
      %s269 = smul.addr %s268, 4
      %s270 = scalar_lea.vmem %s6, %s269
      %s271 = smul.u32 8, %s24
      %p272 = scmp.lt.s32.totalorder %s23, 1
      %s273 = scalar_select %p272, %s23, 1
      %p274 = scmp.lt.s32.totalorder %s271, 7
      %s275 = scalar_select %p274, %s271, 7
      %s276 = smul.addr %s273, 8
      %s277 = sadd.s32 %s275, %s276
      %s278 = smul.addr %s277, 4
      %s279 = scalar_lea.vmem %s2, %s278
      %s280 = smul.u32 8, %s24
      %p281 = scmp.lt.s32.totalorder %s23, 1
      %s282 = scalar_select %p281, %s23, 1
      %s283 = smul.addr %s282, 8
      %s284 = smul.addr %s283, 4
      %s285 = scalar_lea.vmem %s3, %s284
      %p286 = scmp.lt.s32.totalorder %s23, 1
      %s287 = scalar_select %p286, %s23, 1
      %s288 = smul.addr %s287, 8
      %s289 = smul.addr %s288, 4
      %s290 = scalar_lea.vmem %s4, %s289
      %s291 = sld [smem:[#allocation4 + %s24]]
      %p292 = scmp.lt.s32.totalorder %s291, 0
      %s293 = scalar_select %p292, %s291, 0
      %s294 = smul.addr %s293, 8
      %s295 = smul.addr %s294, 4
      %s296 = scalar_lea.vmem %s5, %s295
      %s297 = sld [smem:[#allocation4 + %s24]]
      %s298 = smul.u32 8, %s24
      %p299 = scmp.lt.s32.totalorder %s23, 1
      %s300 = scalar_select %p299, %s23, 1
      %p301 = scmp.lt.s32.totalorder %s298, 7
      %s302 = scalar_select %p301, %s298, 7
      %s303 = smul.addr %s300, 8
      %s304 = sadd.s32 %s302, %s303
      %s305 = smul.addr %s304, 4
      %s306 = scalar_lea.vmem %s6, %s305
      %s307 = smul.u32 8, %s24
      %s309 = sld [smem:[#allocation3 + %s24]]
      %v310 = vld [vmem:[%s279] sm:$0xf]
      %v311 = vld [vmem:[%s279 + $0x4] sm:$0xf]
      %v312 = vld [vmem:[%s279 + $0x8] sm:$0xf]
      %v313 = vld [vmem:[%s279 + $0xc] sm:$0xf]
      %v314 = vld [vmem:[%s279 + $0x10] sm:$0xf]
      %v315 = vld [vmem:[%s279 + $0x14] sm:$0xf]
      %v316 = vld [vmem:[%s279 + $0x18] sm:$0xf]
      %v317 = vld [vmem:[%s279 + $0x1c] sm:$0xf]
      %s318 = sshra.s32 %s309, 3
      %s319 = sand.u32 %s309, 7
      %s320 = smul.addr %s318, 4
      %s321 = scalar_lea.vmem %s285, %s320
      %v322 = vld [vmem:[%s321] sm:$0xf]
      %v323 = vld [vmem:[%s321 + $0x4] sm:$0xf]
      %v324 = vld [vmem:[%s321 + $0x8] sm:$0xf]
      %v325 = vld [vmem:[%s321 + $0xc] sm:$0xf]
      %v326 = vld [vmem:[%s321 + $0x10] sm:$0xf]
      %v327 = vld [vmem:[%s321 + $0x14] sm:$0xf]
      %v328 = vld [vmem:[%s321 + $0x18] sm:$0xf]
      %v329 = vld [vmem:[%s321 + $0x1c] sm:$0xf]
      %s330 = smul.addr %s318, 4
      %s331 = scalar_lea.vmem %s290, %s330
      %v332 = vld [vmem:[%s331] sm:$0xf]
      %v333 = vld [vmem:[%s331 + $0x4] sm:$0xf]
      %v334 = vld [vmem:[%s331 + $0x8] sm:$0xf]
      %v335 = vld [vmem:[%s331 + $0xc] sm:$0xf]
      %v336 = vld [vmem:[%s331 + $0x10] sm:$0xf]
      %v337 = vld [vmem:[%s331 + $0x14] sm:$0xf]
      %v338 = vld [vmem:[%s331 + $0x18] sm:$0xf]
      %v339 = vld [vmem:[%s331 + $0x1c] sm:$0xf]
      %v340 = vld [vmem:[%s296] sm:$0xf]
      %v341 = vld [vmem:[%s296 + $0x4] sm:$0xf]
      %v342 = vld [vmem:[%s296 + $0x8] sm:$0xf]
      %v343 = vld [vmem:[%s296 + $0xc] sm:$0xf]
      %v344 = vld [vmem:[%s296 + $0x10] sm:$0xf]
      %v345 = vld [vmem:[%s296 + $0x14] sm:$0xf]
      %v346 = vld [vmem:[%s296 + $0x18] sm:$0xf]
      %v347 = vld [vmem:[%s296 + $0x1c] sm:$0xf]
      %v348 = vunpack.c.l.bf16 %v340
      %v349 = vunpack.c.l.bf16 %v341
      %v350 = vunpack.c.l.bf16 %v342
      %v351 = vunpack.c.l.bf16 %v343
      %v352 = vunpack.c.l.bf16 %v344
      %v353 = vunpack.c.l.bf16 %v345
      %v354 = vunpack.c.l.bf16 %v346
      %v355 = vunpack.c.l.bf16 %v347
      %v364 = vunpack.c.l.b16 %v310
      %v365 = vunpack.c.l.b16 %v311
      %v366 = vunpack.c.l.b16 %v312
      %v367 = vunpack.c.l.b16 %v313
      %v368 = vunpack.c.l.b16 %v314
      %v369 = vunpack.c.l.b16 %v315
      %v370 = vunpack.c.l.b16 %v316
      %v371 = vunpack.c.l.b16 %v317
      %v372 = vpack.c.b16 %v365, %v364
      %v373 = vpack.c.b16 %v367, %v366
      %v374 = vpack.c.b16 %v369, %v368
      %v375 = vpack.c.b16 %v371, %v370
      %v384 = vunpack.c.l.b16 %v322
      %v385 = vunpack.c.l.b16 %v323
      %v386 = vunpack.c.l.b16 %v324
      %v387 = vunpack.c.l.b16 %v325
      %v388 = vunpack.c.l.b16 %v326
      %v389 = vunpack.c.l.b16 %v327
      %v390 = vunpack.c.l.b16 %v328
      %v391 = vunpack.c.l.b16 %v329
      %v392 = vpack.c.b16 %v385, %v384
      %v393 = vpack.c.b16 %v387, %v386
      %v394 = vpack.c.b16 %v389, %v388
      %v395 = vpack.c.b16 %v391, %v390
      %vm396 = vcmask 64512
      %v398 = vsel %vm396, %v372, 0
      %v401 = vsel %vm396, %v373, 0
      %v404 = vsel %vm396, %v374, 0
      %v407 = vsel %vm396, %v375, 0
      %v410 = vsel %vm396, %v392, 0
      %v413 = vsel %vm396, %v393, 0
      %v416 = vsel %vm396, %v394, 0
      %v419 = vsel %vm396, %v395, 0
      %421 = vmatprep.subr.bf16.mxu0 0
      %422 = vmatpush1.bf16.xpose.msra.mxu0 %v410
      %423 = vmatprep.subr.bf16.mxu0 0
      %424 = vmatpush1.bf16.xpose.msra.mxu0 %v413
      %425 = vmatprep.subr.bf16.mxu0 0
      %426 = vmatpush1.bf16.xpose.msra.mxu0 %v416
      %427 = vmatprep.subr.bf16.mxu0 0
      %428 = vmatpush1.bf16.xpose.msra.mxu0 %v419
      %429 = vmatprep.subr.bf16.mxu0 0
      %430 = vmatpush1.bf16.xpose.msra.mxu0 0
      %431 = vmatprep.subr.bf16.mxu0 0
      %432 = vmatpush1.bf16.xpose.msra.mxu0 0
      %433 = vmatprep.subr.bf16.mxu0 0
      %434 = vmatpush1.bf16.xpose.msra.mxu0 0
      %435 = vmatprep.subr.bf16.mxu0 0
      %436 = vmatpush1.bf16.xpose.msra.mxu0 0
      %437 = vmatprep.subr.bf16.mxu0 0
      %438 = vmatpush1.bf16.xpose.msra.mxu0 0
      %439 = vmatprep.subr.bf16.mxu0 0
      %440 = vmatpush1.bf16.xpose.msra.mxu0 0
      %441 = vmatprep.subr.bf16.mxu0 0
      %442 = vmatpush1.bf16.xpose.msra.mxu0 0
      %443 = vmatprep.subr.bf16.mxu0 0
      %444 = vmatpush1.bf16.xpose.msra.mxu0 0
      %445 = vmatprep.subr.bf16.mxu0 0
      %446 = vmatpush1.bf16.xpose.msra.mxu0 0
      %447 = vmatprep.subr.bf16.mxu0 0
      %448 = vmatpush1.bf16.xpose.msra.mxu0 0
      %449 = vmatprep.subr.bf16.mxu0 0
      %450 = vmatpush1.bf16.xpose.msra.mxu0 0
      %451 = vmatprep.subr.bf16.mxu0 0
      %452 = vmatpush1.bf16.xpose.msra.mxu0 0
      %453 = vmatprep.mubr.bf16.mxu0 0
      %454 = vmatmul.mubr.bf16.gmra.mrb[0].mxu0 %v398
      %v455 = vpop.f32.mrb[0].mxu0
      %v456 = vadd.f32 %v348, %v455
      %v457 = vpop.f32.mrb[0].mxu0
      %v458 = vpop.f32.mrb[0].mxu0
      %v459 = vadd.f32 %v349, %v458
      %v460 = vpop.f32.mrb[0].mxu0
      %461 = vmatprep.mubr.bf16.mxu0 0
      %462 = vmatmul.mubr.bf16.gmra.mrb[0].mxu0 %v401
      %v463 = vpop.f32.mrb[0].mxu0
      %v464 = vadd.f32 %v350, %v463
      %v465 = vpop.f32.mrb[0].mxu0
      %v466 = vpop.f32.mrb[0].mxu0
      %v467 = vadd.f32 %v351, %v466
      %v468 = vpop.f32.mrb[0].mxu0
      %469 = vmatprep.mubr.bf16.mxu0 0
      %470 = vmatmul.mubr.bf16.gmra.mrb[0].mxu0 %v404
      %v471 = vpop.f32.mrb[0].mxu0
      %v472 = vadd.f32 %v352, %v471
      %v473 = vpop.f32.mrb[0].mxu0
      %v474 = vpop.f32.mrb[0].mxu0
      %v475 = vadd.f32 %v353, %v474
      %v476 = vpop.f32.mrb[0].mxu0
      %477 = vmatprep.mubr.bf16.mxu0 0
      %478 = vmatmul.mubr.bf16.gmra.mrb[0].mxu0 %v407
      %v479 = vpop.f32.mrb[0].mxu0
      %v480 = vadd.f32 %v354, %v479
      %v481 = vpop.f32.mrb[0].mxu0
      %v482 = vpop.f32.mrb[0].mxu0
      %v483 = vadd.f32 %v355, %v482
      %v484 = vpop.f32.mrb[0].mxu0
      %485 = vdwg.mxu0
      %vm486 = vcmask 523264
      %v487 = vsel %vm486, %v456, -inf
      %488 = vmax.xlane.f32.xlu0 %v487
      %v489 = vpop.xlane.xlu0 %488
      %v490 = vsel %vm486, %v459, -inf
      %491 = vmax.xlane.f32.xlu0 %v490
      %v492 = vpop.xlane.xlu0 %491
      %v493 = vsel %vm486, %v464, -inf
      %494 = vmax.xlane.f32.xlu0 %v493
      %v495 = vpop.xlane.xlu0 %494
      %v496 = vsel %vm486, %v467, -inf
      %497 = vmax.xlane.f32.xlu0 %v496
      %v498 = vpop.xlane.xlu0 %497
      %v499 = vsel %vm486, %v472, -inf
      %500 = vmax.xlane.f32.xlu0 %v499
      %v501 = vpop.xlane.xlu0 %500
      %v502 = vsel %vm486, %v475, -inf
      %503 = vmax.xlane.f32.xlu0 %v502
      %v504 = vpop.xlane.xlu0 %503
      %v505 = vsel %vm486, %v480, -inf
      %506 = vmax.xlane.f32.xlu0 %v505
      %v507 = vpop.xlane.xlu0 %506
      %v508 = vsel %vm486, %v483, -inf
      %509 = vmax.xlane.f32.xlu0 %v508
      %v510 = vpop.xlane.xlu0 %509
      %v511 = vsub.f32 %v456, %v489
      %v512 = vsub.f32 %v459, %v492
      %v513 = vsub.f32 %v464, %v495
      %v514 = vsub.f32 %v467, %v498
      %v515 = vsub.f32 %v472, %v501
      %v516 = vsub.f32 %v475, %v504
      %v517 = vsub.f32 %v480, %v507
      %v518 = vsub.f32 %v483, %v510
      %v519 = vmul.f32 %v511, 1.442695
      %v520 = vpow.pop %v519
      %v521 = vmul.f32 %v512, 1.442695
      %v522 = vpow.pop %v521
      %v523 = vmul.f32 %v513, 1.442695
      %v524 = vpow.pop %v523
      %v525 = vmul.f32 %v514, 1.442695
      %v526 = vpow.pop %v525
      %v527 = vmul.f32 %v515, 1.442695
      %v528 = vpow.pop %v527
      %v529 = vmul.f32 %v516, 1.442695
      %v530 = vpow.pop %v529
      %v531 = vmul.f32 %v517, 1.442695
      %v532 = vpow.pop %v531
      %v533 = vmul.f32 %v518, 1.442695
      %v534 = vpow.pop %v533
      %v535 = vsel %vm486, %v520, 0.0
      %536 = vadd.xlane.f32.xlu0 %v535
      %v537 = vpop.xlane.xlu0 %536
      %v538 = vsel %vm486, %v522, 0.0
      %539 = vadd.xlane.f32.xlu0 %v538
      %v540 = vpop.xlane.xlu0 %539
      %v541 = vsel %vm486, %v524, 0.0
      %542 = vadd.xlane.f32.xlu0 %v541
      %v543 = vpop.xlane.xlu0 %542
      %v544 = vsel %vm486, %v526, 0.0
      %545 = vadd.xlane.f32.xlu0 %v544
      %v546 = vpop.xlane.xlu0 %545
      %v547 = vsel %vm486, %v528, 0.0
      %548 = vadd.xlane.f32.xlu0 %v547
      %v549 = vpop.xlane.xlu0 %548
      %v550 = vsel %vm486, %v530, 0.0
      %551 = vadd.xlane.f32.xlu0 %v550
      %v552 = vpop.xlane.xlu0 %551
      %v553 = vsel %vm486, %v532, 0.0
      %554 = vadd.xlane.f32.xlu0 %v553
      %v555 = vpop.xlane.xlu0 %554
      %v556 = vsel %vm486, %v534, 0.0
      %557 = vadd.xlane.f32.xlu0 %v556
      %v558 = vpop.xlane.xlu0 %557
      %v559 = vrcp.pop %v537
      %v560 = vrcp.pop %v540
      %v561 = vrcp.pop %v543
      %v562 = vrcp.pop %v546
      %v563 = vrcp.pop %v549
      %v564 = vrcp.pop %v552
      %v565 = vrcp.pop %v555
      %v566 = vrcp.pop %v558
      %v567 = vmul.f32 %v520, %v559
      %v568 = vmul.f32 %v522, %v560
      %v569 = vmul.f32 %v524, %v561
      %v570 = vmul.f32 %v526, %v562
      %v571 = vmul.f32 %v528, %v563
      %v572 = vmul.f32 %v530, %v564
      %v573 = vmul.f32 %v532, %v565
      %v574 = vmul.f32 %v534, %v566
      %v575 = vpack.c.bf16 %v568, %v567
      %v576 = vpack.c.bf16 %v570, %v569
      %v577 = vpack.c.bf16 %v572, %v571
      %v578 = vpack.c.bf16 %v574, %v573
      %v587 = vunpack.c.l.b16 %v332
      %v588 = vunpack.c.l.b16 %v333
      %v589 = vunpack.c.l.b16 %v334
      %v590 = vunpack.c.l.b16 %v335
      %v591 = vunpack.c.l.b16 %v336
      %v592 = vunpack.c.l.b16 %v337
      %v593 = vunpack.c.l.b16 %v338
      %v594 = vunpack.c.l.b16 %v339
      %v595 = vpack.c.b16 %v588, %v587
      %v596 = vpack.c.b16 %v590, %v589
      %v597 = vpack.c.b16 %v592, %v591
      %v598 = vpack.c.b16 %v594, %v593
      %v604 = vsel %vm486, %v575, 0
      %v607 = vsel %vm486, %v576, 0
      %v610 = vsel %vm486, %v577, 0
      %v613 = vsel %vm486, %v578, 0
      %615 = vmatprep.subr.bf16.mxu0 0
      %616 = vmatpush1.bf16.msra.mxu0 %v595
      %617 = vmatprep.subr.bf16.mxu0 0
      %618 = vmatpush1.bf16.msra.mxu0 %v596
      %619 = vmatprep.subr.bf16.mxu0 0
      %620 = vmatpush1.bf16.msra.mxu0 %v597
      %621 = vmatprep.subr.bf16.mxu0 0
      %622 = vmatpush1.bf16.msra.mxu0 %v598
      %623 = vmatprep.subr.bf16.mxu0 0
      %624 = vmatpush1.bf16.msra.mxu0 0
      %625 = vmatprep.subr.bf16.mxu0 0
      %626 = vmatpush1.bf16.msra.mxu0 0
      %627 = vmatprep.subr.bf16.mxu0 0
      %628 = vmatpush1.bf16.msra.mxu0 0
      %629 = vmatprep.subr.bf16.mxu0 0
      %630 = vmatpush1.bf16.msra.mxu0 0
      %631 = vmatprep.subr.bf16.mxu0 0
      %632 = vmatpush1.bf16.msra.mxu0 0
      %633 = vmatprep.subr.bf16.mxu0 0
      %634 = vmatpush1.bf16.msra.mxu0 0
      %635 = vmatprep.subr.bf16.mxu0 0
      %636 = vmatpush1.bf16.msra.mxu0 0
      %637 = vmatprep.subr.bf16.mxu0 0
      %638 = vmatpush1.bf16.msra.mxu0 0
      %639 = vmatprep.subr.bf16.mxu0 0
      %640 = vmatpush1.bf16.msra.mxu0 0
      %641 = vmatprep.subr.bf16.mxu0 0
      %642 = vmatpush1.bf16.msra.mxu0 0
      %643 = vmatprep.subr.bf16.mxu0 0
      %644 = vmatpush1.bf16.msra.mxu0 0
      %645 = vmatprep.subr.bf16.mxu0 0
      %646 = vmatpush1.bf16.msra.mxu0 0
      %647 = vmatprep.mubr.bf16.mxu0 0
      %648 = vmatmul.mubr.bf16.gmra.mrb[0].mxu0 %v604
      %v649 = vpop.f32.mrb[0].mxu0
      %v650 = vadd.f32 0.0, %v649
      %v651 = vpop.f32.mrb[0].mxu0
      %v652 = vpop.f32.mrb[0].mxu0
      %v653 = vadd.f32 0.0, %v652
      %v654 = vpop.f32.mrb[0].mxu0
      %655 = vmatprep.mubr.bf16.mxu0 0
      %656 = vmatmul.mubr.bf16.gmra.mrb[0].mxu0 %v607
      %v657 = vpop.f32.mrb[0].mxu0
      %v658 = vadd.f32 0.0, %v657
      %v659 = vpop.f32.mrb[0].mxu0
      %v660 = vpop.f32.mrb[0].mxu0
      %v661 = vadd.f32 0.0, %v660
      %v662 = vpop.f32.mrb[0].mxu0
      %663 = vmatprep.mubr.bf16.mxu0 0
      %664 = vmatmul.mubr.bf16.gmra.mrb[0].mxu0 %v610
      %v665 = vpop.f32.mrb[0].mxu0
      %v666 = vadd.f32 0.0, %v665
      %v667 = vpop.f32.mrb[0].mxu0
      %v668 = vpop.f32.mrb[0].mxu0
      %v669 = vadd.f32 0.0, %v668
      %v670 = vpop.f32.mrb[0].mxu0
      %671 = vmatprep.mubr.bf16.mxu0 0
      %672 = vmatmul.mubr.bf16.gmra.mrb[0].mxu0 %v613
      %v673 = vpop.f32.mrb[0].mxu0
      %v674 = vadd.f32 0.0, %v673
      %v675 = vpop.f32.mrb[0].mxu0
      %v676 = vpop.f32.mrb[0].mxu0
      %v677 = vadd.f32 0.0, %v676
      %v678 = vpop.f32.mrb[0].mxu0
      %679 = vdwg.mxu0
      %v680 = vpack.c.bf16 %v653, %v650
      %v681 = vpack.c.bf16 %v661, %v658
      %v682 = vpack.c.bf16 %v669, %v666
      %v683 = vpack.c.bf16 %v677, %v674
      %v688 = vunpack.c.l.b16 %v680
      %v689 = vunpack.c.h.b16 %v680
      %v690 = vunpack.c.l.b16 %v681
      %v691 = vunpack.c.h.b16 %v681
      %v692 = vunpack.c.l.b16 %v682
      %v693 = vunpack.c.h.b16 %v682
      %v694 = vunpack.c.l.b16 %v683
      %v695 = vunpack.c.h.b16 %v683
      %v696 = vpack.c.b16 %v688, %v688
      %v697 = vpack.c.b16 %v689, %v689
      %v698 = vpack.c.b16 %v690, %v690
      %v699 = vpack.c.b16 %v691, %v691
      %v700 = vpack.c.b16 %v692, %v692
      %v701 = vpack.c.b16 %v693, %v693
      %v702 = vpack.c.b16 %v694, %v694
      %v703 = vpack.c.b16 %v695, %v695
      %vm712 = vcmask 60416
      %713 = vst.msk [vmem:[%s306] sm:$0xf] %vm712, %v696
      %714 = vst.msk [vmem:[%s306 + $0x4] sm:$0xf] %vm712, %v697
      %715 = vst.msk [vmem:[%s306 + $0x8] sm:$0xf] %vm712, %v698
      %716 = vst.msk [vmem:[%s306 + $0xc] sm:$0xf] %vm712, %v699
      %717 = vst.msk [vmem:[%s306 + $0x10] sm:$0xf] %vm712, %v700
      %718 = vst.msk [vmem:[%s306 + $0x14] sm:$0xf] %vm712, %v701
      %719 = vst.msk [vmem:[%s306 + $0x18] sm:$0xf] %vm712, %v702
      %720 = vst.msk [vmem:[%s306 + $0x1c] sm:$0xf] %vm712, %v703
      %v721 = vld [vmem:[%s279] sm:$0xf]
      %v722 = vld [vmem:[%s279 + $0x4] sm:$0xf]
      %v723 = vld [vmem:[%s279 + $0x8] sm:$0xf]
      %v724 = vld [vmem:[%s279 + $0xc] sm:$0xf]
      %v725 = vld [vmem:[%s279 + $0x10] sm:$0xf]
      %v726 = vld [vmem:[%s279 + $0x14] sm:$0xf]
      %v727 = vld [vmem:[%s279 + $0x18] sm:$0xf]
      %v728 = vld [vmem:[%s279 + $0x1c] sm:$0xf]
      %v729 = vld [vmem:[%s321] sm:$0xf]
      %v730 = vld [vmem:[%s321 + $0x4] sm:$0xf]
      %v731 = vld [vmem:[%s321 + $0x8] sm:$0xf]
      %v732 = vld [vmem:[%s321 + $0xc] sm:$0xf]
      %v733 = vld [vmem:[%s321 + $0x10] sm:$0xf]
      %v734 = vld [vmem:[%s321 + $0x14] sm:$0xf]
      %v735 = vld [vmem:[%s321 + $0x18] sm:$0xf]
      %v736 = vld [vmem:[%s321 + $0x1c] sm:$0xf]
      %v737 = vld [vmem:[%s331] sm:$0xf]
      %v738 = vld [vmem:[%s331 + $0x4] sm:$0xf]
      %v739 = vld [vmem:[%s331 + $0x8] sm:$0xf]
      %v740 = vld [vmem:[%s331 + $0xc] sm:$0xf]
      %v741 = vld [vmem:[%s331 + $0x10] sm:$0xf]
      %v742 = vld [vmem:[%s331 + $0x14] sm:$0xf]
      %v743 = vld [vmem:[%s331 + $0x18] sm:$0xf]
      %v744 = vld [vmem:[%s331 + $0x1c] sm:$0xf]
      %s745 = scalar_lea.vmem %s296, 32
      %v746 = vld [vmem:[%s745] sm:$0xf]
      %v747 = vld [vmem:[%s745 + $0x4] sm:$0xf]
      %v748 = vld [vmem:[%s745 + $0x8] sm:$0xf]
      %v749 = vld [vmem:[%s745 + $0xc] sm:$0xf]
      %v750 = vld [vmem:[%s745 + $0x10] sm:$0xf]
      %v751 = vld [vmem:[%s745 + $0x14] sm:$0xf]
      %v752 = vld [vmem:[%s745 + $0x18] sm:$0xf]
      %v753 = vld [vmem:[%s745 + $0x1c] sm:$0xf]
      %v754 = vunpack.c.l.bf16 %v746
      %v755 = vunpack.c.l.bf16 %v747
      %v756 = vunpack.c.l.bf16 %v748
      %v757 = vunpack.c.l.bf16 %v749
      %v758 = vunpack.c.l.bf16 %v750
      %v759 = vunpack.c.l.bf16 %v751
      %v760 = vunpack.c.l.bf16 %v752
      %v761 = vunpack.c.l.bf16 %v753
      %v770 = vunpack.c.l.b16 %v721
      %v771 = vunpack.c.l.b16 %v722
      %v772 = vunpack.c.l.b16 %v723
      %v773 = vunpack.c.l.b16 %v724
      %v774 = vunpack.c.l.b16 %v725
      %v775 = vunpack.c.l.b16 %v726
      %v776 = vunpack.c.l.b16 %v727
      %v777 = vunpack.c.l.b16 %v728
      %v778 = vpack.c.b16 %v771, %v770
      %v779 = vpack.c.b16 %v773, %v772
      %v780 = vpack.c.b16 %v775, %v774
      %v781 = vpack.c.b16 %v777, %v776
      %782 = vrot.lane.b32.xlu0 %v778, 120
      %v783 = vpop.permute.xlu0 %782
      %784 = vrot.lane.b32.xlu0 %v779, 120
      %v785 = vpop.permute.xlu0 %784
      %786 = vrot.lane.b32.xlu0 %v780, 120
      %v787 = vpop.permute.xlu0 %786
      %788 = vrot.lane.b32.xlu0 %v781, 120
      %v789 = vpop.permute.xlu0 %788
      %v798 = vunpack.c.l.b16 %v729
      %v799 = vunpack.c.l.b16 %v730
      %v800 = vunpack.c.l.b16 %v731
      %v801 = vunpack.c.l.b16 %v732
      %v802 = vunpack.c.l.b16 %v733
      %v803 = vunpack.c.l.b16 %v734
      %v804 = vunpack.c.l.b16 %v735
      %v805 = vunpack.c.l.b16 %v736
      %v806 = vpack.c.b16 %v799, %v798
      %v807 = vpack.c.b16 %v801, %v800
      %v808 = vpack.c.b16 %v803, %v802
      %v809 = vpack.c.b16 %v805, %v804
      %810 = vrot.lane.b32.xlu0 %v806, 120
      %v811 = vpop.permute.xlu0 %810
      %812 = vrot.lane.b32.xlu0 %v807, 120
      %v813 = vpop.permute.xlu0 %812
      %814 = vrot.lane.b32.xlu0 %v808, 120
      %v815 = vpop.permute.xlu0 %814
      %816 = vrot.lane.b32.xlu0 %v809, 120
      %v817 = vpop.permute.xlu0 %816
      %v819 = vsel %vm396, %v783, 0
      %v822 = vsel %vm396, %v785, 0
      %v825 = vsel %vm396, %v787, 0
      %v828 = vsel %vm396, %v789, 0
      %v831 = vsel %vm396, %v811, 0
      %v834 = vsel %vm396, %v813, 0
      %v837 = vsel %vm396, %v815, 0
      %v840 = vsel %vm396, %v817, 0
      %842 = vmatprep.subr.bf16.mxu0 0
      %843 = vmatpush1.bf16.xpose.msra.mxu0 %v831
      %844 = vmatprep.subr.bf16.mxu0 0
      %845 = vmatpush1.bf16.xpose.msra.mxu0 %v834
      %846 = vmatprep.subr.bf16.mxu0 0
      %847 = vmatpush1.bf16.xpose.msra.mxu0 %v837
      %848 = vmatprep.subr.bf16.mxu0 0
      %849 = vmatpush1.bf16.xpose.msra.mxu0 %v840
      %850 = vmatprep.subr.bf16.mxu0 0
      %851 = vmatpush1.bf16.xpose.msra.mxu0 0
      %852 = vmatprep.subr.bf16.mxu0 0
      %853 = vmatpush1.bf16.xpose.msra.mxu0 0
      %854 = vmatprep.subr.bf16.mxu0 0
      %855 = vmatpush1.bf16.xpose.msra.mxu0 0
      %856 = vmatprep.subr.bf16.mxu0 0
      %857 = vmatpush1.bf16.xpose.msra.mxu0 0
      %858 = vmatprep.subr.bf16.mxu0 0
      %859 = vmatpush1.bf16.xpose.msra.mxu0 0
      %860 = vmatprep.subr.bf16.mxu0 0
      %861 = vmatpush1.bf16.xpose.msra.mxu0 0
      %862 = vmatprep.subr.bf16.mxu0 0
      %863 = vmatpush1.bf16.xpose.msra.mxu0 0
      %864 = vmatprep.subr.bf16.mxu0 0
      %865 = vmatpush1.bf16.xpose.msra.mxu0 0
      %866 = vmatprep.subr.bf16.mxu0 0
      %867 = vmatpush1.bf16.xpose.msra.mxu0 0
      %868 = vmatprep.subr.bf16.mxu0 0
      %869 = vmatpush1.bf16.xpose.msra.mxu0 0
      %870 = vmatprep.subr.bf16.mxu0 0
      %871 = vmatpush1.bf16.xpose.msra.mxu0 0
      %872 = vmatprep.subr.bf16.mxu0 0
      %873 = vmatpush1.bf16.xpose.msra.mxu0 0
      %874 = vmatprep.mubr.bf16.mxu0 0
      %875 = vmatmul.mubr.bf16.gmra.mrb[0].mxu0 %v819
      %v876 = vpop.f32.mrb[0].mxu0
      %v877 = vadd.f32 %v754, %v876
      %v878 = vpop.f32.mrb[0].mxu0
      %v879 = vpop.f32.mrb[0].mxu0
      %v880 = vadd.f32 %v755, %v879
      %v881 = vpop.f32.mrb[0].mxu0
      %882 = vmatprep.mubr.bf16.mxu0 0
      %883 = vmatmul.mubr.bf16.gmra.mrb[0].mxu0 %v822
      %v884 = vpop.f32.mrb[0].mxu0
      %v885 = vadd.f32 %v756, %v884
      %v886 = vpop.f32.mrb[0].mxu0
      %v887 = vpop.f32.mrb[0].mxu0
      %v888 = vadd.f32 %v757, %v887
      %v889 = vpop.f32.mrb[0].mxu0
      %890 = vmatprep.mubr.bf16.mxu0 0
      %891 = vmatmul.mubr.bf16.gmra.mrb[0].mxu0 %v825
      %v892 = vpop.f32.mrb[0].mxu0
      %v893 = vadd.f32 %v758, %v892
      %v894 = vpop.f32.mrb[0].mxu0
      %v895 = vpop.f32.mrb[0].mxu0
      %v896 = vadd.f32 %v759, %v895
      %v897 = vpop.f32.mrb[0].mxu0
      %898 = vmatprep.mubr.bf16.mxu0 0
      %899 = vmatmul.mubr.bf16.gmra.mrb[0].mxu0 %v828
      %v900 = vpop.f32.mrb[0].mxu0
      %v901 = vadd.f32 %v760, %v900
      %v902 = vpop.f32.mrb[0].mxu0
      %v903 = vpop.f32.mrb[0].mxu0
      %v904 = vadd.f32 %v761, %v903
      %v905 = vpop.f32.mrb[0].mxu0
      %906 = vdwg.mxu0
      %v907 = vsel %vm486, %v877, -inf
      %908 = vmax.xlane.f32.xlu0 %v907
      %v909 = vpop.xlane.xlu0 %908
      %v910 = vsel %vm486, %v880, -inf
      %911 = vmax.xlane.f32.xlu0 %v910
      %v912 = vpop.xlane.xlu0 %911
      %v913 = vsel %vm486, %v885, -inf
      %914 = vmax.xlane.f32.xlu0 %v913
      %v915 = vpop.xlane.xlu0 %914
      %v916 = vsel %vm486, %v888, -inf
      %917 = vmax.xlane.f32.xlu0 %v916
      %v918 = vpop.xlane.xlu0 %917
      %v919 = vsel %vm486, %v893, -inf
      %920 = vmax.xlane.f32.xlu0 %v919
      %v921 = vpop.xlane.xlu0 %920
      %v922 = vsel %vm486, %v896, -inf
      %923 = vmax.xlane.f32.xlu0 %v922
      %v924 = vpop.xlane.xlu0 %923
      %v925 = vsel %vm486, %v901, -inf
      %926 = vmax.xlane.f32.xlu0 %v925
      %v927 = vpop.xlane.xlu0 %926
      %v928 = vsel %vm486, %v904, -inf
      %929 = vmax.xlane.f32.xlu0 %v928
      %v930 = vpop.xlane.xlu0 %929
      %v931 = vsub.f32 %v877, %v909
      %v932 = vsub.f32 %v880, %v912
      %v933 = vsub.f32 %v885, %v915
      %v934 = vsub.f32 %v888, %v918
      %v935 = vsub.f32 %v893, %v921
      %v936 = vsub.f32 %v896, %v924
      %v937 = vsub.f32 %v901, %v927
      %v938 = vsub.f32 %v904, %v930
      %v939 = vmul.f32 %v931, 1.442695
      %v940 = vpow.pop %v939
      %v941 = vmul.f32 %v932, 1.442695
      %v942 = vpow.pop %v941
      %v943 = vmul.f32 %v933, 1.442695
      %v944 = vpow.pop %v943
      %v945 = vmul.f32 %v934, 1.442695
      %v946 = vpow.pop %v945
      %v947 = vmul.f32 %v935, 1.442695
      %v948 = vpow.pop %v947
      %v949 = vmul.f32 %v936, 1.442695
      %v950 = vpow.pop %v949
      %v951 = vmul.f32 %v937, 1.442695
      %v952 = vpow.pop %v951
      %v953 = vmul.f32 %v938, 1.442695
      %v954 = vpow.pop %v953
      %v955 = vsel %vm486, %v940, 0.0
      %956 = vadd.xlane.f32.xlu0 %v955
      %v957 = vpop.xlane.xlu0 %956
      %v958 = vsel %vm486, %v942, 0.0
      %959 = vadd.xlane.f32.xlu0 %v958
      %v960 = vpop.xlane.xlu0 %959
      %v961 = vsel %vm486, %v944, 0.0
      %962 = vadd.xlane.f32.xlu0 %v961
      %v963 = vpop.xlane.xlu0 %962
      %v964 = vsel %vm486, %v946, 0.0
      %965 = vadd.xlane.f32.xlu0 %v964
      %v966 = vpop.xlane.xlu0 %965
      %v967 = vsel %vm486, %v948, 0.0
      %968 = vadd.xlane.f32.xlu0 %v967
      %v969 = vpop.xlane.xlu0 %968
      %v970 = vsel %vm486, %v950, 0.0
      %971 = vadd.xlane.f32.xlu0 %v970
      %v972 = vpop.xlane.xlu0 %971
      %v973 = vsel %vm486, %v952, 0.0
      %974 = vadd.xlane.f32.xlu0 %v973
      %v975 = vpop.xlane.xlu0 %974
      %v976 = vsel %vm486, %v954, 0.0
      %977 = vadd.xlane.f32.xlu0 %v976
      %v978 = vpop.xlane.xlu0 %977
      %v979 = vrcp.pop %v957
      %v980 = vrcp.pop %v960
      %v981 = vrcp.pop %v963
      %v982 = vrcp.pop %v966
      %v983 = vrcp.pop %v969
      %v984 = vrcp.pop %v972
      %v985 = vrcp.pop %v975
      %v986 = vrcp.pop %v978
      %v987 = vmul.f32 %v940, %v979
      %v988 = vmul.f32 %v942, %v980
      %v989 = vmul.f32 %v944, %v981
      %v990 = vmul.f32 %v946, %v982
      %v991 = vmul.f32 %v948, %v983
      %v992 = vmul.f32 %v950, %v984
      %v993 = vmul.f32 %v952, %v985
      %v994 = vmul.f32 %v954, %v986
      %v995 = vpack.c.bf16 %v988, %v987
      %v996 = vpack.c.bf16 %v990, %v989
      %v997 = vpack.c.bf16 %v992, %v991
      %v998 = vpack.c.bf16 %v994, %v993
      %v1007 = vunpack.c.l.b16 %v737
      %v1008 = vunpack.c.l.b16 %v738
      %v1009 = vunpack.c.l.b16 %v739
      %v1010 = vunpack.c.l.b16 %v740
      %v1011 = vunpack.c.l.b16 %v741
      %v1012 = vunpack.c.l.b16 %v742
      %v1013 = vunpack.c.l.b16 %v743
      %v1014 = vunpack.c.l.b16 %v744
      %v1015 = vpack.c.b16 %v1008, %v1007
      %v1016 = vpack.c.b16 %v1010, %v1009
      %v1017 = vpack.c.b16 %v1012, %v1011
      %v1018 = vpack.c.b16 %v1014, %v1013
      %1019 = vrot.lane.b32.xlu0 %v1015, 120
      %v1020 = vpop.permute.xlu0 %1019
      %1021 = vrot.lane.b32.xlu0 %v1016, 120
      %v1022 = vpop.permute.xlu0 %1021
      %1023 = vrot.lane.b32.xlu0 %v1017, 120
      %v1024 = vpop.permute.xlu0 %1023
      %1025 = vrot.lane.b32.xlu0 %v1018, 120
      %v1026 = vpop.permute.xlu0 %1025
      %v1032 = vsel %vm486, %v995, 0
      %v1035 = vsel %vm486, %v996, 0
      %v1038 = vsel %vm486, %v997, 0
      %v1041 = vsel %vm486, %v998, 0
      %1043 = vmatprep.subr.bf16.mxu0 0
      %1044 = vmatpush1.bf16.msra.mxu0 %v1020
      %1045 = vmatprep.subr.bf16.mxu0 0
      %1046 = vmatpush1.bf16.msra.mxu0 %v1022
      %1047 = vmatprep.subr.bf16.mxu0 0
      %1048 = vmatpush1.bf16.msra.mxu0 %v1024
      %1049 = vmatprep.subr.bf16.mxu0 0
      %1050 = vmatpush1.bf16.msra.mxu0 %v1026
      %1051 = vmatprep.subr.bf16.mxu0 0
      %1052 = vmatpush1.bf16.msra.mxu0 0
      %1053 = vmatprep.subr.bf16.mxu0 0
      %1054 = vmatpush1.bf16.msra.mxu0 0
      %1055 = vmatprep.subr.bf16.mxu0 0
      %1056 = vmatpush1.bf16.msra.mxu0 0
      %1057 = vmatprep.subr.bf16.mxu0 0
      %1058 = vmatpush1.bf16.msra.mxu0 0
      %1059 = vmatprep.subr.bf16.mxu0 0
      %1060 = vmatpush1.bf16.msra.mxu0 0
      %1061 = vmatprep.subr.bf16.mxu0 0
      %1062 = vmatpush1.bf16.msra.mxu0 0
      %1063 = vmatprep.subr.bf16.mxu0 0
      %1064 = vmatpush1.bf16.msra.mxu0 0
      %1065 = vmatprep.subr.bf16.mxu0 0
      %1066 = vmatpush1.bf16.msra.mxu0 0
      %1067 = vmatprep.subr.bf16.mxu0 0
      %1068 = vmatpush1.bf16.msra.mxu0 0
      %1069 = vmatprep.subr.bf16.mxu0 0
      %1070 = vmatpush1.bf16.msra.mxu0 0
      %1071 = vmatprep.subr.bf16.mxu0 0
      %1072 = vmatpush1.bf16.msra.mxu0 0
      %1073 = vmatprep.subr.bf16.mxu0 0
      %1074 = vmatpush1.bf16.msra.mxu0 0
      %1075 = vmatprep.mubr.bf16.mxu0 0
      %1076 = vmatmul.mubr.bf16.gmra.mrb[0].mxu0 %v1032
      %v1077 = vpop.f32.mrb[0].mxu0
      %v1078 = vadd.f32 0.0, %v1077
      %v1079 = vpop.f32.mrb[0].mxu0
      %v1080 = vpop.f32.mrb[0].mxu0
      %v1081 = vadd.f32 0.0, %v1080
      %v1082 = vpop.f32.mrb[0].mxu0
      %1083 = vmatprep.mubr.bf16.mxu0 0
      %1084 = vmatmul.mubr.bf16.gmra.mrb[0].mxu0 %v1035
      %v1085 = vpop.f32.mrb[0].mxu0
      %v1086 = vadd.f32 0.0, %v1085
      %v1087 = vpop.f32.mrb[0].mxu0
      %v1088 = vpop.f32.mrb[0].mxu0
      %v1089 = vadd.f32 0.0, %v1088
      %v1090 = vpop.f32.mrb[0].mxu0
      %1091 = vmatprep.mubr.bf16.mxu0 0
      %1092 = vmatmul.mubr.bf16.gmra.mrb[0].mxu0 %v1038
      %v1093 = vpop.f32.mrb[0].mxu0
      %v1094 = vadd.f32 0.0, %v1093
      %v1095 = vpop.f32.mrb[0].mxu0
      %v1096 = vpop.f32.mrb[0].mxu0
      %v1097 = vadd.f32 0.0, %v1096
      %v1098 = vpop.f32.mrb[0].mxu0
      %1099 = vmatprep.mubr.bf16.mxu0 0
      %1100 = vmatmul.mubr.bf16.gmra.mrb[0].mxu0 %v1041
      %v1101 = vpop.f32.mrb[0].mxu0
      %v1102 = vadd.f32 0.0, %v1101
      %v1103 = vpop.f32.mrb[0].mxu0
      %v1104 = vpop.f32.mrb[0].mxu0
      %v1105 = vadd.f32 0.0, %v1104
      %v1106 = vpop.f32.mrb[0].mxu0
      %1107 = vdwg.mxu0
      %v1108 = vpack.c.bf16 %v1081, %v1078
      %v1109 = vpack.c.bf16 %v1089, %v1086
      %v1110 = vpack.c.bf16 %v1097, %v1094
      %v1111 = vpack.c.bf16 %v1105, %v1102
      %v1116 = vunpack.c.l.b16 %v1108
      %v1117 = vunpack.c.h.b16 %v1108
      %v1118 = vunpack.c.l.b16 %v1109
      %v1119 = vunpack.c.h.b16 %v1109
      %v1120 = vunpack.c.l.b16 %v1110
      %v1121 = vunpack.c.h.b16 %v1110
      %v1122 = vunpack.c.l.b16 %v1111
      %v1123 = vunpack.c.h.b16 %v1111
      %v1124 = vpack.c.b16 %v1116, %v1116
      %v1125 = vpack.c.b16 %v1117, %v1117
      %v1126 = vpack.c.b16 %v1118, %v1118
      %v1127 = vpack.c.b16 %v1119, %v1119
      %v1128 = vpack.c.b16 %v1120, %v1120
      %v1129 = vpack.c.b16 %v1121, %v1121
      %v1130 = vpack.c.b16 %v1122, %v1122
      %v1131 = vpack.c.b16 %v1123, %v1123
      %1132 = vrot.lane.b32.xlu0 %v1124, 8
      %v1133 = vpop.permute.xlu0 %1132
      %1134 = vrot.lane.b32.xlu0 %v1125, 8
      %v1135 = vpop.permute.xlu0 %1134
      %1136 = vrot.lane.b32.xlu0 %v1126, 8
      %v1137 = vpop.permute.xlu0 %1136
      %1138 = vrot.lane.b32.xlu0 %v1127, 8
      %v1139 = vpop.permute.xlu0 %1138
      %1140 = vrot.lane.b32.xlu0 %v1128, 8
      %v1141 = vpop.permute.xlu0 %1140
      %1142 = vrot.lane.b32.xlu0 %v1129, 8
      %v1143 = vpop.permute.xlu0 %1142
      %1144 = vrot.lane.b32.xlu0 %v1130, 8
      %v1145 = vpop.permute.xlu0 %1144
      %1146 = vrot.lane.b32.xlu0 %v1131, 8
      %v1147 = vpop.permute.xlu0 %1146
      %vm1156 = vcmask 126016
      %1157 = vst.msk [vmem:[%s306] sm:$0xf] %vm1156, %v1133
      %1158 = vst.msk [vmem:[%s306 + $0x4] sm:$0xf] %vm1156, %v1135
      %1159 = vst.msk [vmem:[%s306 + $0x8] sm:$0xf] %vm1156, %v1137
      %1160 = vst.msk [vmem:[%s306 + $0xc] sm:$0xf] %vm1156, %v1139
      %1161 = vst.msk [vmem:[%s306 + $0x10] sm:$0xf] %vm1156, %v1141
      %1162 = vst.msk [vmem:[%s306 + $0x14] sm:$0xf] %vm1156, %v1143
      %1163 = vst.msk [vmem:[%s306 + $0x18] sm:$0xf] %vm1156, %v1145
      %1164 = vst.msk [vmem:[%s306 + $0x1c] sm:$0xf] %vm1156, %v1147
      %v1165 = vld [vmem:[%s279] sm:$0xf]
      %v1166 = vld [vmem:[%s279 + $0x4] sm:$0xf]
      %v1167 = vld [vmem:[%s279 + $0x8] sm:$0xf]
      %v1168 = vld [vmem:[%s279 + $0xc] sm:$0xf]
      %v1169 = vld [vmem:[%s279 + $0x10] sm:$0xf]
      %v1170 = vld [vmem:[%s279 + $0x14] sm:$0xf]
      %v1171 = vld [vmem:[%s279 + $0x18] sm:$0xf]
      %v1172 = vld [vmem:[%s279 + $0x1c] sm:$0xf]
      %v1173 = vld [vmem:[%s321] sm:$0xf]
      %v1174 = vld [vmem:[%s321 + $0x4] sm:$0xf]
      %v1175 = vld [vmem:[%s321 + $0x8] sm:$0xf]
      %v1176 = vld [vmem:[%s321 + $0xc] sm:$0xf]
      %v1177 = vld [vmem:[%s321 + $0x10] sm:$0xf]
      %v1178 = vld [vmem:[%s321 + $0x14] sm:$0xf]
      %v1179 = vld [vmem:[%s321 + $0x18] sm:$0xf]
      %v1180 = vld [vmem:[%s321 + $0x1c] sm:$0xf]
      %v1181 = vld [vmem:[%s331] sm:$0xf]
      %v1182 = vld [vmem:[%s331 + $0x4] sm:$0xf]
      %v1183 = vld [vmem:[%s331 + $0x8] sm:$0xf]
      %v1184 = vld [vmem:[%s331 + $0xc] sm:$0xf]
      %v1185 = vld [vmem:[%s331 + $0x10] sm:$0xf]
      %v1186 = vld [vmem:[%s331 + $0x14] sm:$0xf]
      %v1187 = vld [vmem:[%s331 + $0x18] sm:$0xf]
      %v1188 = vld [vmem:[%s331 + $0x1c] sm:$0xf]
      %s1189 = scalar_lea.vmem %s296, 64
      %v1190 = vld [vmem:[%s1189] sm:$0xf]
      %v1191 = vld [vmem:[%s1189 + $0x4] sm:$0xf]
      %v1192 = vld [vmem:[%s1189 + $0x8] sm:$0xf]
      %v1193 = vld [vmem:[%s1189 + $0xc] sm:$0xf]
      %v1194 = vld [vmem:[%s1189 + $0x10] sm:$0xf]
      %v1195 = vld [vmem:[%s1189 + $0x14] sm:$0xf]
      %v1196 = vld [vmem:[%s1189 + $0x18] sm:$0xf]
      %v1197 = vld [vmem:[%s1189 + $0x1c] sm:$0xf]
      %v1198 = vunpack.c.l.bf16 %v1190
      %v1199 = vunpack.c.l.bf16 %v1191
      %v1200 = vunpack.c.l.bf16 %v1192
      %v1201 = vunpack.c.l.bf16 %v1193
      %v1202 = vunpack.c.l.bf16 %v1194
      %v1203 = vunpack.c.l.bf16 %v1195
      %v1204 = vunpack.c.l.bf16 %v1196
      %v1205 = vunpack.c.l.bf16 %v1197
      %v1214 = vunpack.c.l.b16 %v1165
      %v1215 = vunpack.c.l.b16 %v1166
      %v1216 = vunpack.c.l.b16 %v1167
      %v1217 = vunpack.c.l.b16 %v1168
      %v1218 = vunpack.c.l.b16 %v1169
      %v1219 = vunpack.c.l.b16 %v1170
      %v1220 = vunpack.c.l.b16 %v1171
      %v1221 = vunpack.c.l.b16 %v1172
      %v1222 = vpack.c.b16 %v1215, %v1214
      %v1223 = vpack.c.b16 %v1217, %v1216
      %v1224 = vpack.c.b16 %v1219, %v1218
      %v1225 = vpack.c.b16 %v1221, %v1220
      %1226 = vrot.lane.b32.xlu0 %v1222, 112
      %v1227 = vpop.permute.xlu0 %1226
      %1228 = vrot.lane.b32.xlu0 %v1223, 112
      %v1229 = vpop.permute.xlu0 %1228
      %1230 = vrot.lane.b32.xlu0 %v1224, 112
      %v1231 = vpop.permute.xlu0 %1230
      %1232 = vrot.lane.b32.xlu0 %v1225, 112
      %v1233 = vpop.permute.xlu0 %1232
      %v1242 = vunpack.c.l.b16 %v1173
      %v1243 = vunpack.c.l.b16 %v1174
      %v1244 = vunpack.c.l.b16 %v1175
      %v1245 = vunpack.c.l.b16 %v1176
      %v1246 = vunpack.c.l.b16 %v1177
      %v1247 = vunpack.c.l.b16 %v1178
      %v1248 = vunpack.c.l.b16 %v1179
      %v1249 = vunpack.c.l.b16 %v1180
      %v1250 = vpack.c.b16 %v1243, %v1242
      %v1251 = vpack.c.b16 %v1245, %v1244
      %v1252 = vpack.c.b16 %v1247, %v1246
      %v1253 = vpack.c.b16 %v1249, %v1248
      %1254 = vrot.lane.b32.xlu0 %v1250, 112
      %v1255 = vpop.permute.xlu0 %1254
      %1256 = vrot.lane.b32.xlu0 %v1251, 112
      %v1257 = vpop.permute.xlu0 %1256
      %1258 = vrot.lane.b32.xlu0 %v1252, 112
      %v1259 = vpop.permute.xlu0 %1258
      %1260 = vrot.lane.b32.xlu0 %v1253, 112
      %v1261 = vpop.permute.xlu0 %1260
      %v1263 = vsel %vm396, %v1227, 0
      %v1266 = vsel %vm396, %v1229, 0
      %v1269 = vsel %vm396, %v1231, 0
      %v1272 = vsel %vm396, %v1233, 0
      %v1275 = vsel %vm396, %v1255, 0
      %v1278 = vsel %vm396, %v1257, 0
      %v1281 = vsel %vm396, %v1259, 0
      %v1284 = vsel %vm396, %v1261, 0
      %1286 = vmatprep.subr.bf16.mxu0 0
      %1287 = vmatpush1.bf16.xpose.msra.mxu0 %v1275
      %1288 = vmatprep.subr.bf16.mxu0 0
      %1289 = vmatpush1.bf16.xpose.msra.mxu0 %v1278
      %1290 = vmatprep.subr.bf16.mxu0 0
      %1291 = vmatpush1.bf16.xpose.msra.mxu0 %v1281
      %1292 = vmatprep.subr.bf16.mxu0 0
      %1293 = vmatpush1.bf16.xpose.msra.mxu0 %v1284
      %1294 = vmatprep.subr.bf16.mxu0 0
      %1295 = vmatpush1.bf16.xpose.msra.mxu0 0
      %1296 = vmatprep.subr.bf16.mxu0 0
      %1297 = vmatpush1.bf16.xpose.msra.mxu0 0
      %1298 = vmatprep.subr.bf16.mxu0 0
      %1299 = vmatpush1.bf16.xpose.msra.mxu0 0
      %1300 = vmatprep.subr.bf16.mxu0 0
      %1301 = vmatpush1.bf16.xpose.msra.mxu0 0
      %1302 = vmatprep.subr.bf16.mxu0 0
      %1303 = vmatpush1.bf16.xpose.msra.mxu0 0
      %1304 = vmatprep.subr.bf16.mxu0 0
      %1305 = vmatpush1.bf16.xpose.msra.mxu0 0
      %1306 = vmatprep.subr.bf16.mxu0 0
      %1307 = vmatpush1.bf16.xpose.msra.mxu0 0
      %1308 = vmatprep.subr.bf16.mxu0 0
      %1309 = vmatpush1.bf16.xpose.msra.mxu0 0
      %1310 = vmatprep.subr.bf16.mxu0 0
      %1311 = vmatpush1.bf16.xpose.msra.mxu0 0
      %1312 = vmatprep.subr.bf16.mxu0 0
      %1313 = vmatpush1.bf16.xpose.msra.mxu0 0
      %1314 = vmatprep.subr.bf16.mxu0 0
      %1315 = vmatpush1.bf16.xpose.msra.mxu0 0
      %1316 = vmatprep.subr.bf16.mxu0 0
      %1317 = vmatpush1.bf16.xpose.msra.mxu0 0
      %1318 = vmatprep.mubr.bf16.mxu0 0
      %1319 = vmatmul.mubr.bf16.gmra.mrb[0].mxu0 %v1263
      %v1320 = vpop.f32.mrb[0].mxu0
      %v1321 = vadd.f32 %v1198, %v1320
      %v1322 = vpop.f32.mrb[0].mxu0
      %v1323 = vpop.f32.mrb[0].mxu0
      %v1324 = vadd.f32 %v1199, %v1323
      %v1325 = vpop.f32.mrb[0].mxu0
      %1326 = vmatprep.mubr.bf16.mxu0 0
      %1327 = vmatmul.mubr.bf16.gmra.mrb[0].mxu0 %v1266
      %v1328 = vpop.f32.mrb[0].mxu0
      %v1329 = vadd.f32 %v1200, %v1328
      %v1330 = vpop.f32.mrb[0].mxu0
      %v1331 = vpop.f32.mrb[0].mxu0
      %v1332 = vadd.f32 %v1201, %v1331
      %v1333 = vpop.f32.mrb[0].mxu0
      %1334 = vmatprep.mubr.bf16.mxu0 0
      %1335 = vmatmul.mubr.bf16.gmra.mrb[0].mxu0 %v1269
      %v1336 = vpop.f32.mrb[0].mxu0
      %v1337 = vadd.f32 %v1202, %v1336
      %v1338 = vpop.f32.mrb[0].mxu0
      %v1339 = vpop.f32.mrb[0].mxu0
      %v1340 = vadd.f32 %v1203, %v1339
      %v1341 = vpop.f32.mrb[0].mxu0
      %1342 = vmatprep.mubr.bf16.mxu0 0
      %1343 = vmatmul.mubr.bf16.gmra.mrb[0].mxu0 %v1272
      %v1344 = vpop.f32.mrb[0].mxu0
      %v1345 = vadd.f32 %v1204, %v1344
      %v1346 = vpop.f32.mrb[0].mxu0
      %v1347 = vpop.f32.mrb[0].mxu0
      %v1348 = vadd.f32 %v1205, %v1347
      %v1349 = vpop.f32.mrb[0].mxu0
      %1350 = vdwg.mxu0
      %v1351 = vsel %vm486, %v1321, -inf
      %1352 = vmax.xlane.f32.xlu0 %v1351
      %v1353 = vpop.xlane.xlu0 %1352
      %v1354 = vsel %vm486, %v1324, -inf
      %1355 = vmax.xlane.f32.xlu0 %v1354
      %v1356 = vpop.xlane.xlu0 %1355
      %v1357 = vsel %vm486, %v1329, -inf
      %1358 = vmax.xlane.f32.xlu0 %v1357
      %v1359 = vpop.xlane.xlu0 %1358
      %v1360 = vsel %vm486, %v1332, -inf
      %1361 = vmax.xlane.f32.xlu0 %v1360
      %v1362 = vpop.xlane.xlu0 %1361
      %v1363 = vsel %vm486, %v1337, -inf
      %1364 = vmax.xlane.f32.xlu0 %v1363
      %v1365 = vpop.xlane.xlu0 %1364
      %v1366 = vsel %vm486, %v1340, -inf
      %1367 = vmax.xlane.f32.xlu0 %v1366
      %v1368 = vpop.xlane.xlu0 %1367
      %v1369 = vsel %vm486, %v1345, -inf
      %1370 = vmax.xlane.f32.xlu0 %v1369
      %v1371 = vpop.xlane.xlu0 %1370
      %v1372 = vsel %vm486, %v1348, -inf
      %1373 = vmax.xlane.f32.xlu0 %v1372
      %v1374 = vpop.xlane.xlu0 %1373
      %v1375 = vsub.f32 %v1321, %v1353
      %v1376 = vsub.f32 %v1324, %v1356
      %v1377 = vsub.f32 %v1329, %v1359
      %v1378 = vsub.f32 %v1332, %v1362
      %v1379 = vsub.f32 %v1337, %v1365
      %v1380 = vsub.f32 %v1340, %v1368
      %v1381 = vsub.f32 %v1345, %v1371
      %v1382 = vsub.f32 %v1348, %v1374
      %v1383 = vmul.f32 %v1375, 1.442695
      %v1384 = vpow.pop %v1383
      %v1385 = vmul.f32 %v1376, 1.442695
      %v1386 = vpow.pop %v1385
      %v1387 = vmul.f32 %v1377, 1.442695
      %v1388 = vpow.pop %v1387
      %v1389 = vmul.f32 %v1378, 1.442695
      %v1390 = vpow.pop %v1389
      %v1391 = vmul.f32 %v1379, 1.442695
      %v1392 = vpow.pop %v1391
      %v1393 = vmul.f32 %v1380, 1.442695
      %v1394 = vpow.pop %v1393
      %v1395 = vmul.f32 %v1381, 1.442695
      %v1396 = vpow.pop %v1395
      %v1397 = vmul.f32 %v1382, 1.442695
      %v1398 = vpow.pop %v1397
      %v1399 = vsel %vm486, %v1384, 0.0
      %1400 = vadd.xlane.f32.xlu0 %v1399
      %v1401 = vpop.xlane.xlu0 %1400
      %v1402 = vsel %vm486, %v1386, 0.0
      %1403 = vadd.xlane.f32.xlu0 %v1402
      %v1404 = vpop.xlane.xlu0 %1403
      %v1405 = vsel %vm486, %v1388, 0.0
      %1406 = vadd.xlane.f32.xlu0 %v1405
      %v1407 = vpop.xlane.xlu0 %1406
      %v1408 = vsel %vm486, %v1390, 0.0
      %1409 = vadd.xlane.f32.xlu0 %v1408
      %v1410 = vpop.xlane.xlu0 %1409
      %v1411 = vsel %vm486, %v1392, 0.0
      %1412 = vadd.xlane.f32.xlu0 %v1411
      %v1413 = vpop.xlane.xlu0 %1412
      %v1414 = vsel %vm486, %v1394, 0.0
      %1415 = vadd.xlane.f32.xlu0 %v1414
      %v1416 = vpop.xlane.xlu0 %1415
      %v1417 = vsel %vm486, %v1396, 0.0
      %1418 = vadd.xlane.f32.xlu0 %v1417
      %v1419 = vpop.xlane.xlu0 %1418
      %v1420 = vsel %vm486, %v1398, 0.0
      %1421 = vadd.xlane.f32.xlu0 %v1420
      %v1422 = vpop.xlane.xlu0 %1421
      %v1423 = vrcp.pop %v1401
      %v1424 = vrcp.pop %v1404
      %v1425 = vrcp.pop %v1407
      %v1426 = vrcp.pop %v1410
      %v1427 = vrcp.pop %v1413
      %v1428 = vrcp.pop %v1416
      %v1429 = vrcp.pop %v1419
      %v1430 = vrcp.pop %v1422
      %v1431 = vmul.f32 %v1384, %v1423
      %v1432 = vmul.f32 %v1386, %v1424
      %v1433 = vmul.f32 %v1388, %v1425
      %v1434 = vmul.f32 %v1390, %v1426
      %v1435 = vmul.f32 %v1392, %v1427
      %v1436 = vmul.f32 %v1394, %v1428
      %v1437 = vmul.f32 %v1396, %v1429
      %v1438 = vmul.f32 %v1398, %v1430
      %v1439 = vpack.c.bf16 %v1432, %v1431
      %v1440 = vpack.c.bf16 %v1434, %v1433
      %v1441 = vpack.c.bf16 %v1436, %v1435
      %v1442 = vpack.c.bf16 %v1438, %v1437
      %v1451 = vunpack.c.l.b16 %v1181
      %v1452 = vunpack.c.l.b16 %v1182
      %v1453 = vunpack.c.l.b16 %v1183
      %v1454 = vunpack.c.l.b16 %v1184
      %v1455 = vunpack.c.l.b16 %v1185
      %v1456 = vunpack.c.l.b16 %v1186
      %v1457 = vunpack.c.l.b16 %v1187
      %v1458 = vunpack.c.l.b16 %v1188
      %v1459 = vpack.c.b16 %v1452, %v1451
      %v1460 = vpack.c.b16 %v1454, %v1453
      %v1461 = vpack.c.b16 %v1456, %v1455
      %v1462 = vpack.c.b16 %v1458, %v1457
      %1463 = vrot.lane.b32.xlu0 %v1459, 112
      %v1464 = vpop.permute.xlu0 %1463
      %1465 = vrot.lane.b32.xlu0 %v1460, 112
      %v1466 = vpop.permute.xlu0 %1465
      %1467 = vrot.lane.b32.xlu0 %v1461, 112
      %v1468 = vpop.permute.xlu0 %1467
      %1469 = vrot.lane.b32.xlu0 %v1462, 112
      %v1470 = vpop.permute.xlu0 %1469
      %v1476 = vsel %vm486, %v1439, 0
      %v1479 = vsel %vm486, %v1440, 0
      %v1482 = vsel %vm486, %v1441, 0
      %v1485 = vsel %vm486, %v1442, 0
      %1487 = vmatprep.subr.bf16.mxu0 0
      %1488 = vmatpush1.bf16.msra.mxu0 %v1464
      %1489 = vmatprep.subr.bf16.mxu0 0
      %1490 = vmatpush1.bf16.msra.mxu0 %v1466
      %1491 = vmatprep.subr.bf16.mxu0 0
      %1492 = vmatpush1.bf16.msra.mxu0 %v1468
      %1493 = vmatprep.subr.bf16.mxu0 0
      %1494 = vmatpush1.bf16.msra.mxu0 %v1470
      %1495 = vmatprep.subr.bf16.mxu0 0
      %1496 = vmatpush1.bf16.msra.mxu0 0
      %1497 = vmatprep.subr.bf16.mxu0 0
      %1498 = vmatpush1.bf16.msra.mxu0 0
      %1499 = vmatprep.subr.bf16.mxu0 0
      %1500 = vmatpush1.bf16.msra.mxu0 0
      %1501 = vmatprep.subr.bf16.mxu0 0
      %1502 = vmatpush1.bf16.msra.mxu0 0
      %1503 = vmatprep.subr.bf16.mxu0 0
      %1504 = vmatpush1.bf16.msra.mxu0 0
      %1505 = vmatprep.subr.bf16.mxu0 0
      %1506 = vmatpush1.bf16.msra.mxu0 0
      %1507 = vmatprep.subr.bf16.mxu0 0
      %1508 = vmatpush1.bf16.msra.mxu0 0
      %1509 = vmatprep.subr.bf16.mxu0 0
      %1510 = vmatpush1.bf16.msra.mxu0 0
      %1511 = vmatprep.subr.bf16.mxu0 0
      %1512 = vmatpush1.bf16.msra.mxu0 0
      %1513 = vmatprep.subr.bf16.mxu0 0
      %1514 = vmatpush1.bf16.msra.mxu0 0
      %1515 = vmatprep.subr.bf16.mxu0 0
      %1516 = vmatpush1.bf16.msra.mxu0 0
      %1517 = vmatprep.subr.bf16.mxu0 0
      %1518 = vmatpush1.bf16.msra.mxu0 0
      %1519 = vmatprep.mubr.bf16.mxu0 0
      %1520 = vmatmul.mubr.bf16.gmra.mrb[0].mxu0 %v1476
      %v1521 = vpop.f32.mrb[0].mxu0
      %v1522 = vadd.f32 0.0, %v1521
      %v1523 = vpop.f32.mrb[0].mxu0
      %v1524 = vpop.f32.mrb[0].mxu0
      %v1525 = vadd.f32 0.0, %v1524
      %v1526 = vpop.f32.mrb[0].mxu0
      %1527 = vmatprep.mubr.bf16.mxu0 0
      %1528 = vmatmul.mubr.bf16.gmra.mrb[0].mxu0 %v1479
      %v1529 = vpop.f32.mrb[0].mxu0
      %v1530 = vadd.f32 0.0, %v1529
      %v1531 = vpop.f32.mrb[0].mxu0
      %v1532 = vpop.f32.mrb[0].mxu0
      %v1533 = vadd.f32 0.0, %v1532
      %v1534 = vpop.f32.mrb[0].mxu0
      %1535 = vmatprep.mubr.bf16.mxu0 0
      %1536 = vmatmul.mubr.bf16.gmra.mrb[0].mxu0 %v1482
      %v1537 = vpop.f32.mrb[0].mxu0
      %v1538 = vadd.f32 0.0, %v1537
      %v1539 = vpop.f32.mrb[0].mxu0
      %v1540 = vpop.f32.mrb[0].mxu0
      %v1541 = vadd.f32 0.0, %v1540
      %v1542 = vpop.f32.mrb[0].mxu0
      %1543 = vmatprep.mubr.bf16.mxu0 0
      %1544 = vmatmul.mubr.bf16.gmra.mrb[0].mxu0 %v1485
      %v1545 = vpop.f32.mrb[0].mxu0
      %v1546 = vadd.f32 0.0, %v1545
      %v1547 = vpop.f32.mrb[0].mxu0
      %v1548 = vpop.f32.mrb[0].mxu0
      %v1549 = vadd.f32 0.0, %v1548
      %v1550 = vpop.f32.mrb[0].mxu0
      %1551 = vdwg.mxu0
      %v1552 = vpack.c.bf16 %v1525, %v1522
      %v1553 = vpack.c.bf16 %v1533, %v1530
      %v1554 = vpack.c.bf16 %v1541, %v1538
      %v1555 = vpack.c.bf16 %v1549, %v1546
      %v1560 = vunpack.c.l.b16 %v1552
      %v1561 = vunpack.c.h.b16 %v1552
      %v1562 = vunpack.c.l.b16 %v1553
      %v1563 = vunpack.c.h.b16 %v1553
      %v1564 = vunpack.c.l.b16 %v1554
      %v1565 = vunpack.c.h.b16 %v1554
      %v1566 = vunpack.c.l.b16 %v1555
      %v1567 = vunpack.c.h.b16 %v1555
      %v1568 = vpack.c.b16 %v1560, %v1560
      %v1569 = vpack.c.b16 %v1561, %v1561
      %v1570 = vpack.c.b16 %v1562, %v1562
      %v1571 = vpack.c.b16 %v1563, %v1563
      %v1572 = vpack.c.b16 %v1564, %v1564
      %v1573 = vpack.c.b16 %v1565, %v1565
      %v1574 = vpack.c.b16 %v1566, %v1566
      %v1575 = vpack.c.b16 %v1567, %v1567
      %1576 = vrot.lane.b32.xlu0 %v1568, 16
      %v1577 = vpop.permute.xlu0 %1576
      %1578 = vrot.lane.b32.xlu0 %v1569, 16
      %v1579 = vpop.permute.xlu0 %1578
      %1580 = vrot.lane.b32.xlu0 %v1570, 16
      %v1581 = vpop.permute.xlu0 %1580
      %1582 = vrot.lane.b32.xlu0 %v1571, 16
      %v1583 = vpop.permute.xlu0 %1582
      %1584 = vrot.lane.b32.xlu0 %v1572, 16
      %v1585 = vpop.permute.xlu0 %1584
      %1586 = vrot.lane.b32.xlu0 %v1573, 16
      %v1587 = vpop.permute.xlu0 %1586
      %1588 = vrot.lane.b32.xlu0 %v1574, 16
      %v1589 = vpop.permute.xlu0 %1588
      %1590 = vrot.lane.b32.xlu0 %v1575, 16
      %v1591 = vpop.permute.xlu0 %1590
      %vm1600 = vcmask 191616
      %1601 = vst.msk [vmem:[%s306] sm:$0xf] %vm1600, %v1577
      %1602 = vst.msk [vmem:[%s306 + $0x4] sm:$0xf] %vm1600, %v1579
      %1603 = vst.msk [vmem:[%s306 + $0x8] sm:$0xf] %vm1600, %v1581
      %1604 = vst.msk [vmem:[%s306 + $0xc] sm:$0xf] %vm1600, %v1583
      %1605 = vst.msk [vmem:[%s306 + $0x10] sm:$0xf] %vm1600, %v1585
      %1606 = vst.msk [vmem:[%s306 + $0x14] sm:$0xf] %vm1600, %v1587
      %1607 = vst.msk [vmem:[%s306 + $0x18] sm:$0xf] %vm1600, %v1589
      %1608 = vst.msk [vmem:[%s306 + $0x1c] sm:$0xf] %vm1600, %v1591
      %v1609 = vld [vmem:[%s279] sm:$0xf]
      %v1610 = vld [vmem:[%s279 + $0x4] sm:$0xf]
      %v1611 = vld [vmem:[%s279 + $0x8] sm:$0xf]
      %v1612 = vld [vmem:[%s279 + $0xc] sm:$0xf]
      %v1613 = vld [vmem:[%s279 + $0x10] sm:$0xf]
      %v1614 = vld [vmem:[%s279 + $0x14] sm:$0xf]
      %v1615 = vld [vmem:[%s279 + $0x18] sm:$0xf]
      %v1616 = vld [vmem:[%s279 + $0x1c] sm:$0xf]
      %v1617 = vld [vmem:[%s321] sm:$0xf]
      %v1618 = vld [vmem:[%s321 + $0x4] sm:$0xf]
      %v1619 = vld [vmem:[%s321 + $0x8] sm:$0xf]
      %v1620 = vld [vmem:[%s321 + $0xc] sm:$0xf]
      %v1621 = vld [vmem:[%s321 + $0x10] sm:$0xf]
      %v1622 = vld [vmem:[%s321 + $0x14] sm:$0xf]
      %v1623 = vld [vmem:[%s321 + $0x18] sm:$0xf]
      %v1624 = vld [vmem:[%s321 + $0x1c] sm:$0xf]
      %v1625 = vld [vmem:[%s331] sm:$0xf]
      %v1626 = vld [vmem:[%s331 + $0x4] sm:$0xf]
      %v1627 = vld [vmem:[%s331 + $0x8] sm:$0xf]
      %v1628 = vld [vmem:[%s331 + $0xc] sm:$0xf]
      %v1629 = vld [vmem:[%s331 + $0x10] sm:$0xf]
      %v1630 = vld [vmem:[%s331 + $0x14] sm:$0xf]
      %v1631 = vld [vmem:[%s331 + $0x18] sm:$0xf]
      %v1632 = vld [vmem:[%s331 + $0x1c] sm:$0xf]
      %s1633 = scalar_lea.vmem %s296, 96
      %v1634 = vld [vmem:[%s1633] sm:$0xf]
      %v1635 = vld [vmem:[%s1633 + $0x4] sm:$0xf]
      %v1636 = vld [vmem:[%s1633 + $0x8] sm:$0xf]
      %v1637 = vld [vmem:[%s1633 + $0xc] sm:$0xf]
      %v1638 = vld [vmem:[%s1633 + $0x10] sm:$0xf]
      %v1639 = vld [vmem:[%s1633 + $0x14] sm:$0xf]
      %v1640 = vld [vmem:[%s1633 + $0x18] sm:$0xf]
      %v1641 = vld [vmem:[%s1633 + $0x1c] sm:$0xf]
      %v1642 = vunpack.c.l.bf16 %v1634
      %v1643 = vunpack.c.l.bf16 %v1635
      %v1644 = vunpack.c.l.bf16 %v1636
      %v1645 = vunpack.c.l.bf16 %v1637
      %v1646 = vunpack.c.l.bf16 %v1638
      %v1647 = vunpack.c.l.bf16 %v1639
      %v1648 = vunpack.c.l.bf16 %v1640
      %v1649 = vunpack.c.l.bf16 %v1641
      %v1658 = vunpack.c.l.b16 %v1609
      %v1659 = vunpack.c.l.b16 %v1610
      %v1660 = vunpack.c.l.b16 %v1611
      %v1661 = vunpack.c.l.b16 %v1612
      %v1662 = vunpack.c.l.b16 %v1613
      %v1663 = vunpack.c.l.b16 %v1614
      %v1664 = vunpack.c.l.b16 %v1615
      %v1665 = vunpack.c.l.b16 %v1616
      %v1666 = vpack.c.b16 %v1659, %v1658
      %v1667 = vpack.c.b16 %v1661, %v1660
      %v1668 = vpack.c.b16 %v1663, %v1662
      %v1669 = vpack.c.b16 %v1665, %v1664
      %1670 = vrot.lane.b32.xlu0 %v1666, 104
      %v1671 = vpop.permute.xlu0 %1670
      %1672 = vrot.lane.b32.xlu0 %v1667, 104
      %v1673 = vpop.permute.xlu0 %1672
      %1674 = vrot.lane.b32.xlu0 %v1668, 104
      %v1675 = vpop.permute.xlu0 %1674
      %1676 = vrot.lane.b32.xlu0 %v1669, 104
      %v1677 = vpop.permute.xlu0 %1676
      %v1686 = vunpack.c.l.b16 %v1617
      %v1687 = vunpack.c.l.b16 %v1618
      %v1688 = vunpack.c.l.b16 %v1619
      %v1689 = vunpack.c.l.b16 %v1620
      %v1690 = vunpack.c.l.b16 %v1621
      %v1691 = vunpack.c.l.b16 %v1622
      %v1692 = vunpack.c.l.b16 %v1623
      %v1693 = vunpack.c.l.b16 %v1624
      %v1694 = vpack.c.b16 %v1687, %v1686
      %v1695 = vpack.c.b16 %v1689, %v1688
      %v1696 = vpack.c.b16 %v1691, %v1690
      %v1697 = vpack.c.b16 %v1693, %v1692
      %1698 = vrot.lane.b32.xlu0 %v1694, 104
      %v1699 = vpop.permute.xlu0 %1698
      %1700 = vrot.lane.b32.xlu0 %v1695, 104
      %v1701 = vpop.permute.xlu0 %1700
      %1702 = vrot.lane.b32.xlu0 %v1696, 104
      %v1703 = vpop.permute.xlu0 %1702
      %1704 = vrot.lane.b32.xlu0 %v1697, 104
      %v1705 = vpop.permute.xlu0 %1704
      %v1707 = vsel %vm396, %v1671, 0
      %v1710 = vsel %vm396, %v1673, 0
      %v1713 = vsel %vm396, %v1675, 0
      %v1716 = vsel %vm396, %v1677, 0
      %v1719 = vsel %vm396, %v1699, 0
      %v1722 = vsel %vm396, %v1701, 0
      %v1725 = vsel %vm396, %v1703, 0
      %v1728 = vsel %vm396, %v1705, 0
      %1730 = vmatprep.subr.bf16.mxu0 0
      %1731 = vmatpush1.bf16.xpose.msra.mxu0 %v1719
      %1732 = vmatprep.subr.bf16.mxu0 0
      %1733 = vmatpush1.bf16.xpose.msra.mxu0 %v1722
      %1734 = vmatprep.subr.bf16.mxu0 0
      %1735 = vmatpush1.bf16.xpose.msra.mxu0 %v1725
      %1736 = vmatprep.subr.bf16.mxu0 0
      %1737 = vmatpush1.bf16.xpose.msra.mxu0 %v1728
      %1738 = vmatprep.subr.bf16.mxu0 0
      %1739 = vmatpush1.bf16.xpose.msra.mxu0 0
      %1740 = vmatprep.subr.bf16.mxu0 0
      %1741 = vmatpush1.bf16.xpose.msra.mxu0 0
      %1742 = vmatprep.subr.bf16.mxu0 0
      %1743 = vmatpush1.bf16.xpose.msra.mxu0 0
      %1744 = vmatprep.subr.bf16.mxu0 0
      %1745 = vmatpush1.bf16.xpose.msra.mxu0 0
      %1746 = vmatprep.subr.bf16.mxu0 0
      %1747 = vmatpush1.bf16.xpose.msra.mxu0 0
      %1748 = vmatprep.subr.bf16.mxu0 0
      %1749 = vmatpush1.bf16.xpose.msra.mxu0 0
      %1750 = vmatprep.subr.bf16.mxu0 0
      %1751 = vmatpush1.bf16.xpose.msra.mxu0 0
      %1752 = vmatprep.subr.bf16.mxu0 0
      %1753 = vmatpush1.bf16.xpose.msra.mxu0 0
      %1754 = vmatprep.subr.bf16.mxu0 0
      %1755 = vmatpush1.bf16.xpose.msra.mxu0 0
      %1756 = vmatprep.subr.bf16.mxu0 0
      %1757 = vmatpush1.bf16.xpose.msra.mxu0 0
      %1758 = vmatprep.subr.bf16.mxu0 0
      %1759 = vmatpush1.bf16.xpose.msra.mxu0 0
      %1760 = vmatprep.subr.bf16.mxu0 0
      %1761 = vmatpush1.bf16.xpose.msra.mxu0 0
      %1762 = vmatprep.mubr.bf16.mxu0 0
      %1763 = vmatmul.mubr.bf16.gmra.mrb[0].mxu0 %v1707
      %v1764 = vpop.f32.mrb[0].mxu0
      %v1765 = vadd.f32 %v1642, %v1764
      %v1766 = vpop.f32.mrb[0].mxu0
      %v1767 = vpop.f32.mrb[0].mxu0
      %v1768 = vadd.f32 %v1643, %v1767
      %v1769 = vpop.f32.mrb[0].mxu0
      %1770 = vmatprep.mubr.bf16.mxu0 0
      %1771 = vmatmul.mubr.bf16.gmra.mrb[0].mxu0 %v1710
      %v1772 = vpop.f32.mrb[0].mxu0
      %v1773 = vadd.f32 %v1644, %v1772
      %v1774 = vpop.f32.mrb[0].mxu0
      %v1775 = vpop.f32.mrb[0].mxu0
      %v1776 = vadd.f32 %v1645, %v1775
      %v1777 = vpop.f32.mrb[0].mxu0
      %1778 = vmatprep.mubr.bf16.mxu0 0
      %1779 = vmatmul.mubr.bf16.gmra.mrb[0].mxu0 %v1713
      %v1780 = vpop.f32.mrb[0].mxu0
      %v1781 = vadd.f32 %v1646, %v1780
      %v1782 = vpop.f32.mrb[0].mxu0
      %v1783 = vpop.f32.mrb[0].mxu0
      %v1784 = vadd.f32 %v1647, %v1783
      %v1785 = vpop.f32.mrb[0].mxu0
      %1786 = vmatprep.mubr.bf16.mxu0 0
      %1787 = vmatmul.mubr.bf16.gmra.mrb[0].mxu0 %v1716
      %v1788 = vpop.f32.mrb[0].mxu0
      %v1789 = vadd.f32 %v1648, %v1788
      %v1790 = vpop.f32.mrb[0].mxu0
      %v1791 = vpop.f32.mrb[0].mxu0
      %v1792 = vadd.f32 %v1649, %v1791
      %v1793 = vpop.f32.mrb[0].mxu0
      %1794 = vdwg.mxu0
      %v1795 = vsel %vm486, %v1765, -inf
      %1796 = vmax.xlane.f32.xlu0 %v1795
      %v1797 = vpop.xlane.xlu0 %1796
      %v1798 = vsel %vm486, %v1768, -inf
      %1799 = vmax.xlane.f32.xlu0 %v1798
      %v1800 = vpop.xlane.xlu0 %1799
      %v1801 = vsel %vm486, %v1773, -inf
      %1802 = vmax.xlane.f32.xlu0 %v1801
      %v1803 = vpop.xlane.xlu0 %1802
      %v1804 = vsel %vm486, %v1776, -inf
      %1805 = vmax.xlane.f32.xlu0 %v1804
      %v1806 = vpop.xlane.xlu0 %1805
      %v1807 = vsel %vm486, %v1781, -inf
      %1808 = vmax.xlane.f32.xlu0 %v1807
      %v1809 = vpop.xlane.xlu0 %1808
      %v1810 = vsel %vm486, %v1784, -inf
      %1811 = vmax.xlane.f32.xlu0 %v1810
      %v1812 = vpop.xlane.xlu0 %1811
      %v1813 = vsel %vm486, %v1789, -inf
      %1814 = vmax.xlane.f32.xlu0 %v1813
      %v1815 = vpop.xlane.xlu0 %1814
      %v1816 = vsel %vm486, %v1792, -inf
      %1817 = vmax.xlane.f32.xlu0 %v1816
      %v1818 = vpop.xlane.xlu0 %1817
      %v1819 = vsub.f32 %v1765, %v1797
      %v1820 = vsub.f32 %v1768, %v1800
      %v1821 = vsub.f32 %v1773, %v1803
      %v1822 = vsub.f32 %v1776, %v1806
      %v1823 = vsub.f32 %v1781, %v1809
      %v1824 = vsub.f32 %v1784, %v1812
      %v1825 = vsub.f32 %v1789, %v1815
      %v1826 = vsub.f32 %v1792, %v1818
      %v1827 = vmul.f32 %v1819, 1.442695
      %v1828 = vpow.pop %v1827
      %v1829 = vmul.f32 %v1820, 1.442695
      %v1830 = vpow.pop %v1829
      %v1831 = vmul.f32 %v1821, 1.442695
      %v1832 = vpow.pop %v1831
      %v1833 = vmul.f32 %v1822, 1.442695
      %v1834 = vpow.pop %v1833
      %v1835 = vmul.f32 %v1823, 1.442695
      %v1836 = vpow.pop %v1835
      %v1837 = vmul.f32 %v1824, 1.442695
      %v1838 = vpow.pop %v1837
      %v1839 = vmul.f32 %v1825, 1.442695
      %v1840 = vpow.pop %v1839
      %v1841 = vmul.f32 %v1826, 1.442695
      %v1842 = vpow.pop %v1841
      %v1843 = vsel %vm486, %v1828, 0.0
      %1844 = vadd.xlane.f32.xlu0 %v1843
      %v1845 = vpop.xlane.xlu0 %1844
      %v1846 = vsel %vm486, %v1830, 0.0
      %1847 = vadd.xlane.f32.xlu0 %v1846
      %v1848 = vpop.xlane.xlu0 %1847
      %v1849 = vsel %vm486, %v1832, 0.0
      %1850 = vadd.xlane.f32.xlu0 %v1849
      %v1851 = vpop.xlane.xlu0 %1850
      %v1852 = vsel %vm486, %v1834, 0.0
      %1853 = vadd.xlane.f32.xlu0 %v1852
      %v1854 = vpop.xlane.xlu0 %1853
      %v1855 = vsel %vm486, %v1836, 0.0
      %1856 = vadd.xlane.f32.xlu0 %v1855
      %v1857 = vpop.xlane.xlu0 %1856
      %v1858 = vsel %vm486, %v1838, 0.0
      %1859 = vadd.xlane.f32.xlu0 %v1858
      %v1860 = vpop.xlane.xlu0 %1859
      %v1861 = vsel %vm486, %v1840, 0.0
      %1862 = vadd.xlane.f32.xlu0 %v1861
      %v1863 = vpop.xlane.xlu0 %1862
      %v1864 = vsel %vm486, %v1842, 0.0
      %1865 = vadd.xlane.f32.xlu0 %v1864
      %v1866 = vpop.xlane.xlu0 %1865
      %v1867 = vrcp.pop %v1845
      %v1868 = vrcp.pop %v1848
      %v1869 = vrcp.pop %v1851
      %v1870 = vrcp.pop %v1854
      %v1871 = vrcp.pop %v1857
      %v1872 = vrcp.pop %v1860
      %v1873 = vrcp.pop %v1863
      %v1874 = vrcp.pop %v1866
      %v1875 = vmul.f32 %v1828, %v1867
      %v1876 = vmul.f32 %v1830, %v1868
      %v1877 = vmul.f32 %v1832, %v1869
      %v1878 = vmul.f32 %v1834, %v1870
      %v1879 = vmul.f32 %v1836, %v1871
      %v1880 = vmul.f32 %v1838, %v1872
      %v1881 = vmul.f32 %v1840, %v1873
      %v1882 = vmul.f32 %v1842, %v1874
      %v1883 = vpack.c.bf16 %v1876, %v1875
      %v1884 = vpack.c.bf16 %v1878, %v1877
      %v1885 = vpack.c.bf16 %v1880, %v1879
      %v1886 = vpack.c.bf16 %v1882, %v1881
      %v1895 = vunpack.c.l.b16 %v1625
      %v1896 = vunpack.c.l.b16 %v1626
      %v1897 = vunpack.c.l.b16 %v1627
      %v1898 = vunpack.c.l.b16 %v1628
      %v1899 = vunpack.c.l.b16 %v1629
      %v1900 = vunpack.c.l.b16 %v1630
      %v1901 = vunpack.c.l.b16 %v1631
      %v1902 = vunpack.c.l.b16 %v1632
      %v1903 = vpack.c.b16 %v1896, %v1895
      %v1904 = vpack.c.b16 %v1898, %v1897
      %v1905 = vpack.c.b16 %v1900, %v1899
      %v1906 = vpack.c.b16 %v1902, %v1901
      %1907 = vrot.lane.b32.xlu0 %v1903, 104
      %v1908 = vpop.permute.xlu0 %1907
      %1909 = vrot.lane.b32.xlu0 %v1904, 104
      %v1910 = vpop.permute.xlu0 %1909
      %1911 = vrot.lane.b32.xlu0 %v1905, 104
      %v1912 = vpop.permute.xlu0 %1911
      %1913 = vrot.lane.b32.xlu0 %v1906, 104
      %v1914 = vpop.permute.xlu0 %1913
      %v1920 = vsel %vm486, %v1883, 0
      %v1923 = vsel %vm486, %v1884, 0
      %v1926 = vsel %vm486, %v1885, 0
      %v1929 = vsel %vm486, %v1886, 0
      %1931 = vmatprep.subr.bf16.mxu0 0
      %1932 = vmatpush1.bf16.msra.mxu0 %v1908
      %1933 = vmatprep.subr.bf16.mxu0 0
      %1934 = vmatpush1.bf16.msra.mxu0 %v1910
      %1935 = vmatprep.subr.bf16.mxu0 0
      %1936 = vmatpush1.bf16.msra.mxu0 %v1912
      %1937 = vmatprep.subr.bf16.mxu0 0
      %1938 = vmatpush1.bf16.msra.mxu0 %v1914
      %1939 = vmatprep.subr.bf16.mxu0 0
      %1940 = vmatpush1.bf16.msra.mxu0 0
      %1941 = vmatprep.subr.bf16.mxu0 0
      %1942 = vmatpush1.bf16.msra.mxu0 0
      %1943 = vmatprep.subr.bf16.mxu0 0
      %1944 = vmatpush1.bf16.msra.mxu0 0
      %1945 = vmatprep.subr.bf16.mxu0 0
      %1946 = vmatpush1.bf16.msra.mxu0 0
      %1947 = vmatprep.subr.bf16.mxu0 0
      %1948 = vmatpush1.bf16.msra.mxu0 0
      %1949 = vmatprep.subr.bf16.mxu0 0
      %1950 = vmatpush1.bf16.msra.mxu0 0
      %1951 = vmatprep.subr.bf16.mxu0 0
      %1952 = vmatpush1.bf16.msra.mxu0 0
      %1953 = vmatprep.subr.bf16.mxu0 0
      %1954 = vmatpush1.bf16.msra.mxu0 0
      %1955 = vmatprep.subr.bf16.mxu0 0
      %1956 = vmatpush1.bf16.msra.mxu0 0
      %1957 = vmatprep.subr.bf16.mxu0 0
      %1958 = vmatpush1.bf16.msra.mxu0 0
      %1959 = vmatprep.subr.bf16.mxu0 0
      %1960 = vmatpush1.bf16.msra.mxu0 0
      %1961 = vmatprep.subr.bf16.mxu0 0
      %1962 = vmatpush1.bf16.msra.mxu0 0
      %1963 = vmatprep.mubr.bf16.mxu0 0
      %1964 = vmatmul.mubr.bf16.gmra.mrb[0].mxu0 %v1920
      %v1965 = vpop.f32.mrb[0].mxu0
      %v1966 = vadd.f32 0.0, %v1965
      %v1967 = vpop.f32.mrb[0].mxu0
      %v1968 = vpop.f32.mrb[0].mxu0
      %v1969 = vadd.f32 0.0, %v1968
      %v1970 = vpop.f32.mrb[0].mxu0
      %1971 = vmatprep.mubr.bf16.mxu0 0
      %1972 = vmatmul.mubr.bf16.gmra.mrb[0].mxu0 %v1923
      %v1973 = vpop.f32.mrb[0].mxu0
      %v1974 = vadd.f32 0.0, %v1973
      %v1975 = vpop.f32.mrb[0].mxu0
      %v1976 = vpop.f32.mrb[0].mxu0
      %v1977 = vadd.f32 0.0, %v1976
      %v1978 = vpop.f32.mrb[0].mxu0
      %1979 = vmatprep.mubr.bf16.mxu0 0
      %1980 = vmatmul.mubr.bf16.gmra.mrb[0].mxu0 %v1926
      %v1981 = vpop.f32.mrb[0].mxu0
      %v1982 = vadd.f32 0.0, %v1981
      %v1983 = vpop.f32.mrb[0].mxu0
      %v1984 = vpop.f32.mrb[0].mxu0
      %v1985 = vadd.f32 0.0, %v1984
      %v1986 = vpop.f32.mrb[0].mxu0
      %1987 = vmatprep.mubr.bf16.mxu0 0
      %1988 = vmatmul.mubr.bf16.gmra.mrb[0].mxu0 %v1929
      %v1989 = vpop.f32.mrb[0].mxu0
      %v1990 = vadd.f32 0.0, %v1989
      %v1991 = vpop.f32.mrb[0].mxu0
      %v1992 = vpop.f32.mrb[0].mxu0
      %v1993 = vadd.f32 0.0, %v1992
      %v1994 = vpop.f32.mrb[0].mxu0
      %1995 = vdwg.mxu0
      %v1996 = vpack.c.bf16 %v1969, %v1966
      %v1997 = vpack.c.bf16 %v1977, %v1974
      %v1998 = vpack.c.bf16 %v1985, %v1982
      %v1999 = vpack.c.bf16 %v1993, %v1990
      %v2004 = vunpack.c.l.b16 %v1996
      %v2005 = vunpack.c.h.b16 %v1996
      %v2006 = vunpack.c.l.b16 %v1997
      %v2007 = vunpack.c.h.b16 %v1997
      %v2008 = vunpack.c.l.b16 %v1998
      %v2009 = vunpack.c.h.b16 %v1998
      %v2010 = vunpack.c.l.b16 %v1999
      %v2011 = vunpack.c.h.b16 %v1999
      %v2012 = vpack.c.b16 %v2004, %v2004
      %v2013 = vpack.c.b16 %v2005, %v2005
      %v2014 = vpack.c.b16 %v2006, %v2006
      %v2015 = vpack.c.b16 %v2007, %v2007
      %v2016 = vpack.c.b16 %v2008, %v2008
      %v2017 = vpack.c.b16 %v2009, %v2009
      %v2018 = vpack.c.b16 %v2010, %v2010
      %v2019 = vpack.c.b16 %v2011, %v2011
      %2020 = vrot.lane.b32.xlu0 %v2012, 24
      %v2021 = vpop.permute.xlu0 %2020
      %2022 = vrot.lane.b32.xlu0 %v2013, 24
      %v2023 = vpop.permute.xlu0 %2022
      %2024 = vrot.lane.b32.xlu0 %v2014, 24
      %v2025 = vpop.permute.xlu0 %2024
      %2026 = vrot.lane.b32.xlu0 %v2015, 24
      %v2027 = vpop.permute.xlu0 %2026
      %2028 = vrot.lane.b32.xlu0 %v2016, 24
      %v2029 = vpop.permute.xlu0 %2028
      %2030 = vrot.lane.b32.xlu0 %v2017, 24
      %v2031 = vpop.permute.xlu0 %2030
      %2032 = vrot.lane.b32.xlu0 %v2018, 24
      %v2033 = vpop.permute.xlu0 %2032
      %2034 = vrot.lane.b32.xlu0 %v2019, 24
      %v2035 = vpop.permute.xlu0 %2034
      %vm2044 = vcmask 257216
      %2045 = vst.msk [vmem:[%s306] sm:$0xf] %vm2044, %v2021
      %2046 = vst.msk [vmem:[%s306 + $0x4] sm:$0xf] %vm2044, %v2023
      %2047 = vst.msk [vmem:[%s306 + $0x8] sm:$0xf] %vm2044, %v2025
      %2048 = vst.msk [vmem:[%s306 + $0xc] sm:$0xf] %vm2044, %v2027
      %2049 = vst.msk [vmem:[%s306 + $0x10] sm:$0xf] %vm2044, %v2029
      %2050 = vst.msk [vmem:[%s306 + $0x14] sm:$0xf] %vm2044, %v2031
      %2051 = vst.msk [vmem:[%s306 + $0x18] sm:$0xf] %vm2044, %v2033
      %2052 = vst.msk [vmem:[%s306 + $0x1c] sm:$0xf] %vm2044, %v2035
      %s2053 = smul.u32 8, %s24
      %p2054 = scmp.lt.s32.totalorder %s23, 1
      %s2055 = scalar_select %p2054, %s23, 1
      %p2056 = scmp.lt.s32.totalorder %s2053, 7
      %s2057 = scalar_select %p2056, %s2053, 7
      %s2058 = smul.addr %s2055, 8
      %s2059 = sadd.s32 %s2057, %s2058
      %s2060 = smul.addr %s2059, 4
      %s2061 = scalar_lea.vmem %s6, %s2060
      // Predicated region
      $region37: #{nat_layer_forward.4} parent=35 // pred_check
        %p2062 = pneg %p159
      $region38: #{nat_layer_forward.4} parent=35 // pred_check_branch
        %2064 = sbr.rel (%p2062) target = $region40
      $region39: #{nat_layer_forward.4} parent=35 // pred_region
        %s2065 = smul.u32 8, %s24
      $region40: #{nat_layer_forward.4} parent=35 // pred_fallthru
        _
    $region36: #{nat_layer_forward.4} parent=5 // pred_fallthru
      _
    %p2066 = scmp.le.s32.totalorder 2, %s14
    // Predicated region
    $region41: #{nat_layer_forward.4} parent=5 // pred_check
      %p2067 = pneg %p2066
    $region42: #{nat_layer_forward.4} parent=5 // pred_check_branch
      %2069 = sbr.rel (%p2067) target = $region44
    $region43: #{nat_layer_forward.4} parent=5 // pred_region
      %s2070 = ssub.s32 %s14, 2
      // Predicated region
      $region45: #{nat_layer_forward.4} parent=43 // pred_check
        %p2071 = pneg %p165
      $region46: #{nat_layer_forward.4} parent=43 // pred_check_branch
        %2073 = sbr.rel (%p2071) target = $region48
      $region47: #{nat_layer_forward.4} parent=43 // pred_region
        %s2074 = smul.u32 8, %s26
        %p2075 = scmp.lt.s32.totalorder %s25, 1
        %s2076 = scalar_select %p2075, %s25, 1
        %p2077 = scmp.lt.s32.totalorder %s2074, 7
        %s2078 = scalar_select %p2077, %s2074, 7
        %s2079 = smul.addr %s2076, 8
        %s2080 = sadd.s32 %s2078, %s2079
        %s2081 = smul.addr %s2080, 4
        %s2082 = scalar_lea.vmem %s6, %s2081
      $region48: #{nat_layer_forward.4} parent=43 // pred_fallthru
        _
    $region44: #{nat_layer_forward.4} parent=5 // pred_fallthru
      _
  $region6: #{nat_layer_forward.4} parent=0 // loop_footer
    %s18 = sadd.s32 1, %s14
  $region7: #{nat_layer_forward.4} parent=0 // loop_footer_branch
    %13 = sbr.rel target = $region3
  $region8: #{nat_layer_forward.4} parent=0 // loop_exit
    _

// kernel: nat_layer_forward.5
$region0: #{nat_layer_forward.5}
  #allocation0 [shape = 'u32[]', space=smem, size = 0x4, offset = 0x4, fixed_abs, tag = 'smem constant byte address 0x4 - core index']
  #allocation1 [shape = 'u32[144,128]{1,0:T(1,128)}', space=vmem, size = 0x12000, scoped, tag = 'internal scratch']
  %s0 = inlined_call_operand.vmem [shape: bf16[128,32], index: 0, kind: input, shape index: {}]
  %s1 = inlined_call_operand.vmem [shape: f32[128,32], index: 1, kind: input, shape index: {}]
  %s2 = inlined_call_operand.vmem [shape: bf16[32,32], index: 2, kind: input, shape index: {}]
  %s3 = inlined_call_operand.vmem [shape: f32[1,32], index: 3, kind: input, shape index: {}]
  %s4 = inlined_call_operand.vmem [shape: f32[1,32], index: 4, kind: input, shape index: {}]
  %s5 = inlined_call_operand.vmem [shape: f32[1,32], index: 5, kind: input, shape index: {}]
  %s6 = inlined_call_operand.vmem [shape: bf16[32,128], index: 6, kind: input, shape index: {}]
  %s7 = inlined_call_operand.vmem [shape: f32[1,128], index: 7, kind: input, shape index: {}]
  %s8 = inlined_call_operand.vmem [shape: bf16[128,32], index: 8, kind: input, shape index: {}]
  %s9 = inlined_call_operand.vmem [shape: f32[1,32], index: 9, kind: input, shape index: {}]
  %s10 = inlined_call_operand.hbm [shape: f32[128,32], index: 10, kind: output, shape index: {}]
  %s11 = sld [smem:[#allocation0]]
  $region50: #{nat_layer_forward.5} parent=0
    _
  %s13 = ssub.s32 1, %s11
  %s14 = scalar_select 0, %s13, %s11
  $region1: #{nat_layer_forward.5} parent=0
    #allocation2 [shape = 'u8[65536]{0}', space=vmem, size = 0x10000, scoped, tag = 'output window, operand 0, single buffered']
    #allocation3 [shape = 's32[1]{0}', space=sflag, size = 0x4, scoped, tag = 'scoped memory for nat_layer_forward.5']
    %15 = vsyncpa [#allocation3], 0
    // Predicated region
    $region2: #{nat_layer_forward.5} parent=1 // pred_check
      _
    $region3: #{nat_layer_forward.5} parent=1 // pred_check_branch
      %17 = sbr.rel (0) target = $region5
    $region4: #{nat_layer_forward.5} parent=1 // pred_region
      _
    $region5: #{nat_layer_forward.5} parent=1 // pred_fallthru
      _
    // Predicated region
    $region6: #{nat_layer_forward.5} parent=1 // pred_check
      _
    $region7: #{nat_layer_forward.5} parent=1 // pred_check_branch
      %19 = sbr.rel (0) target = $region9
    $region8: #{nat_layer_forward.5} parent=1 // pred_region
      _
    $region9: #{nat_layer_forward.5} parent=1 // pred_fallthru
      _
    // Predicated region
    $region10: #{nat_layer_forward.5} parent=1 // pred_check
      _
    $region11: #{nat_layer_forward.5} parent=1 // pred_check_branch
      %21 = sbr.rel (0) target = $region13
    $region12: #{nat_layer_forward.5} parent=1 // pred_region
      _
    $region13: #{nat_layer_forward.5} parent=1 // pred_fallthru
      _
    // Predicated region
    $region14: #{nat_layer_forward.5} parent=1 // pred_check
      _
    $region15: #{nat_layer_forward.5} parent=1 // pred_check_branch
      %23 = sbr.rel (0) target = $region17
    $region16: #{nat_layer_forward.5} parent=1 // pred_region
      _
    $region17: #{nat_layer_forward.5} parent=1 // pred_fallthru
      _
    // Predicated region
    $region18: #{nat_layer_forward.5} parent=1 // pred_check
      _
    $region19: #{nat_layer_forward.5} parent=1 // pred_check_branch
      %25 = sbr.rel (0) target = $region21
    $region20: #{nat_layer_forward.5} parent=1 // pred_region
      _
    $region21: #{nat_layer_forward.5} parent=1 // pred_fallthru
      _
    // Predicated region
    $region22: #{nat_layer_forward.5} parent=1 // pred_check
      _
    $region23: #{nat_layer_forward.5} parent=1 // pred_check_branch
      %27 = sbr.rel (0) target = $region25
    $region24: #{nat_layer_forward.5} parent=1 // pred_region
      _
    $region25: #{nat_layer_forward.5} parent=1 // pred_fallthru
      _
    // Predicated region
    $region26: #{nat_layer_forward.5} parent=1 // pred_check
      _
    $region27: #{nat_layer_forward.5} parent=1 // pred_check_branch
      %29 = sbr.rel (0) target = $region29
    $region28: #{nat_layer_forward.5} parent=1 // pred_region
      _
    $region29: #{nat_layer_forward.5} parent=1 // pred_fallthru
      _
    // Predicated region
    $region30: #{nat_layer_forward.5} parent=1 // pred_check
      _
    $region31: #{nat_layer_forward.5} parent=1 // pred_check_branch
      %31 = sbr.rel (0) target = $region33
    $region32: #{nat_layer_forward.5} parent=1 // pred_region
      _
    $region33: #{nat_layer_forward.5} parent=1 // pred_fallthru
      _
    // Predicated region
    $region34: #{nat_layer_forward.5} parent=1 // pred_check
      _
    $region35: #{nat_layer_forward.5} parent=1 // pred_check_branch
      %33 = sbr.rel (0) target = $region37
    $region36: #{nat_layer_forward.5} parent=1 // pred_region
      _
    $region37: #{nat_layer_forward.5} parent=1 // pred_fallthru
      _
    // Predicated region
    $region38: #{nat_layer_forward.5} parent=1 // pred_check
      _
    $region39: #{nat_layer_forward.5} parent=1 // pred_check_branch
      %35 = sbr.rel (0) target = $region41
    $region40: #{nat_layer_forward.5} parent=1 // pred_region
      _
    $region41: #{nat_layer_forward.5} parent=1 // pred_fallthru
      _
    %v37 = vld [vmem:[%s0] sm:$0xf]
    %v38 = vld [vmem:[%s0 + $0x4] sm:$0xf]
    %v39 = vld [vmem:[%s0 + $0x8] sm:$0xf]
    %v40 = vld [vmem:[%s0 + $0xc] sm:$0xf]
    %v41 = vld [vmem:[%s0 + $0x10] sm:$0xf]
    %v42 = vld [vmem:[%s0 + $0x14] sm:$0xf]
    %v43 = vld [vmem:[%s0 + $0x18] sm:$0xf]
    %v44 = vld [vmem:[%s0 + $0x1c] sm:$0xf]
    %v45 = vld [vmem:[%s0 + $0x20] sm:$0xf]
    %v46 = vld [vmem:[%s0 + $0x24] sm:$0xf]
    %v47 = vld [vmem:[%s0 + $0x28] sm:$0xf]
    %v48 = vld [vmem:[%s0 + $0x2c] sm:$0xf]
    %v49 = vld [vmem:[%s0 + $0x30] sm:$0xf]
    %v50 = vld [vmem:[%s0 + $0x34] sm:$0xf]
    %v51 = vld [vmem:[%s0 + $0x38] sm:$0xf]
    %v52 = vld [vmem:[%s0 + $0x3c] sm:$0xf]
    %v53 = vld [vmem:[%s2] sm:$0xf]
    %v54 = vld [vmem:[%s2 + $0x4] sm:$0xf]
    %v55 = vld [vmem:[%s2 + $0x8] sm:$0xf]
    %v56 = vld [vmem:[%s2 + $0xc] sm:$0xf]
    %v57 = vld [vmem:[%s3] sm:$0x1]
    %v59 = vlaneseq
    %v60 = vshrl.u32 %v59, 7
    %v61 = vsub.s32 0, %v60
    %v62 = vrot.slane %v57, %v61
    %v80 = vunpack.c.l.b16 %v37
    %v81 = vunpack.c.l.b16 %v38
    %v82 = vunpack.c.l.b16 %v39
    %v83 = vunpack.c.l.b16 %v40
    %v84 = vunpack.c.l.b16 %v41
    %v85 = vunpack.c.l.b16 %v42
    %v86 = vunpack.c.l.b16 %v43
    %v87 = vunpack.c.l.b16 %v44
    %v88 = vunpack.c.l.b16 %v45
    %v89 = vunpack.c.l.b16 %v46
    %v90 = vunpack.c.l.b16 %v47
    %v91 = vunpack.c.l.b16 %v48
    %v92 = vunpack.c.l.b16 %v49
    %v93 = vunpack.c.l.b16 %v50
    %v94 = vunpack.c.l.b16 %v51
    %v95 = vunpack.c.l.b16 %v52
    %v96 = vpack.c.b16 %v81, %v80
    %v97 = vpack.c.b16 %v83, %v82
    %v98 = vpack.c.b16 %v85, %v84
    %v99 = vpack.c.b16 %v87, %v86
    %v100 = vpack.c.b16 %v89, %v88
    %v101 = vpack.c.b16 %v91, %v90
    %v102 = vpack.c.b16 %v93, %v92
    %v103 = vpack.c.b16 %v95, %v94
    %v108 = vunpack.c.l.b16 %v53
    %v109 = vunpack.c.l.b16 %v54
    %v110 = vunpack.c.l.b16 %v55
    %v111 = vunpack.c.l.b16 %v56
    %v112 = vpack.c.b16 %v109, %v108
    %v113 = vpack.c.b16 %v111, %v110
    %vm116 = vcmask 261120
    %v118 = vsel %vm116, %v96, 0
    %v121 = vsel %vm116, %v97, 0
    %v124 = vsel %vm116, %v98, 0
    %v127 = vsel %vm116, %v99, 0
    %v130 = vsel %vm116, %v100, 0
    %v133 = vsel %vm116, %v101, 0
    %v136 = vsel %vm116, %v102, 0
    %v139 = vsel %vm116, %v103, 0
    %141 = vmatprep.subr.bf16.mxu0 0
    %142 = vmatpush1.bf16.msra.mxu0 %v112
    %143 = vmatprep.subr.bf16.mxu0 0
    %144 = vmatpush1.bf16.msra.mxu0 %v113
    %145 = vmatprep.subr.bf16.mxu0 0
    %146 = vmatpush1.bf16.msra.mxu0 0
    %147 = vmatprep.subr.bf16.mxu0 0
    %148 = vmatpush1.bf16.msra.mxu0 0
    %149 = vmatprep.subr.bf16.mxu0 0
    %150 = vmatpush1.bf16.msra.mxu0 0
    %151 = vmatprep.subr.bf16.mxu0 0
    %152 = vmatpush1.bf16.msra.mxu0 0
    %153 = vmatprep.subr.bf16.mxu0 0
    %154 = vmatpush1.bf16.msra.mxu0 0
    %155 = vmatprep.subr.bf16.mxu0 0
    %156 = vmatpush1.bf16.msra.mxu0 0
    %157 = vmatprep.subr.bf16.mxu0 0
    %158 = vmatpush1.bf16.msra.mxu0 0
    %159 = vmatprep.subr.bf16.mxu0 0
    %160 = vmatpush1.bf16.msra.mxu0 0
    %161 = vmatprep.subr.bf16.mxu0 0
    %162 = vmatpush1.bf16.msra.mxu0 0
    %163 = vmatprep.subr.bf16.mxu0 0
    %164 = vmatpush1.bf16.msra.mxu0 0
    %165 = vmatprep.subr.bf16.mxu0 0
    %166 = vmatpush1.bf16.msra.mxu0 0
    %167 = vmatprep.subr.bf16.mxu0 0
    %168 = vmatpush1.bf16.msra.mxu0 0
    %169 = vmatprep.subr.bf16.mxu0 0
    %170 = vmatpush1.bf16.msra.mxu0 0
    %171 = vmatprep.subr.bf16.mxu0 0
    %172 = vmatpush1.bf16.msra.mxu0 0
    %173 = vmatprep.mubr.bf16.mxu0 0
    %174 = vmatmul.mubr.bf16.gmra.mrb[0].mxu0 %v118
    %v175 = vpop.f32.mrb[0].mxu0
    %v176 = vadd.f32 %v62, %v175
    %v177 = vpop.f32.mrb[0].mxu0
    %v178 = vpop.f32.mrb[0].mxu0
    %v179 = vadd.f32 %v62, %v178
    %v180 = vpop.f32.mrb[0].mxu0
    %181 = vmatprep.mubr.bf16.mxu0 0
    %182 = vmatmul.mubr.bf16.gmra.mrb[0].mxu0 %v121
    %v183 = vpop.f32.mrb[0].mxu0
    %v184 = vadd.f32 %v62, %v183
    %v185 = vpop.f32.mrb[0].mxu0
    %v186 = vpop.f32.mrb[0].mxu0
    %v187 = vadd.f32 %v62, %v186
    %v188 = vpop.f32.mrb[0].mxu0
    %189 = vmatprep.mubr.bf16.mxu0 0
    %190 = vmatmul.mubr.bf16.gmra.mrb[0].mxu0 %v124
    %v191 = vpop.f32.mrb[0].mxu0
    %v192 = vadd.f32 %v62, %v191
    %v193 = vpop.f32.mrb[0].mxu0
    %v194 = vpop.f32.mrb[0].mxu0
    %v195 = vadd.f32 %v62, %v194
    %v196 = vpop.f32.mrb[0].mxu0
    %197 = vmatprep.mubr.bf16.mxu0 0
    %198 = vmatmul.mubr.bf16.gmra.mrb[0].mxu0 %v127
    %v199 = vpop.f32.mrb[0].mxu0
    %v200 = vadd.f32 %v62, %v199
    %v201 = vpop.f32.mrb[0].mxu0
    %v202 = vpop.f32.mrb[0].mxu0
    %v203 = vadd.f32 %v62, %v202
    %v204 = vpop.f32.mrb[0].mxu0
    %205 = vmatprep.mubr.bf16.mxu0 0
    %206 = vmatmul.mubr.bf16.gmra.mrb[0].mxu0 %v130
    %v207 = vpop.f32.mrb[0].mxu0
    %v208 = vadd.f32 %v62, %v207
    %v209 = vpop.f32.mrb[0].mxu0
    %v210 = vpop.f32.mrb[0].mxu0
    %v211 = vadd.f32 %v62, %v210
    %v212 = vpop.f32.mrb[0].mxu0
    %213 = vmatprep.mubr.bf16.mxu0 0
    %214 = vmatmul.mubr.bf16.gmra.mrb[0].mxu0 %v133
    %v215 = vpop.f32.mrb[0].mxu0
    %v216 = vadd.f32 %v62, %v215
    %v217 = vpop.f32.mrb[0].mxu0
    %v218 = vpop.f32.mrb[0].mxu0
    %v219 = vadd.f32 %v62, %v218
    %v220 = vpop.f32.mrb[0].mxu0
    %221 = vmatprep.mubr.bf16.mxu0 0
    %222 = vmatmul.mubr.bf16.gmra.mrb[0].mxu0 %v136
    %v223 = vpop.f32.mrb[0].mxu0
    %v224 = vadd.f32 %v62, %v223
    %v225 = vpop.f32.mrb[0].mxu0
    %v226 = vpop.f32.mrb[0].mxu0
    %v227 = vadd.f32 %v62, %v226
    %v228 = vpop.f32.mrb[0].mxu0
    %229 = vmatprep.mubr.bf16.mxu0 0
    %230 = vmatmul.mubr.bf16.gmra.mrb[0].mxu0 %v139
    %v231 = vpop.f32.mrb[0].mxu0
    %v232 = vadd.f32 %v62, %v231
    %v233 = vpop.f32.mrb[0].mxu0
    %v234 = vpop.f32.mrb[0].mxu0
    %v235 = vadd.f32 %v62, %v234
    %v236 = vpop.f32.mrb[0].mxu0
    %237 = vdwg.mxu0
    %v238 = vld [vmem:[%s1] sm:$0xff]
    %v239 = vld [vmem:[%s1 + $0x8] sm:$0xff]
    %v240 = vld [vmem:[%s1 + $0x10] sm:$0xff]
    %v241 = vld [vmem:[%s1 + $0x18] sm:$0xff]
    %v242 = vld [vmem:[%s1 + $0x20] sm:$0xff]
    %v243 = vld [vmem:[%s1 + $0x28] sm:$0xff]
    %v244 = vld [vmem:[%s1 + $0x30] sm:$0xff]
    %v245 = vld [vmem:[%s1 + $0x38] sm:$0xff]
    %v246 = vld [vmem:[%s1 + $0x40] sm:$0xff]
    %v247 = vld [vmem:[%s1 + $0x48] sm:$0xff]
    %v248 = vld [vmem:[%s1 + $0x50] sm:$0xff]
    %v249 = vld [vmem:[%s1 + $0x58] sm:$0xff]
    %v250 = vld [vmem:[%s1 + $0x60] sm:$0xff]
    %v251 = vld [vmem:[%s1 + $0x68] sm:$0xff]
    %v252 = vld [vmem:[%s1 + $0x70] sm:$0xff]
    %v253 = vld [vmem:[%s1 + $0x78] sm:$0xff]
    %v254 = vadd.f32 %v176, %v238
    %v255 = vadd.f32 %v179, %v239
    %v256 = vadd.f32 %v184, %v240
    %v257 = vadd.f32 %v187, %v241
    %v258 = vadd.f32 %v192, %v242
    %v259 = vadd.f32 %v195, %v243
    %v260 = vadd.f32 %v200, %v244
    %v261 = vadd.f32 %v203, %v245
    %v262 = vadd.f32 %v208, %v246
    %v263 = vadd.f32 %v211, %v247
    %v264 = vadd.f32 %v216, %v248
    %v265 = vadd.f32 %v219, %v249
    %v266 = vadd.f32 %v224, %v250
    %v267 = vadd.f32 %v227, %v251
    %v268 = vadd.f32 %v232, %v252
    %v269 = vadd.f32 %v235, %v253
    %v270 = vld [vmem:[%s4] sm:$0x1]
    %v271 = vld [vmem:[%s5] sm:$0x1]
    %v272 = vsel %vm116, %v254, 0.0
    %273 = vadd.xlane.f32.xlu0 %v272
    %v274 = vpop.xlane.xlu0 %273
    %v275 = vsel %vm116, %v255, 0.0
    %276 = vadd.xlane.f32.xlu0 %v275
    %v277 = vpop.xlane.xlu0 %276
    %v278 = vsel %vm116, %v256, 0.0
    %279 = vadd.xlane.f32.xlu0 %v278
    %v280 = vpop.xlane.xlu0 %279
    %v281 = vsel %vm116, %v257, 0.0
    %282 = vadd.xlane.f32.xlu0 %v281
    %v283 = vpop.xlane.xlu0 %282
    %v284 = vsel %vm116, %v258, 0.0
    %285 = vadd.xlane.f32.xlu0 %v284
    %v286 = vpop.xlane.xlu0 %285
    %v287 = vsel %vm116, %v259, 0.0
    %288 = vadd.xlane.f32.xlu0 %v287
    %v289 = vpop.xlane.xlu0 %288
    %v290 = vsel %vm116, %v260, 0.0
    %291 = vadd.xlane.f32.xlu0 %v290
    %v292 = vpop.xlane.xlu0 %291
    %v293 = vsel %vm116, %v261, 0.0
    %294 = vadd.xlane.f32.xlu0 %v293
    %v295 = vpop.xlane.xlu0 %294
    %v296 = vsel %vm116, %v262, 0.0
    %297 = vadd.xlane.f32.xlu0 %v296
    %v298 = vpop.xlane.xlu0 %297
    %v299 = vsel %vm116, %v263, 0.0
    %300 = vadd.xlane.f32.xlu0 %v299
    %v301 = vpop.xlane.xlu0 %300
    %v302 = vsel %vm116, %v264, 0.0
    %303 = vadd.xlane.f32.xlu0 %v302
    %v304 = vpop.xlane.xlu0 %303
    %v305 = vsel %vm116, %v265, 0.0
    %306 = vadd.xlane.f32.xlu0 %v305
    %v307 = vpop.xlane.xlu0 %306
    %v308 = vsel %vm116, %v266, 0.0
    %309 = vadd.xlane.f32.xlu0 %v308
    %v310 = vpop.xlane.xlu0 %309
    %v311 = vsel %vm116, %v267, 0.0
    %312 = vadd.xlane.f32.xlu0 %v311
    %v313 = vpop.xlane.xlu0 %312
    %v314 = vsel %vm116, %v268, 0.0
    %315 = vadd.xlane.f32.xlu0 %v314
    %v316 = vpop.xlane.xlu0 %315
    %v317 = vsel %vm116, %v269, 0.0
    %318 = vadd.xlane.f32.xlu0 %v317
    %v319 = vpop.xlane.xlu0 %318
    %v320 = vrcp.pop 32.0
    %v321 = vmul.f32 %v274, %v320
    %v322 = vmul.f32 %v277, %v320
    %v323 = vmul.f32 %v280, %v320
    %v324 = vmul.f32 %v283, %v320
    %v325 = vmul.f32 %v286, %v320
    %v326 = vmul.f32 %v289, %v320
    %v327 = vmul.f32 %v292, %v320
    %v328 = vmul.f32 %v295, %v320
    %v329 = vmul.f32 %v298, %v320
    %v330 = vmul.f32 %v301, %v320
    %v331 = vmul.f32 %v304, %v320
    %v332 = vmul.f32 %v307, %v320
    %v333 = vmul.f32 %v310, %v320
    %v334 = vmul.f32 %v313, %v320
    %v335 = vmul.f32 %v316, %v320
    %v336 = vmul.f32 %v319, %v320
    %v337 = vsub.f32 %v254, %v321
    %v338 = vsub.f32 %v255, %v322
    %v339 = vsub.f32 %v256, %v323
    %v340 = vsub.f32 %v257, %v324
    %v341 = vsub.f32 %v258, %v325
    %v342 = vsub.f32 %v259, %v326
    %v343 = vsub.f32 %v260, %v327
    %v344 = vsub.f32 %v261, %v328
    %v345 = vsub.f32 %v262, %v329
    %v346 = vsub.f32 %v263, %v330
    %v347 = vsub.f32 %v264, %v331
    %v348 = vsub.f32 %v265, %v332
    %v349 = vsub.f32 %v266, %v333
    %v350 = vsub.f32 %v267, %v334
    %v351 = vsub.f32 %v268, %v335
    %v352 = vsub.f32 %v269, %v336
    %v353 = vmul.f32 %v337, %v337
    %v354 = vmul.f32 %v338, %v338
    %v355 = vmul.f32 %v339, %v339
    %v356 = vmul.f32 %v340, %v340
    %v357 = vmul.f32 %v341, %v341
    %v358 = vmul.f32 %v342, %v342
    %v359 = vmul.f32 %v343, %v343
    %v360 = vmul.f32 %v344, %v344
    %v361 = vmul.f32 %v345, %v345
    %v362 = vmul.f32 %v346, %v346
    %v363 = vmul.f32 %v347, %v347
    %v364 = vmul.f32 %v348, %v348
    %v365 = vmul.f32 %v349, %v349
    %v366 = vmul.f32 %v350, %v350
    %v367 = vmul.f32 %v351, %v351
    %v368 = vmul.f32 %v352, %v352
    %v369 = vsel %vm116, %v353, 0.0
    %370 = vadd.xlane.f32.xlu0 %v369
    %v371 = vpop.xlane.xlu0 %370
    %v372 = vsel %vm116, %v354, 0.0
    %373 = vadd.xlane.f32.xlu0 %v372
    %v374 = vpop.xlane.xlu0 %373
    %v375 = vsel %vm116, %v355, 0.0
    %376 = vadd.xlane.f32.xlu0 %v375
    %v377 = vpop.xlane.xlu0 %376
    %v378 = vsel %vm116, %v356, 0.0
    %379 = vadd.xlane.f32.xlu0 %v378
    %v380 = vpop.xlane.xlu0 %379
    %v381 = vsel %vm116, %v357, 0.0
    %382 = vadd.xlane.f32.xlu0 %v381
    %v383 = vpop.xlane.xlu0 %382
    %v384 = vsel %vm116, %v358, 0.0
    %385 = vadd.xlane.f32.xlu0 %v384
    %v386 = vpop.xlane.xlu0 %385
    %v387 = vsel %vm116, %v359, 0.0
    %388 = vadd.xlane.f32.xlu0 %v387
    %v389 = vpop.xlane.xlu0 %388
    %v390 = vsel %vm116, %v360, 0.0
    %391 = vadd.xlane.f32.xlu0 %v390
    %v392 = vpop.xlane.xlu0 %391
    %v393 = vsel %vm116, %v361, 0.0
    %394 = vadd.xlane.f32.xlu0 %v393
    %v395 = vpop.xlane.xlu0 %394
    %v396 = vsel %vm116, %v362, 0.0
    %397 = vadd.xlane.f32.xlu0 %v396
    %v398 = vpop.xlane.xlu0 %397
    %v399 = vsel %vm116, %v363, 0.0
    %400 = vadd.xlane.f32.xlu0 %v399
    %v401 = vpop.xlane.xlu0 %400
    %v402 = vsel %vm116, %v364, 0.0
    %403 = vadd.xlane.f32.xlu0 %v402
    %v404 = vpop.xlane.xlu0 %403
    %v405 = vsel %vm116, %v365, 0.0
    %406 = vadd.xlane.f32.xlu0 %v405
    %v407 = vpop.xlane.xlu0 %406
    %v408 = vsel %vm116, %v366, 0.0
    %409 = vadd.xlane.f32.xlu0 %v408
    %v410 = vpop.xlane.xlu0 %409
    %v411 = vsel %vm116, %v367, 0.0
    %412 = vadd.xlane.f32.xlu0 %v411
    %v413 = vpop.xlane.xlu0 %412
    %v414 = vsel %vm116, %v368, 0.0
    %415 = vadd.xlane.f32.xlu0 %v414
    %v416 = vpop.xlane.xlu0 %415
    %v417 = vmul.f32 %v371, %v320
    %v418 = vmul.f32 %v374, %v320
    %v419 = vmul.f32 %v377, %v320
    %v420 = vmul.f32 %v380, %v320
    %v421 = vmul.f32 %v383, %v320
    %v422 = vmul.f32 %v386, %v320
    %v423 = vmul.f32 %v389, %v320
    %v424 = vmul.f32 %v392, %v320
    %v425 = vmul.f32 %v395, %v320
    %v426 = vmul.f32 %v398, %v320
    %v427 = vmul.f32 %v401, %v320
    %v428 = vmul.f32 %v404, %v320
    %v429 = vmul.f32 %v407, %v320
    %v430 = vmul.f32 %v410, %v320
    %v431 = vmul.f32 %v413, %v320
    %v432 = vmul.f32 %v416, %v320
    %v433 = vadd.f32 %v417, 1e-05
    %v434 = vadd.f32 %v418, 1e-05
    %v435 = vadd.f32 %v419, 1e-05
    %v436 = vadd.f32 %v420, 1e-05
    %v437 = vadd.f32 %v421, 1e-05
    %v438 = vadd.f32 %v422, 1e-05
    %v439 = vadd.f32 %v423, 1e-05
    %v440 = vadd.f32 %v424, 1e-05
    %v441 = vadd.f32 %v425, 1e-05
    %v442 = vadd.f32 %v426, 1e-05
    %v443 = vadd.f32 %v427, 1e-05
    %v444 = vadd.f32 %v428, 1e-05
    %v445 = vadd.f32 %v429, 1e-05
    %v446 = vadd.f32 %v430, 1e-05
    %v447 = vadd.f32 %v431, 1e-05
    %v448 = vadd.f32 %v432, 1e-05
    %v449 = vrsqrt.pop %v433
    %v450 = vrsqrt.pop %v434
    %v451 = vrsqrt.pop %v435
    %v452 = vrsqrt.pop %v436
    %v453 = vrsqrt.pop %v437
    %v454 = vrsqrt.pop %v438
    %v455 = vrsqrt.pop %v439
    %v456 = vrsqrt.pop %v440
    %v457 = vrsqrt.pop %v441
    %v458 = vrsqrt.pop %v442
    %v459 = vrsqrt.pop %v443
    %v460 = vrsqrt.pop %v444
    %v461 = vrsqrt.pop %v445
    %v462 = vrsqrt.pop %v446
    %v463 = vrsqrt.pop %v447
    %v464 = vrsqrt.pop %v448
    %v465 = vmul.f32 %v337, %v449
    %v466 = vmul.f32 %v338, %v450
    %v467 = vmul.f32 %v339, %v451
    %v468 = vmul.f32 %v340, %v452
    %v469 = vmul.f32 %v341, %v453
    %v470 = vmul.f32 %v342, %v454
    %v471 = vmul.f32 %v343, %v455
    %v472 = vmul.f32 %v344, %v456
    %v473 = vmul.f32 %v345, %v457
    %v474 = vmul.f32 %v346, %v458
    %v475 = vmul.f32 %v347, %v459
    %v476 = vmul.f32 %v348, %v460
    %v477 = vmul.f32 %v349, %v461
    %v478 = vmul.f32 %v350, %v462
    %v479 = vmul.f32 %v351, %v463
    %v480 = vmul.f32 %v352, %v464
    %v482 = vlaneseq
    %v483 = vshrl.u32 %v482, 7
    %v484 = vsub.s32 0, %v483
    %v485 = vrot.slane %v270, %v484
    %v487 = vmul.f32 %v465, %v485
    %v488 = vmul.f32 %v466, %v485
    %v489 = vmul.f32 %v467, %v485
    %v490 = vmul.f32 %v468, %v485
    %v491 = vmul.f32 %v469, %v485
    %v492 = vmul.f32 %v470, %v485
    %v493 = vmul.f32 %v471, %v485
    %v494 = vmul.f32 %v472, %v485
    %v495 = vmul.f32 %v473, %v485
    %v496 = vmul.f32 %v474, %v485
    %v497 = vmul.f32 %v475, %v485
    %v498 = vmul.f32 %v476, %v485
    %v499 = vmul.f32 %v477, %v485
    %v500 = vmul.f32 %v478, %v485
    %v501 = vmul.f32 %v479, %v485
    %v502 = vmul.f32 %v480, %v485
    %v504 = vlaneseq
    %v505 = vshrl.u32 %v504, 7
    %v506 = vsub.s32 0, %v505
    %v507 = vrot.slane %v271, %v506
    %v509 = vadd.f32 %v487, %v507
    %v510 = vadd.f32 %v488, %v507
    %v511 = vadd.f32 %v489, %v507
    %v512 = vadd.f32 %v490, %v507
    %v513 = vadd.f32 %v491, %v507
    %v514 = vadd.f32 %v492, %v507
    %v515 = vadd.f32 %v493, %v507
    %v516 = vadd.f32 %v494, %v507
    %v517 = vadd.f32 %v495, %v507
    %v518 = vadd.f32 %v496, %v507
    %v519 = vadd.f32 %v497, %v507
    %v520 = vadd.f32 %v498, %v507
    %v521 = vadd.f32 %v499, %v507
    %v522 = vadd.f32 %v500, %v507
    %v523 = vadd.f32 %v501, %v507
    %v524 = vadd.f32 %v502, %v507
    %v525 = vpack.c.bf16 %v510, %v509
    %v526 = vpack.c.bf16 %v512, %v511
    %v527 = vpack.c.bf16 %v514, %v513
    %v528 = vpack.c.bf16 %v516, %v515
    %v529 = vpack.c.bf16 %v518, %v517
    %v530 = vpack.c.bf16 %v520, %v519
    %v531 = vpack.c.bf16 %v522, %v521
    %v532 = vpack.c.bf16 %v524, %v523
    %v533 = vld [vmem:[%s9] sm:$0x1]
    %v535 = vlaneseq
    %v536 = vshrl.u32 %v535, 7
    %v537 = vsub.s32 0, %v536
    %v538 = vrot.slane %v533, %v537
    %v540 = vadd.f32 %v254, %v538
    %v541 = vadd.f32 %v255, %v538
    %v542 = vadd.f32 %v256, %v538
    %v543 = vadd.f32 %v257, %v538
    %v544 = vadd.f32 %v258, %v538
    %v545 = vadd.f32 %v259, %v538
    %v546 = vadd.f32 %v260, %v538
    %v547 = vadd.f32 %v261, %v538
    %v548 = vadd.f32 %v262, %v538
    %v549 = vadd.f32 %v263, %v538
    %v550 = vadd.f32 %v264, %v538
    %v551 = vadd.f32 %v265, %v538
    %v552 = vadd.f32 %v266, %v538
    %v553 = vadd.f32 %v267, %v538
    %v554 = vadd.f32 %v268, %v538
    %v555 = vadd.f32 %v269, %v538
    %v556 = vld [vmem:[%s6] sm:$0xf]
    %v557 = vld [vmem:[%s6 + $0x4] sm:$0xf]
    %v558 = vld [vmem:[%s6 + $0x8] sm:$0xf]
    %v559 = vld [vmem:[%s6 + $0xc] sm:$0xf]
    %v560 = vld [vmem:[%s7] sm:$0x1]
    %v562 = vlaneseq
    %v563 = vshrl.u32 %v562, 7
    %v564 = vsub.s32 0, %v563
    %v565 = vrot.slane %v560, %v564
    %v571 = vunpack.c.l.b16 %v556
    %v572 = vunpack.c.l.b16 %v557
    %v573 = vunpack.c.l.b16 %v558
    %v574 = vunpack.c.l.b16 %v559
    %v575 = vpack.c.b16 %v572, %v571
    %v576 = vpack.c.b16 %v574, %v573
    %v580 = vsel %vm116, %v525, 0
    %v583 = vsel %vm116, %v526, 0
    %v586 = vsel %vm116, %v527, 0
    %v589 = vsel %vm116, %v528, 0
    %v592 = vsel %vm116, %v529, 0
    %v595 = vsel %vm116, %v530, 0
    %v598 = vsel %vm116, %v531, 0
    %v601 = vsel %vm116, %v532, 0
    %603 = vmatprep.subr.bf16.mxu0 0
    %604 = vmatpush1.bf16.msra.mxu0 %v575
    %605 = vmatprep.subr.bf16.mxu0 0
    %606 = vmatpush1.bf16.msra.mxu0 %v576
    %607 = vmatprep.subr.bf16.mxu0 0
    %608 = vmatpush1.bf16.msra.mxu0 0
    %609 = vmatprep.subr.bf16.mxu0 0
    %610 = vmatpush1.bf16.msra.mxu0 0
    %611 = vmatprep.subr.bf16.mxu0 0
    %612 = vmatpush1.bf16.msra.mxu0 0
    %613 = vmatprep.subr.bf16.mxu0 0
    %614 = vmatpush1.bf16.msra.mxu0 0
    %615 = vmatprep.subr.bf16.mxu0 0
    %616 = vmatpush1.bf16.msra.mxu0 0
    %617 = vmatprep.subr.bf16.mxu0 0
    %618 = vmatpush1.bf16.msra.mxu0 0
    %619 = vmatprep.subr.bf16.mxu0 0
    %620 = vmatpush1.bf16.msra.mxu0 0
    %621 = vmatprep.subr.bf16.mxu0 0
    %622 = vmatpush1.bf16.msra.mxu0 0
    %623 = vmatprep.subr.bf16.mxu0 0
    %624 = vmatpush1.bf16.msra.mxu0 0
    %625 = vmatprep.subr.bf16.mxu0 0
    %626 = vmatpush1.bf16.msra.mxu0 0
    %627 = vmatprep.subr.bf16.mxu0 0
    %628 = vmatpush1.bf16.msra.mxu0 0
    %629 = vmatprep.subr.bf16.mxu0 0
    %630 = vmatpush1.bf16.msra.mxu0 0
    %631 = vmatprep.subr.bf16.mxu0 0
    %632 = vmatpush1.bf16.msra.mxu0 0
    %633 = vmatprep.subr.bf16.mxu0 0
    %634 = vmatpush1.bf16.msra.mxu0 0
    %635 = vmatprep.mubr.bf16.mxu0 0
    %636 = vmatmul.mubr.bf16.gmra.mrb[0].mxu0 %v580
    %v637 = vpop.f32.mrb[0].mxu0
    %v638 = vadd.f32 %v565, %v637
    %v639 = vpop.f32.mrb[0].mxu0
    %v640 = vpop.f32.mrb[0].mxu0
    %v641 = vadd.f32 %v565, %v640
    %v642 = vpop.f32.mrb[0].mxu0
    %643 = vmatprep.mubr.bf16.mxu0 0
    %644 = vmatmul.mubr.bf16.gmra.mrb[0].mxu0 %v583
    %v645 = vpop.f32.mrb[0].mxu0
    %v646 = vadd.f32 %v565, %v645
    %v647 = vpop.f32.mrb[0].mxu0
    %v648 = vpop.f32.mrb[0].mxu0
    %v649 = vadd.f32 %v565, %v648
    %v650 = vpop.f32.mrb[0].mxu0
    %651 = vmatprep.mubr.bf16.mxu0 0
    %652 = vmatmul.mubr.bf16.gmra.mrb[0].mxu0 %v586
    %v653 = vpop.f32.mrb[0].mxu0
    %v654 = vadd.f32 %v565, %v653
    %v655 = vpop.f32.mrb[0].mxu0
    %v656 = vpop.f32.mrb[0].mxu0
    %v657 = vadd.f32 %v565, %v656
    %v658 = vpop.f32.mrb[0].mxu0
    %659 = vmatprep.mubr.bf16.mxu0 0
    %660 = vmatmul.mubr.bf16.gmra.mrb[0].mxu0 %v589
    %v661 = vpop.f32.mrb[0].mxu0
    %v662 = vadd.f32 %v565, %v661
    %v663 = vpop.f32.mrb[0].mxu0
    %v664 = vpop.f32.mrb[0].mxu0
    %v665 = vadd.f32 %v565, %v664
    %v666 = vpop.f32.mrb[0].mxu0
    %667 = vmatprep.mubr.bf16.mxu0 0
    %668 = vmatmul.mubr.bf16.gmra.mrb[0].mxu0 %v592
    %v669 = vpop.f32.mrb[0].mxu0
    %v670 = vadd.f32 %v565, %v669
    %v671 = vpop.f32.mrb[0].mxu0
    %v672 = vpop.f32.mrb[0].mxu0
    %v673 = vadd.f32 %v565, %v672
    %v674 = vpop.f32.mrb[0].mxu0
    %675 = vmatprep.mubr.bf16.mxu0 0
    %676 = vmatmul.mubr.bf16.gmra.mrb[0].mxu0 %v595
    %v677 = vpop.f32.mrb[0].mxu0
    %v678 = vadd.f32 %v565, %v677
    %v679 = vpop.f32.mrb[0].mxu0
    %v680 = vpop.f32.mrb[0].mxu0
    %v681 = vadd.f32 %v565, %v680
    %v682 = vpop.f32.mrb[0].mxu0
    %683 = vmatprep.mubr.bf16.mxu0 0
    %684 = vmatmul.mubr.bf16.gmra.mrb[0].mxu0 %v598
    %v685 = vpop.f32.mrb[0].mxu0
    %v686 = vadd.f32 %v565, %v685
    %v687 = vpop.f32.mrb[0].mxu0
    %v688 = vpop.f32.mrb[0].mxu0
    %v689 = vadd.f32 %v565, %v688
    %v690 = vpop.f32.mrb[0].mxu0
    %691 = vmatprep.mubr.bf16.mxu0 0
    %692 = vmatmul.mubr.bf16.gmra.mrb[0].mxu0 %v601
    %v693 = vpop.f32.mrb[0].mxu0
    %v694 = vadd.f32 %v565, %v693
    %v695 = vpop.f32.mrb[0].mxu0
    %v696 = vpop.f32.mrb[0].mxu0
    %v697 = vadd.f32 %v565, %v696
    %v698 = vpop.f32.mrb[0].mxu0
    %699 = vdwg.mxu0
    %v700 = vmul.f32 %v638, 0.5
    %v701 = vmul.f32 %v641, 0.5
    %v702 = vmul.f32 %v646, 0.5
    %v703 = vmul.f32 %v649, 0.5
    %v704 = vmul.f32 %v654, 0.5
    %v705 = vmul.f32 %v657, 0.5
    %v706 = vmul.f32 %v662, 0.5
    %v707 = vmul.f32 %v665, 0.5
    %v708 = vmul.f32 %v670, 0.5
    %v709 = vmul.f32 %v673, 0.5
    %v710 = vmul.f32 %v678, 0.5
    %v711 = vmul.f32 %v681, 0.5
    %v712 = vmul.f32 %v686, 0.5
    %v713 = vmul.f32 %v689, 0.5
    %v714 = vmul.f32 %v694, 0.5
    %v715 = vmul.f32 %v697, 0.5
    %v716 = vmul.f32 %v638, 0.70710677
    %v717 = vmul.f32 %v641, 0.70710677
    %v718 = vmul.f32 %v646, 0.70710677
    %v719 = vmul.f32 %v649, 0.70710677
    %v720 = vmul.f32 %v654, 0.70710677
    %v721 = vmul.f32 %v657, 0.70710677
    %v722 = vmul.f32 %v662, 0.70710677
    %v723 = vmul.f32 %v665, 0.70710677
    %v724 = vmul.f32 %v670, 0.70710677
    %v725 = vmul.f32 %v673, 0.70710677
    %v726 = vmul.f32 %v678, 0.70710677
    %v727 = vmul.f32 %v681, 0.70710677
    %v728 = vmul.f32 %v686, 0.70710677
    %v729 = vmul.f32 %v689, 0.70710677
    %v730 = vmul.f32 %v694, 0.70710677
    %v731 = vmul.f32 %v697, 0.70710677
    %v732 = vand.u32 2147483647, %v716
    %v733 = vand.u32 2147483647, %v717
    %v734 = vand.u32 2147483647, %v718
    %v735 = vand.u32 2147483647, %v719
    %v736 = vand.u32 2147483647, %v720
    %v737 = vand.u32 2147483647, %v721
    %v738 = vand.u32 2147483647, %v722
    %v739 = vand.u32 2147483647, %v723
    %v740 = vand.u32 2147483647, %v724
    %v741 = vand.u32 2147483647, %v725
    %v742 = vand.u32 2147483647, %v726
    %v743 = vand.u32 2147483647, %v727
    %v744 = vand.u32 2147483647, %v728
    %v745 = vand.u32 2147483647, %v729
    %v746 = vand.u32 2147483647, %v730
    %v747 = vand.u32 2147483647, %v731
    %v748 = vmul.f32 %v732, 0.3275911
    %v749 = vmul.f32 %v733, 0.3275911
    %v750 = vmul.f32 %v734, 0.3275911
    %v751 = vmul.f32 %v735, 0.3275911
    %v752 = vmul.f32 %v736, 0.3275911
    %v753 = vmul.f32 %v737, 0.3275911
    %v754 = vmul.f32 %v738, 0.3275911
    %v755 = vmul.f32 %v739, 0.3275911
    %v756 = vmul.f32 %v740, 0.3275911
    %v757 = vmul.f32 %v741, 0.3275911
    %v758 = vmul.f32 %v742, 0.3275911
    %v759 = vmul.f32 %v743, 0.3275911
    %v760 = vmul.f32 %v744, 0.3275911
    %v761 = vmul.f32 %v745, 0.3275911
    %v762 = vmul.f32 %v746, 0.3275911
    %v763 = vmul.f32 %v747, 0.3275911
    %v764 = vadd.f32 %v748, 1.0
    %v765 = vadd.f32 %v749, 1.0
    %v766 = vadd.f32 %v750, 1.0
    %v767 = vadd.f32 %v751, 1.0
    %v768 = vadd.f32 %v752, 1.0
    %v769 = vadd.f32 %v753, 1.0
    %v770 = vadd.f32 %v754, 1.0
    %v771 = vadd.f32 %v755, 1.0
    %v772 = vadd.f32 %v756, 1.0
    %v773 = vadd.f32 %v757, 1.0
    %v774 = vadd.f32 %v758, 1.0
    %v775 = vadd.f32 %v759, 1.0
    %v776 = vadd.f32 %v760, 1.0
    %v777 = vadd.f32 %v761, 1.0
    %v778 = vadd.f32 %v762, 1.0
    %v779 = vadd.f32 %v763, 1.0
    %v780 = vrcp.pop %v764
    %v781 = vmul.f32 1.0, %v780
    %v782 = vrcp.pop %v765
    %v783 = vmul.f32 1.0, %v782
    %v784 = vrcp.pop %v766
    %v785 = vmul.f32 1.0, %v784
    %v786 = vrcp.pop %v767
    %v787 = vmul.f32 1.0, %v786
    %v788 = vrcp.pop %v768
    %v789 = vmul.f32 1.0, %v788
    %v790 = vrcp.pop %v769
    %v791 = vmul.f32 1.0, %v790
    %v792 = vrcp.pop %v770
    %v793 = vmul.f32 1.0, %v792
    %v794 = vrcp.pop %v771
    %v795 = vmul.f32 1.0, %v794
    %v796 = vrcp.pop %v772
    %v797 = vmul.f32 1.0, %v796
    %v798 = vrcp.pop %v773
    %v799 = vmul.f32 1.0, %v798
    %v800 = vrcp.pop %v774
    %v801 = vmul.f32 1.0, %v800
    %v802 = vrcp.pop %v775
    %v803 = vmul.f32 1.0, %v802
    %v804 = vrcp.pop %v776
    %v805 = vmul.f32 1.0, %v804
    %v806 = vrcp.pop %v777
    %v807 = vmul.f32 1.0, %v806
    %v808 = vrcp.pop %v778
    %v809 = vmul.f32 1.0, %v808
    %v810 = vrcp.pop %v779
    %v811 = vmul.f32 1.0, %v810
    %v812 = vmul.f32 %v781, 1.0614054
    %v813 = vmul.f32 %v783, 1.0614054
    %v814 = vmul.f32 %v785, 1.0614054
    %v815 = vmul.f32 %v787, 1.0614054
    %v816 = vmul.f32 %v789, 1.0614054
    %v817 = vmul.f32 %v791, 1.0614054
    %v818 = vmul.f32 %v793, 1.0614054
    %v819 = vmul.f32 %v795, 1.0614054
    %v820 = vmul.f32 %v797, 1.0614054
    %v821 = vmul.f32 %v799, 1.0614054
    %v822 = vmul.f32 %v801, 1.0614054
    %v823 = vmul.f32 %v803, 1.0614054
    %v824 = vmul.f32 %v805, 1.0614054
    %v825 = vmul.f32 %v807, 1.0614054
    %v826 = vmul.f32 %v809, 1.0614054
    %v827 = vmul.f32 %v811, 1.0614054
    %v828 = vadd.f32 %v812, -1.4531521
    %v829 = vadd.f32 %v813, -1.4531521
    %v830 = vadd.f32 %v814, -1.4531521
    %v831 = vadd.f32 %v815, -1.4531521
    %v832 = vadd.f32 %v816, -1.4531521
    %v833 = vadd.f32 %v817, -1.4531521
    %v834 = vadd.f32 %v818, -1.4531521
    %v835 = vadd.f32 %v819, -1.4531521
    %v836 = vadd.f32 %v820, -1.4531521
    %v837 = vadd.f32 %v821, -1.4531521
    %v838 = vadd.f32 %v822, -1.4531521
    %v839 = vadd.f32 %v823, -1.4531521
    %v840 = vadd.f32 %v824, -1.4531521
    %v841 = vadd.f32 %v825, -1.4531521
    %v842 = vadd.f32 %v826, -1.4531521
    %v843 = vadd.f32 %v827, -1.4531521
    %v844 = vmul.f32 %v828, %v781
    %v845 = vmul.f32 %v829, %v783
    %v846 = vmul.f32 %v830, %v785
    %v847 = vmul.f32 %v831, %v787
    %v848 = vmul.f32 %v832, %v789
    %v849 = vmul.f32 %v833, %v791
    %v850 = vmul.f32 %v834, %v793
    %v851 = vmul.f32 %v835, %v795
    %v852 = vmul.f32 %v836, %v797
    %v853 = vmul.f32 %v837, %v799
    %v854 = vmul.f32 %v838, %v801
    %v855 = vmul.f32 %v839, %v803
    %v856 = vmul.f32 %v840, %v805
    %v857 = vmul.f32 %v841, %v807
    %v858 = vmul.f32 %v842, %v809
    %v859 = vmul.f32 %v843, %v811
    %v860 = vadd.f32 %v844, 1.4214138
    %v861 = vadd.f32 %v845, 1.4214138
    %v862 = vadd.f32 %v846, 1.4214138
    %v863 = vadd.f32 %v847, 1.4214138
    %v864 = vadd.f32 %v848, 1.4214138
    %v865 = vadd.f32 %v849, 1.4214138
    %v866 = vadd.f32 %v850, 1.4214138
    %v867 = vadd.f32 %v851, 1.4214138
    %v868 = vadd.f32 %v852, 1.4214138
    %v869 = vadd.f32 %v853, 1.4214138
    %v870 = vadd.f32 %v854, 1.4214138
    %v871 = vadd.f32 %v855, 1.4214138
    %v872 = vadd.f32 %v856, 1.4214138
    %v873 = vadd.f32 %v857, 1.4214138
    %v874 = vadd.f32 %v858, 1.4214138
    %v875 = vadd.f32 %v859, 1.4214138
    %v876 = vmul.f32 %v860, %v781
    %v877 = vmul.f32 %v861, %v783
    %v878 = vmul.f32 %v862, %v785
    %v879 = vmul.f32 %v863, %v787
    %v880 = vmul.f32 %v864, %v789
    %v881 = vmul.f32 %v865, %v791
    %v882 = vmul.f32 %v866, %v793
    %v883 = vmul.f32 %v867, %v795
    %v884 = vmul.f32 %v868, %v797
    %v885 = vmul.f32 %v869, %v799
    %v886 = vmul.f32 %v870, %v801
    %v887 = vmul.f32 %v871, %v803
    %v888 = vmul.f32 %v872, %v805
    %v889 = vmul.f32 %v873, %v807
    %v890 = vmul.f32 %v874, %v809
    %v891 = vmul.f32 %v875, %v811
    %v892 = vadd.f32 %v876, -0.28449672
    %v893 = vadd.f32 %v877, -0.28449672
    %v894 = vadd.f32 %v878, -0.28449672
    %v895 = vadd.f32 %v879, -0.28449672
    %v896 = vadd.f32 %v880, -0.28449672
    %v897 = vadd.f32 %v881, -0.28449672
    %v898 = vadd.f32 %v882, -0.28449672
    %v899 = vadd.f32 %v883, -0.28449672
    %v900 = vadd.f32 %v884, -0.28449672
    %v901 = vadd.f32 %v885, -0.28449672
    %v902 = vadd.f32 %v886, -0.28449672
    %v903 = vadd.f32 %v887, -0.28449672
    %v904 = vadd.f32 %v888, -0.28449672
    %v905 = vadd.f32 %v889, -0.28449672
    %v906 = vadd.f32 %v890, -0.28449672
    %v907 = vadd.f32 %v891, -0.28449672
    %v908 = vmul.f32 %v892, %v781
    %v909 = vmul.f32 %v893, %v783
    %v910 = vmul.f32 %v894, %v785
    %v911 = vmul.f32 %v895, %v787
    %v912 = vmul.f32 %v896, %v789
    %v913 = vmul.f32 %v897, %v791
    %v914 = vmul.f32 %v898, %v793
    %v915 = vmul.f32 %v899, %v795
    %v916 = vmul.f32 %v900, %v797
    %v917 = vmul.f32 %v901, %v799
    %v918 = vmul.f32 %v902, %v801
    %v919 = vmul.f32 %v903, %v803
    %v920 = vmul.f32 %v904, %v805
    %v921 = vmul.f32 %v905, %v807
    %v922 = vmul.f32 %v906, %v809
    %v923 = vmul.f32 %v907, %v811
    %v924 = vadd.f32 %v908, 0.2548296
    %v925 = vadd.f32 %v909, 0.2548296
    %v926 = vadd.f32 %v910, 0.2548296
    %v927 = vadd.f32 %v911, 0.2548296
    %v928 = vadd.f32 %v912, 0.2548296
    %v929 = vadd.f32 %v913, 0.2548296
    %v930 = vadd.f32 %v914, 0.2548296
    %v931 = vadd.f32 %v915, 0.2548296
    %v932 = vadd.f32 %v916, 0.2548296
    %v933 = vadd.f32 %v917, 0.2548296
    %v934 = vadd.f32 %v918, 0.2548296
    %v935 = vadd.f32 %v919, 0.2548296
    %v936 = vadd.f32 %v920, 0.2548296
    %v937 = vadd.f32 %v921, 0.2548296
    %v938 = vadd.f32 %v922, 0.2548296
    %v939 = vadd.f32 %v923, 0.2548296
    %v940 = vmul.f32 %v924, %v781
    %v941 = vmul.f32 %v925, %v783
    %v942 = vmul.f32 %v926, %v785
    %v943 = vmul.f32 %v927, %v787
    %v944 = vmul.f32 %v928, %v789
    %v945 = vmul.f32 %v929, %v791
    %v946 = vmul.f32 %v930, %v793
    %v947 = vmul.f32 %v931, %v795
    %v948 = vmul.f32 %v932, %v797
    %v949 = vmul.f32 %v933, %v799
    %v950 = vmul.f32 %v934, %v801
    %v951 = vmul.f32 %v935, %v803
    %v952 = vmul.f32 %v936, %v805
    %v953 = vmul.f32 %v937, %v807
    %v954 = vmul.f32 %v938, %v809
    %v955 = vmul.f32 %v939, %v811
    %v956 = vsub.f32 0.0, %v732
    %v957 = vsub.f32 0.0, %v733
    %v958 = vsub.f32 0.0, %v734
    %v959 = vsub.f32 0.0, %v735
    %v960 = vsub.f32 0.0, %v736
    %v961 = vsub.f32 0.0, %v737
    %v962 = vsub.f32 0.0, %v738
    %v963 = vsub.f32 0.0, %v739
    %v964 = vsub.f32 0.0, %v740
    %v965 = vsub.f32 0.0, %v741
    %v966 = vsub.f32 0.0, %v742
    %v967 = vsub.f32 0.0, %v743
    %v968 = vsub.f32 0.0, %v744
    %v969 = vsub.f32 0.0, %v745
    %v970 = vsub.f32 0.0, %v746
    %v971 = vsub.f32 0.0, %v747
    %v972 = vmul.f32 %v956, %v732
    %v973 = vmul.f32 %v957, %v733
    %v974 = vmul.f32 %v958, %v734
    %v975 = vmul.f32 %v959, %v735
    %v976 = vmul.f32 %v960, %v736
    %v977 = vmul.f32 %v961, %v737
    %v978 = vmul.f32 %v962, %v738
    %v979 = vmul.f32 %v963, %v739
    %v980 = vmul.f32 %v964, %v740
    %v981 = vmul.f32 %v965, %v741
    %v982 = vmul.f32 %v966, %v742
    %v983 = vmul.f32 %v967, %v743
    %v984 = vmul.f32 %v968, %v744
    %v985 = vmul.f32 %v969, %v745
    %v986 = vmul.f32 %v970, %v746
    %v987 = vmul.f32 %v971, %v747
    %v988 = vmul.f32 %v972, 1.442695
    %v989 = vpow.pop %v988
    %v990 = vmul.f32 %v973, 1.442695
    %v991 = vpow.pop %v990
    %v992 = vmul.f32 %v974, 1.442695
    %v993 = vpow.pop %v992
    %v994 = vmul.f32 %v975, 1.442695
    %v995 = vpow.pop %v994
    %v996 = vmul.f32 %v976, 1.442695
    %v997 = vpow.pop %v996
    %v998 = vmul.f32 %v977, 1.442695
    %v999 = vpow.pop %v998
    %v1000 = vmul.f32 %v978, 1.442695
    %v1001 = vpow.pop %v1000
    %v1002 = vmul.f32 %v979, 1.442695
    %v1003 = vpow.pop %v1002
    %v1004 = vmul.f32 %v980, 1.442695
    %v1005 = vpow.pop %v1004
    %v1006 = vmul.f32 %v981, 1.442695
    %v1007 = vpow.pop %v1006
    %v1008 = vmul.f32 %v982, 1.442695
    %v1009 = vpow.pop %v1008
    %v1010 = vmul.f32 %v983, 1.442695
    %v1011 = vpow.pop %v1010
    %v1012 = vmul.f32 %v984, 1.442695
    %v1013 = vpow.pop %v1012
    %v1014 = vmul.f32 %v985, 1.442695
    %v1015 = vpow.pop %v1014
    %v1016 = vmul.f32 %v986, 1.442695
    %v1017 = vpow.pop %v1016
    %v1018 = vmul.f32 %v987, 1.442695
    %v1019 = vpow.pop %v1018
    %v1020 = vmul.f32 %v940, %v989
    %v1021 = vmul.f32 %v941, %v991
    %v1022 = vmul.f32 %v942, %v993
    %v1023 = vmul.f32 %v943, %v995
    %v1024 = vmul.f32 %v944, %v997
    %v1025 = vmul.f32 %v945, %v999
    %v1026 = vmul.f32 %v946, %v1001
    %v1027 = vmul.f32 %v947, %v1003
    %v1028 = vmul.f32 %v948, %v1005
    %v1029 = vmul.f32 %v949, %v1007
    %v1030 = vmul.f32 %v950, %v1009
    %v1031 = vmul.f32 %v951, %v1011
    %v1032 = vmul.f32 %v952, %v1013
    %v1033 = vmul.f32 %v953, %v1015
    %v1034 = vmul.f32 %v954, %v1017
    %v1035 = vmul.f32 %v955, %v1019
    %v1036 = vsub.f32 1.0, %v1020
    %v1037 = vsub.f32 1.0, %v1021
    %v1038 = vsub.f32 1.0, %v1022
    %v1039 = vsub.f32 1.0, %v1023
    %v1040 = vsub.f32 1.0, %v1024
    %v1041 = vsub.f32 1.0, %v1025
    %v1042 = vsub.f32 1.0, %v1026
    %v1043 = vsub.f32 1.0, %v1027
    %v1044 = vsub.f32 1.0, %v1028
    %v1045 = vsub.f32 1.0, %v1029
    %v1046 = vsub.f32 1.0, %v1030
    %v1047 = vsub.f32 1.0, %v1031
    %v1048 = vsub.f32 1.0, %v1032
    %v1049 = vsub.f32 1.0, %v1033
    %v1050 = vsub.f32 1.0, %v1034
    %v1051 = vsub.f32 1.0, %v1035
    %vm1052 = vcmp.ge.f32.partialorder %v716, 0.0
    %vm1053 = vcmp.ge.f32.partialorder %v717, 0.0
    %vm1054 = vcmp.ge.f32.partialorder %v718, 0.0
    %vm1055 = vcmp.ge.f32.partialorder %v719, 0.0
    %vm1056 = vcmp.ge.f32.partialorder %v720, 0.0
    %vm1057 = vcmp.ge.f32.partialorder %v721, 0.0
    %vm1058 = vcmp.ge.f32.partialorder %v722, 0.0
    %vm1059 = vcmp.ge.f32.partialorder %v723, 0.0
    %vm1060 = vcmp.ge.f32.partialorder %v724, 0.0
    %vm1061 = vcmp.ge.f32.partialorder %v725, 0.0
    %vm1062 = vcmp.ge.f32.partialorder %v726, 0.0
    %vm1063 = vcmp.ge.f32.partialorder %v727, 0.0
    %vm1064 = vcmp.ge.f32.partialorder %v728, 0.0
    %vm1065 = vcmp.ge.f32.partialorder %v729, 0.0
    %vm1066 = vcmp.ge.f32.partialorder %v730, 0.0
    %vm1067 = vcmp.ge.f32.partialorder %v731, 0.0
    %v1068 = vsub.f32 0.0, %v1036
    %v1069 = vsub.f32 0.0, %v1037
    %v1070 = vsub.f32 0.0, %v1038
    %v1071 = vsub.f32 0.0, %v1039
    %v1072 = vsub.f32 0.0, %v1040
    %v1073 = vsub.f32 0.0, %v1041
    %v1074 = vsub.f32 0.0, %v1042
    %v1075 = vsub.f32 0.0, %v1043
    %v1076 = vsub.f32 0.0, %v1044
    %v1077 = vsub.f32 0.0, %v1045
    %v1078 = vsub.f32 0.0, %v1046
    %v1079 = vsub.f32 0.0, %v1047
    %v1080 = vsub.f32 0.0, %v1048
    %v1081 = vsub.f32 0.0, %v1049
    %v1082 = vsub.f32 0.0, %v1050
    %v1083 = vsub.f32 0.0, %v1051
    %v1084 = vsel %vm1052, %v1036, %v1068
    %v1085 = vsel %vm1053, %v1037, %v1069
    %v1086 = vsel %vm1054, %v1038, %v1070
    %v1087 = vsel %vm1055, %v1039, %v1071
    %v1088 = vsel %vm1056, %v1040, %v1072
    %v1089 = vsel %vm1057, %v1041, %v1073
    %v1090 = vsel %vm1058, %v1042, %v1074
    %v1091 = vsel %vm1059, %v1043, %v1075
    %v1092 = vsel %vm1060, %v1044, %v1076
    %v1093 = vsel %vm1061, %v1045, %v1077
    %v1094 = vsel %vm1062, %v1046, %v1078
    %v1095 = vsel %vm1063, %v1047, %v1079
    %v1096 = vsel %vm1064, %v1048, %v1080
    %v1097 = vsel %vm1065, %v1049, %v1081
    %v1098 = vsel %vm1066, %v1050, %v1082
    %v1099 = vsel %vm1067, %v1051, %v1083
    %v1100 = vadd.f32 %v1084, 1.0
    %v1101 = vadd.f32 %v1085, 1.0
    %v1102 = vadd.f32 %v1086, 1.0
    %v1103 = vadd.f32 %v1087, 1.0
    %v1104 = vadd.f32 %v1088, 1.0
    %v1105 = vadd.f32 %v1089, 1.0
    %v1106 = vadd.f32 %v1090, 1.0
    %v1107 = vadd.f32 %v1091, 1.0
    %v1108 = vadd.f32 %v1092, 1.0
    %v1109 = vadd.f32 %v1093, 1.0
    %v1110 = vadd.f32 %v1094, 1.0
    %v1111 = vadd.f32 %v1095, 1.0
    %v1112 = vadd.f32 %v1096, 1.0
    %v1113 = vadd.f32 %v1097, 1.0
    %v1114 = vadd.f32 %v1098, 1.0
    %v1115 = vadd.f32 %v1099, 1.0
    %v1116 = vmul.f32 %v700, %v1100
    %v1117 = vmul.f32 %v701, %v1101
    %v1118 = vmul.f32 %v702, %v1102
    %v1119 = vmul.f32 %v703, %v1103
    %v1120 = vmul.f32 %v704, %v1104
    %v1121 = vmul.f32 %v705, %v1105
    %v1122 = vmul.f32 %v706, %v1106
    %v1123 = vmul.f32 %v707, %v1107
    %v1124 = vmul.f32 %v708, %v1108
    %v1125 = vmul.f32 %v709, %v1109
    %v1126 = vmul.f32 %v710, %v1110
    %v1127 = vmul.f32 %v711, %v1111
    %v1128 = vmul.f32 %v712, %v1112
    %v1129 = vmul.f32 %v713, %v1113
    %v1130 = vmul.f32 %v714, %v1114
    %v1131 = vmul.f32 %v715, %v1115
    %v1132 = vpack.c.bf16 %v1117, %v1116
    %v1133 = vpack.c.bf16 %v1119, %v1118
    %v1134 = vpack.c.bf16 %v1121, %v1120
    %v1135 = vpack.c.bf16 %v1123, %v1122
    %v1136 = vpack.c.bf16 %v1125, %v1124
    %v1137 = vpack.c.bf16 %v1127, %v1126
    %v1138 = vpack.c.bf16 %v1129, %v1128
    %v1139 = vpack.c.bf16 %v1131, %v1130
    %v1140 = vld [vmem:[%s8] sm:$0xf]
    %v1141 = vld [vmem:[%s8 + $0x4] sm:$0xf]
    %v1142 = vld [vmem:[%s8 + $0x8] sm:$0xf]
    %v1143 = vld [vmem:[%s8 + $0xc] sm:$0xf]
    %v1144 = vld [vmem:[%s8 + $0x10] sm:$0xf]
    %v1145 = vld [vmem:[%s8 + $0x14] sm:$0xf]
    %v1146 = vld [vmem:[%s8 + $0x18] sm:$0xf]
    %v1147 = vld [vmem:[%s8 + $0x1c] sm:$0xf]
    %v1148 = vld [vmem:[%s8 + $0x20] sm:$0xf]
    %v1149 = vld [vmem:[%s8 + $0x24] sm:$0xf]
    %v1150 = vld [vmem:[%s8 + $0x28] sm:$0xf]
    %v1151 = vld [vmem:[%s8 + $0x2c] sm:$0xf]
    %v1152 = vld [vmem:[%s8 + $0x30] sm:$0xf]
    %v1153 = vld [vmem:[%s8 + $0x34] sm:$0xf]
    %v1154 = vld [vmem:[%s8 + $0x38] sm:$0xf]
    %v1155 = vld [vmem:[%s8 + $0x3c] sm:$0xf]
    %v1172 = vunpack.c.l.b16 %v1140
    %v1173 = vunpack.c.l.b16 %v1141
    %v1174 = vunpack.c.l.b16 %v1142
    %v1175 = vunpack.c.l.b16 %v1143
    %v1176 = vunpack.c.l.b16 %v1144
    %v1177 = vunpack.c.l.b16 %v1145
    %v1178 = vunpack.c.l.b16 %v1146
    %v1179 = vunpack.c.l.b16 %v1147
    %v1180 = vunpack.c.l.b16 %v1148
    %v1181 = vunpack.c.l.b16 %v1149
    %v1182 = vunpack.c.l.b16 %v1150
    %v1183 = vunpack.c.l.b16 %v1151
    %v1184 = vunpack.c.l.b16 %v1152
    %v1185 = vunpack.c.l.b16 %v1153
    %v1186 = vunpack.c.l.b16 %v1154
    %v1187 = vunpack.c.l.b16 %v1155
    %v1188 = vpack.c.b16 %v1173, %v1172
    %v1189 = vpack.c.b16 %v1175, %v1174
    %v1190 = vpack.c.b16 %v1177, %v1176
    %v1191 = vpack.c.b16 %v1179, %v1178
    %v1192 = vpack.c.b16 %v1181, %v1180
    %v1193 = vpack.c.b16 %v1183, %v1182
    %v1194 = vpack.c.b16 %v1185, %v1184
    %v1195 = vpack.c.b16 %v1187, %v1186
    %1204 = vmatprep.subr.bf16.mxu0 0
    %1205 = vmatpush1.bf16.msra.mxu0 %v1188
    %1206 = vmatprep.subr.bf16.mxu0 0
    %1207 = vmatpush1.bf16.msra.mxu0 %v1189
    %1208 = vmatprep.subr.bf16.mxu0 0
    %1209 = vmatpush1.bf16.msra.mxu0 %v1190
    %1210 = vmatprep.subr.bf16.mxu0 0
    %1211 = vmatpush1.bf16.msra.mxu0 %v1191
    %1212 = vmatprep.subr.bf16.mxu0 0
    %1213 = vmatpush1.bf16.msra.mxu0 %v1192
    %1214 = vmatprep.subr.bf16.mxu0 0
    %1215 = vmatpush1.bf16.msra.mxu0 %v1193
    %1216 = vmatprep.subr.bf16.mxu0 0
    %1217 = vmatpush1.bf16.msra.mxu0 %v1194
    %1218 = vmatprep.subr.bf16.mxu0 0
    %1219 = vmatpush1.bf16.msra.mxu0 %v1195
    %1220 = vmatprep.subr.bf16.mxu0 0
    %1221 = vmatpush1.bf16.msra.mxu0 0
    %1222 = vmatprep.subr.bf16.mxu0 0
    %1223 = vmatpush1.bf16.msra.mxu0 0
    %1224 = vmatprep.subr.bf16.mxu0 0
    %1225 = vmatpush1.bf16.msra.mxu0 0
    %1226 = vmatprep.subr.bf16.mxu0 0
    %1227 = vmatpush1.bf16.msra.mxu0 0
    %1228 = vmatprep.subr.bf16.mxu0 0
    %1229 = vmatpush1.bf16.msra.mxu0 0
    %1230 = vmatprep.subr.bf16.mxu0 0
    %1231 = vmatpush1.bf16.msra.mxu0 0
    %1232 = vmatprep.subr.bf16.mxu0 0
    %1233 = vmatpush1.bf16.msra.mxu0 0
    %1234 = vmatprep.subr.bf16.mxu0 0
    %1235 = vmatpush1.bf16.msra.mxu0 0
    %1236 = vmatprep.mubr.bf16.mxu0 0
    %1237 = vmatmul.mubr.bf16.gmra.mrb[0].mxu0 %v1132
    %v1238 = vpop.f32.mrb[0].mxu0
    %v1239 = vadd.f32 0.0, %v1238
    %v1240 = vpop.f32.mrb[0].mxu0
    %v1241 = vpop.f32.mrb[0].mxu0
    %v1242 = vadd.f32 0.0, %v1241
    %v1243 = vpop.f32.mrb[0].mxu0
    %1244 = vmatprep.mubr.bf16.mxu0 0
    %1245 = vmatmul.mubr.bf16.gmra.mrb[0].mxu0 %v1133
    %v1246 = vpop.f32.mrb[0].mxu0
    %v1247 = vadd.f32 0.0, %v1246
    %v1248 = vpop.f32.mrb[0].mxu0
    %v1249 = vpop.f32.mrb[0].mxu0
    %v1250 = vadd.f32 0.0, %v1249
    %v1251 = vpop.f32.mrb[0].mxu0
    %1252 = vmatprep.mubr.bf16.mxu0 0
    %1253 = vmatmul.mubr.bf16.gmra.mrb[0].mxu0 %v1134
    %v1254 = vpop.f32.mrb[0].mxu0
    %v1255 = vadd.f32 0.0, %v1254
    %v1256 = vpop.f32.mrb[0].mxu0
    %v1257 = vpop.f32.mrb[0].mxu0
    %v1258 = vadd.f32 0.0, %v1257
    %v1259 = vpop.f32.mrb[0].mxu0
    %1260 = vmatprep.mubr.bf16.mxu0 0
    %1261 = vmatmul.mubr.bf16.gmra.mrb[0].mxu0 %v1135
    %v1262 = vpop.f32.mrb[0].mxu0
    %v1263 = vadd.f32 0.0, %v1262
    %v1264 = vpop.f32.mrb[0].mxu0
    %v1265 = vpop.f32.mrb[0].mxu0
    %v1266 = vadd.f32 0.0, %v1265
    %v1267 = vpop.f32.mrb[0].mxu0
    %1268 = vmatprep.mubr.bf16.mxu0 0
    %1269 = vmatmul.mubr.bf16.gmra.mrb[0].mxu0 %v1136
    %v1270 = vpop.f32.mrb[0].mxu0
    %v1271 = vadd.f32 0.0, %v1270
    %v1272 = vpop.f32.mrb[0].mxu0
    %v1273 = vpop.f32.mrb[0].mxu0
    %v1274 = vadd.f32 0.0, %v1273
    %v1275 = vpop.f32.mrb[0].mxu0
    %1276 = vmatprep.mubr.bf16.mxu0 0
    %1277 = vmatmul.mubr.bf16.gmra.mrb[0].mxu0 %v1137
    %v1278 = vpop.f32.mrb[0].mxu0
    %v1279 = vadd.f32 0.0, %v1278
    %v1280 = vpop.f32.mrb[0].mxu0
    %v1281 = vpop.f32.mrb[0].mxu0
    %v1282 = vadd.f32 0.0, %v1281
    %v1283 = vpop.f32.mrb[0].mxu0
    %1284 = vmatprep.mubr.bf16.mxu0 0
    %1285 = vmatmul.mubr.bf16.gmra.mrb[0].mxu0 %v1138
    %v1286 = vpop.f32.mrb[0].mxu0
    %v1287 = vadd.f32 0.0, %v1286
    %v1288 = vpop.f32.mrb[0].mxu0
    %v1289 = vpop.f32.mrb[0].mxu0
    %v1290 = vadd.f32 0.0, %v1289
    %v1291 = vpop.f32.mrb[0].mxu0
    %1292 = vmatprep.mubr.bf16.mxu0 0
    %1293 = vmatmul.mubr.bf16.gmra.mrb[0].mxu0 %v1139
    %v1294 = vpop.f32.mrb[0].mxu0
    %v1295 = vadd.f32 0.0, %v1294
    %v1296 = vpop.f32.mrb[0].mxu0
    %v1297 = vpop.f32.mrb[0].mxu0
    %v1298 = vadd.f32 0.0, %v1297
    %v1299 = vpop.f32.mrb[0].mxu0
    %1300 = vdwg.mxu0
    %v1301 = vadd.f32 %v540, %v1239
    %v1302 = vadd.f32 %v541, %v1242
    %v1303 = vadd.f32 %v542, %v1247
    %v1304 = vadd.f32 %v543, %v1250
    %v1305 = vadd.f32 %v544, %v1255
    %v1306 = vadd.f32 %v545, %v1258
    %v1307 = vadd.f32 %v546, %v1263
    %v1308 = vadd.f32 %v547, %v1266
    %v1309 = vadd.f32 %v548, %v1271
    %v1310 = vadd.f32 %v549, %v1274
    %v1311 = vadd.f32 %v550, %v1279
    %v1312 = vadd.f32 %v551, %v1282
    %v1313 = vadd.f32 %v552, %v1287
    %v1314 = vadd.f32 %v553, %v1290
    %v1315 = vadd.f32 %v554, %v1295
    %v1316 = vadd.f32 %v555, %v1298
    %1317 = vst.msk [vmem:[#allocation2] sm:$0xff] %vm116, %v1301
    %1318 = vst.msk [vmem:[#allocation2 + $0x8] sm:$0xff] %vm116, %v1302
    %1319 = vst.msk [vmem:[#allocation2 + $0x10] sm:$0xff] %vm116, %v1303
    %1320 = vst.msk [vmem:[#allocation2 + $0x18] sm:$0xff] %vm116, %v1304
    %1321 = vst.msk [vmem:[#allocation2 + $0x20] sm:$0xff] %vm116, %v1305
    %1322 = vst.msk [vmem:[#allocation2 + $0x28] sm:$0xff] %vm116, %v1306
    %1323 = vst.msk [vmem:[#allocation2 + $0x30] sm:$0xff] %vm116, %v1307
    %1324 = vst.msk [vmem:[#allocation2 + $0x38] sm:$0xff] %vm116, %v1308
    %1325 = vst.msk [vmem:[#allocation2 + $0x40] sm:$0xff] %vm116, %v1309
    %1326 = vst.msk [vmem:[#allocation2 + $0x48] sm:$0xff] %vm116, %v1310
    %1327 = vst.msk [vmem:[#allocation2 + $0x50] sm:$0xff] %vm116, %v1311
    %1328 = vst.msk [vmem:[#allocation2 + $0x58] sm:$0xff] %vm116, %v1312
    %1329 = vst.msk [vmem:[#allocation2 + $0x60] sm:$0xff] %vm116, %v1313
    %1330 = vst.msk [vmem:[#allocation2 + $0x68] sm:$0xff] %vm116, %v1314
    %1331 = vst.msk [vmem:[#allocation2 + $0x70] sm:$0xff] %vm116, %v1315
    %1332 = vst.msk [vmem:[#allocation2 + $0x78] sm:$0xff] %vm116, %v1316
    // Predicated region
    $region42: #{nat_layer_forward.5} parent=1 // pred_check
      _
    $region43: #{nat_layer_forward.5} parent=1 // pred_check_branch
      %1334 = sbr.rel (0) target = $region45
    $region44: #{nat_layer_forward.5} parent=1 // pred_region
      %s1336 = ssub.s32 2048, 2048
      %1337 = vsyncadd [#allocation3], %s1336
      %s1338 = sshll.u32 [#allocation2], 4
      %s1339 = int_to_ptr.vmem [resolvable:$true] %s1338
      %1344 = dma.vmem_to_hbm [thread:$0]  %s1339, 2048, %s10, [#allocation3], 128, 128, 8
    $region45: #{nat_layer_forward.5} parent=1 // pred_fallthru
      _
    // Predicated region
    $region46: #{nat_layer_forward.5} parent=1 // pred_check
      _
    $region47: #{nat_layer_forward.5} parent=1 // pred_check_branch
      %1346 = sbr.rel (0) target = $region49
    $region48: #{nat_layer_forward.5} parent=1 // pred_region
      %1347 = dma.done [#allocation3], 2048
    $region49: #{nat_layer_forward.5} parent=1 // pred_fallthru
      _
    %1348 = vsyncpa [#allocation3], 1

</llo_original>
